<compile_context>
chip_gen: v5e
topology: v5e:2x2
jax: 0.10.0
libtpu: 0.0.40
codegen_flags: <defaults>
</compile_context>

<pallas_src>
import numpy as np
import jax
import jax.numpy as jnp
from jax.experimental import pallas as pl
from jax.experimental.pallas import tpu as pltpu

# ----------------------------- constants -------------------------------------
SEQUENCE_LENGTH = 2
NETWORK_IMAGE_LAYER_SIZE = 2
NETWORK_OUTPUT_SIZE = 6
IN_CH = SEQUENCE_LENGTH * NETWORK_IMAGE_LAYER_SIZE   # conv input channels = 4
HIDDEN = 256
FF_DIM = 512
CONV_CH = 32
IMG = 16                       # spatial size of the synthetic images
PAD_IMG = IMG + 2              # after 1-pixel conv padding
POS_DIM = 7
NO_CAMERAS = 2
BATCH = 2
LN_EPS = 1e-5
OUT_PAD = 128                  # lane-dense padded width of the final MLP layers
CONV_K = 3 * PAD_IMG * IN_CH   # 216: K dim of the single K-concat conv matmul
CONV_N = IMG * CONV_CH         # 512: (w, out_ch) flattened conv output lanes
W_DTYPE = jnp.float32          # matmul operand dtype; f32 (accuracy > throughput here)

# rows of the packed (16, 512) bias / gamma / beta slab
ROW_BCONV = 0     # rows 0,1: conv bias per camera           (width 512)
ROW_FCB = 2       # rows 2,3: image-FC bias per camera       (width 256)
ROW_BVO = 4       # folded value+out proj bias               (width 256)
ROW_G1 = 5        # LN1 gamma                                 (width 256)
ROW_BE1 = 6       # LN1 beta                                  (width 256)
ROW_BF1 = 7       # FFN bias 1                                (width 512)
ROW_BF2 = 8       # FFN bias 2                                (width 256)
ROW_G2 = 9        # LN2 gamma                                 (width 256)
ROW_BE2 = 10      # LN2 beta                                  (width 256)
ROW_B1 = 11       # MLP bias 1                                (width 256)
ROW_B2 = 12       # MLP bias 2                                (width 128)
ROW_B3 = 13       # MLP bias 3 (padded)                       (width 128)
ROW_B4 = 14       # MLP bias 4 (padded)                       (width 128)
BIAS_ROWS = 16
BIAS_COLS = 512


# ------------------- single fused kernel: encoder + attention + MLP ----------
def _network_kernel(lhs_ref, pos_ref, bias_ref,
                    wband_ref, fceff_ref, w256_ref, wf1_ref, wf2_ref,
                    w1b_ref, w2_ref, w128_ref, out_ref):
    """Whole forward pass in one VMEM-resident invocation (no grid).

    lhs_ref  : (cams, BATCH*IMG, 216) f32  h-only im2col of the padded NHWC images
    pos_ref  : (BATCH, 7) f32
    bias_ref : (16, 512) f32               packed bias / gamma / beta slab
    wband_ref: (cams, 216, 512)            K-concat banded conv weights
    fceff_ref: (cams, 512, 256)            image FC with 1/(H*W) avg-pool folded in
    w256_ref : (2, 256, 256)               [0]=folded v+o proj, [1]=MLP layer-1 (combined part)
    wf1_ref  : (256, 512), wf2_ref: (512, 256)   FFN
    w1b_ref  : (7, 256)                    MLP layer-1 (positions part)
    w2_ref   : (256, 128)
    w128_ref : (2, 128, 128)               [0]=MLP layer-3 (padded), [1]=MLP layer-4 (padded)
    out_ref  : (BATCH, 128) f32            cols >= NETWORK_OUTPUT_SIZE are zero-padding
    """
    def mm(x, w):
        return jnp.dot(x.astype(W_DTYPE), w.astype(W_DTYPE),
                       preferred_element_type=jnp.float32)

    def brow(row, width):
        return bias_ref[row:row + 1, :width]          # (1, width) broadcast row

    def layer_norm(x, g_row, b_row):
        mu = jnp.mean(x, axis=-1, keepdims=True)
        var = jnp.mean((x - mu) ** 2, axis=-1, keepdims=True)
        return (x - mu) * jax.lax.rsqrt(var + LN_EPS) * brow(g_row, HIDDEN) + brow(b_row, HIDDEN)

    # ---- per-camera image encoder (statically unrolled, one conv matmul each) ----
    feats = []
    for cam in range(NO_CAMERAS):
        conv = mm(lhs_ref[cam], wband_ref[cam]) + brow(ROW_BCONV + cam, CONV_N)
        conv = jnp.maximum(conv, 0.0)                  # (BATCH*IMG, 512), ReLU in f32
        pooled = jnp.concatenate(
            [jnp.sum(conv[b * IMG:(b + 1) * IMG, :], axis=0, keepdims=True)
             for b in range(BATCH)], axis=0)           # (BATCH, 512): sum over h
        # w-sum and 1/(H*W) are folded into fceff -> one (2,512)@(512,256) matmul
        feats.append(mm(pooled, fceff_ref[cam]) + brow(ROW_FCB + cam, HIDDEN))

    xi, xj = feats[0], feats[1]                        # (BATCH, 256) each

    # ---- cross-view attention: one token per view -> softmax == 1, q/k dead ----
    attn = mm(xj, w256_ref[0]) + brow(ROW_BVO, HIDDEN)        # folded value+out proj
    h = layer_norm(xi + attn, ROW_G1, ROW_BE1)
    f = jnp.maximum(mm(h, wf1_ref[...]) + brow(ROW_BF1, FF_DIM), 0.0)
    f = mm(f, wf2_ref[...]) + brow(ROW_BF2, HIDDEN)
    y = layer_norm(h + f, ROW_G2, ROW_BE2)             # combined_output (single pair)

    # ---- MLP head.  cat([combined, positions]) split into 256-wide + 7-wide dots.
    # Dropout(p=0.2) is identity in eval mode.
    h1 = mm(y, w256_ref[1]) + mm(pos_ref[...], w1b_ref[...]) + brow(ROW_B1, 256)
    h1 = jnp.maximum(h1, 0.0)
    h2 = jnp.maximum(mm(h1, w2_ref[...]) + brow(ROW_B2, 128), 0.0)
    h3 = jnp.maximum(mm(h2, w128_ref[0]) + brow(ROW_B3, OUT_PAD), 0.0)
    out_ref[...] = mm(h3, w128_ref[1]) + brow(ROW_B4, OUT_PAD)


# ----------------------------- forward ----------------------------------------
def network_forward(params, xs, positions):
    # xs: list of NO_CAMERAS NCHW tensors (BATCH, IN_CH, IMG, IMG), PyTorch convention.
    # Minimal, fully fused XLA prep over all cameras at once:
    # NCHW -> NHWC, 1-pixel zero pad, h-only im2col -> (cams, BATCH*IMG, 216).
    x = jnp.stack(xs, axis=0)                                        # (cams, B, C, H, W)
    x = jnp.transpose(x, (0, 1, 3, 4, 2)).reshape(NO_CAMERAS, BATCH, IMG, IMG * IN_CH)
    xpad = jnp.pad(x, ((0, 0), (0, 0), (1, 1), (IN_CH, IN_CH)))     # (cams, B, 18, 72)
    lhs = jnp.concatenate([xpad[:, :, dh:dh + IMG, :] for dh in range(3)], axis=-1)
    lhs = lhs.reshape(NO_CAMERAS, BATCH * IMG, CONV_K)               # (cams, 32, 216)

    out = pl.pallas_call(
        _network_kernel,
        in_specs=[pl.BlockSpec(memory_space=pltpu.MemorySpace.VMEM)] * 11,
        out_specs=pl.BlockSpec(memory_space=pltpu.MemorySpace.VMEM),
        out_shape=jax.ShapeDtypeStruct((BATCH, OUT_PAD), jnp.float32),
    )(lhs, positions, params["bias"], params["wband"], params["fceff"],
      params["w256"], params["wf1"], params["wf2"], params["w1b"],
      params["w2"], params["w128"])
    return out[:, :NETWORK_OUTPUT_SIZE]


# ----------------------------- parameter init ---------------------------------
def _dense(key, fan_in, fan_out):
    k1, k2 = jax.random.split(key)
    s = 1.0 / np.sqrt(fan_in)
    w = np.asarray(jax.random.uniform(k1, (fan_in, fan_out), jnp.float32, -s, s))
    b = np.asarray(jax.random.uniform(k2, (fan_out,), jnp.float32, -s, s))
    return w, b


def init_params(key):
    assert NO_CAMERAS == 2  # TODO(synk): kernel hardcodes the single camera pair (0,1).
    keys = jax.random.split(key, 3)

    # ---- per-camera ImageLayer, pre-packed as one K-concat banded-conv matrix ----
    cam_keys = jax.random.split(keys[0], NO_CAMERAS)
    wband_l, fceff_l, bconv_rows, fcb_rows = [], [], [], []
    for c in range(NO_CAMERAS):
        kw, kb, kf = jax.random.split(cam_keys[c], 3)
        s = 1.0 / np.sqrt(IN_CH * 9)
        wt = np.asarray(jax.random.uniform(kw, (CONV_CH, IN_CH, 3, 3), jnp.float32, -s, s))
        cb = np.asarray(jax.random.uniform(kb, (CONV_CH,), jnp.float32, -s, s))
        # banded conv weights: conv[h, w*32+o] =
        #   sum_{dh, wp, c} lhs[h, dh*72 + wp*4 + c] * wband[dh*72 + wp*4 + c, w*32+o]
        wband = np.zeros((3, PAD_IMG * IN_CH, CONV_N), np.float32)
        for dh in range(3):
            for w in range(IMG):
                for dw in range(3):
                    wp = w + dw
                    wband[dh, wp * IN_CH:(wp + 1) * IN_CH,
                          w * CONV_CH:(w + 1) * CONV_CH] = wt[:, :, dh, dw].T
        wband_l.append(wband.reshape(CONV_K, CONV_N))                # (216, 512)
        fw, fb = _dense(kf, CONV_CH, HIDDEN)
        fceff_l.append(np.tile(fw, (IMG, 1)) / float(IMG * IMG))     # fold avg-pool into fc
        bconv_rows.append(np.tile(cb, IMG))
        fcb_rows.append(fb)

    # ---- cross-view attention; q/k dead, value+out projections folded (exact) ----
    ka = jax.random.split(keys[1], 4)
    wv, bv = _dense(ka[0], HIDDEN, HIDDEN)
    wo, bo = _dense(ka[1], HIDDEN, HIDDEN)
    wvo = wv @ wo
    bvo = bv @ wo + bo
    wf1, bf1 = _dense(ka[2], HIDDEN, FF_DIM)
    wf2, bf2 = _dense(ka[3], FF_DIM, HIDDEN)

    # ---- MLP head: (256+7) -> 256 -> 128 -> 64 -> 6 (tail padded to 128 lanes) ----
    km = jax.random.split(keys[2], 4)
    w1, b1 = _dense(km[0], HIDDEN + POS_DIM, 256)
    w2, b2 = _dense(km[1], 256, 128)
    w3, b3 = _dense(km[2], 128, 64)
    w4, b4 = _dense(km[3], 64, NETWORK_OUTPUT_SIZE)
    w3p = np.zeros((128, OUT_PAD), np.float32); w3p[:, :64] = w3
    w4p = np.zeros((OUT_PAD, OUT_PAD), np.float32); w4p[:64, :NETWORK_OUTPUT_SIZE] = w4

    # ---- every bias / gamma / beta row packed into a single (16, 512) slab ----
    slab = np.zeros((BIAS_ROWS, BIAS_COLS), np.float32)
    slab[ROW_BCONV + 0, :CONV_N] = bconv_rows[0]
    slab[ROW_BCONV + 1, :CONV_N] = bconv_rows[1]
    slab[ROW_FCB + 0, :HIDDEN] = fcb_rows[0]
    slab[ROW_FCB + 1, :HIDDEN] = fcb_rows[1]
    slab[ROW_BVO, :HIDDEN] = bvo
    slab[ROW_G1, :HIDDEN] = 1.0            # LN1 gamma (beta row stays zero)
    slab[ROW_BF1, :FF_DIM] = bf1
    slab[ROW_BF2, :HIDDEN] = bf2
    slab[ROW_G2, :HIDDEN] = 1.0            # LN2 gamma (beta row stays zero)
    slab[ROW_B1, :256] = b1
    slab[ROW_B2, :128] = b2
    slab[ROW_B3, :64] = b3
    slab[ROW_B4, :NETWORK_OUTPUT_SIZE] = b4

    return {
        "bias":  jnp.asarray(slab),
        "wband": jnp.asarray(np.stack(wband_l), W_DTYPE),            # (2, 216, 512)
        "fceff": jnp.asarray(np.stack(fceff_l), W_DTYPE),            # (2, 512, 256)
        "w256":  jnp.asarray(np.stack([wvo, w1[:HIDDEN]]), W_DTYPE), # (2, 256, 256)
        "wf1":   jnp.asarray(wf1, W_DTYPE),                          # (256, 512)
        "wf2":   jnp.asarray(wf2, W_DTYPE),                          # (512, 256)
        "w1b":   jnp.asarray(w1[HIDDEN:], W_DTYPE),                  # (7, 256)
        "w2":    jnp.asarray(w2, W_DTYPE),                           # (256, 128)
        "w128":  jnp.asarray(np.stack([w3p, w4p]), W_DTYPE),         # (2, 128, 128)
    }


# ----------------------------- main -------------------------------------------
if __name__ == "__main__":
    key = jax.random.PRNGKey(0)
    k_param, k_x0, k_x1, k_pos = jax.random.split(key, 4)

    params = init_params(k_param)

    xs = [
        jax.random.normal(k_x0, (BATCH, IN_CH, IMG, IMG), jnp.float32),  # camera 0 (NCHW)
        jax.random.normal(k_x1, (BATCH, IN_CH, IMG, IMG), jnp.float32),  # camera 1 (NCHW)
    ]
    positions = jax.random.normal(k_pos, (BATCH, POS_DIM), jnp.float32)

    fwd = jax.jit(network_forward)
    out = jax.block_until_ready(fwd(params, xs, positions))
    assert out.shape == (BATCH, NETWORK_OUTPUT_SIZE), out.shape
    assert bool(jnp.all(jnp.isfinite(out)))
    print("KERNEL_OK")
</pallas_src>

<mosaic_0001>
module attributes {stable_mosaic.version = 11 : i64} {
  func.func @_network_kernel(%arg0: memref<2x32x216xf32, #tpu.memory_space<vmem>>, %arg1: memref<2x7xf32, #tpu.memory_space<vmem>>, %arg2: memref<16x512xf32, #tpu.memory_space<vmem>>, %arg3: memref<2x216x512xf32, #tpu.memory_space<vmem>>, %arg4: memref<2x512x256xf32, #tpu.memory_space<vmem>>, %arg5: memref<2x256x256xf32, #tpu.memory_space<vmem>>, %arg6: memref<256x512xf32, #tpu.memory_space<vmem>>, %arg7: memref<512x256xf32, #tpu.memory_space<vmem>>, %arg8: memref<7x256xf32, #tpu.memory_space<vmem>>, %arg9: memref<256x128xf32, #tpu.memory_space<vmem>>, %arg10: memref<2x128x128xf32, #tpu.memory_space<vmem>>, %arg11: memref<2x128xf32, #tpu.memory_space<vmem>>) attributes {dimension_semantics = [], scalar_prefetch = 0 : i64, scratch_operands = 0 : i64, tpu.core_type = #tpu.core_type<tc>} {
    %c0 = arith.constant 0 : index
    %c0_0 = arith.constant 0 : index
    %c0_1 = arith.constant 0 : index
    %0 = vector.load %arg0[%c0, %c0_0, %c0_1] : memref<2x32x216xf32, #tpu.memory_space<vmem>>, vector<1x32x216xf32>
    %1 = vector.shape_cast %0 : vector<1x32x216xf32> to vector<32x216xf32>
    %c0_2 = arith.constant 0 : index
    %c0_3 = arith.constant 0 : index
    %c0_4 = arith.constant 0 : index
    %2 = vector.load %arg3[%c0_2, %c0_3, %c0_4] : memref<2x216x512xf32, #tpu.memory_space<vmem>>, vector<1x216x512xf32>
    %3 = vector.shape_cast %2 : vector<1x216x512xf32> to vector<216x512xf32>
    %cst = arith.constant dense<0.000000e+00> : vector<32x512xf32>
    %4 = tpu.matmul %1, %3, %cst {dimension_numbers = #tpu.dot_dimension_numbers<[1], [0], [0], [1], [0, 0, 1, 1], [], []>} : vector<32x216xf32>, vector<216x512xf32>, vector<32x512xf32> -> vector<32x512xf32>
    %c0_5 = arith.constant 0 : index
    %c0_6 = arith.constant 0 : index
    %5 = vector.load %arg2[%c0_5, %c0_6] : memref<16x512xf32, #tpu.memory_space<vmem>>, vector<1x512xf32>
    %6 = vector.broadcast %5 : vector<1x512xf32> to vector<32x512xf32>
    %7 = arith.addf %4, %6 : vector<32x512xf32>
    %cst_7 = arith.constant 0.000000e+00 : f32
    %8 = vector.broadcast %cst_7 : f32 to vector<32x512xf32>
    %9 = arith.maximumf %7, %8 : vector<32x512xf32>
    %10 = vector.extract_strided_slice %9 {offsets = [0, 0], sizes = [16, 512], strides = [1, 1]} : vector<32x512xf32> to vector<16x512xf32>
    %cst_8 = arith.constant dense<0.000000e+00> : vector<512xf32>
    %11 = vector.multi_reduction <add>, %10, %cst_8 [0] : vector<16x512xf32> to vector<512xf32>
    %12 = vector.shape_cast %11 : vector<512xf32> to vector<1x512xf32>
    %13 = vector.extract_strided_slice %9 {offsets = [16, 0], sizes = [16, 512], strides = [1, 1]} : vector<32x512xf32> to vector<16x512xf32>
    %cst_9 = arith.constant dense<0.000000e+00> : vector<512xf32>
    %14 = vector.multi_reduction <add>, %13, %cst_9 [0] : vector<16x512xf32> to vector<512xf32>
    %15 = vector.shape_cast %14 : vector<512xf32> to vector<1x512xf32>
    %16 = tpu.concatenate %12, %15 in 0 : vector<1x512xf32>, vector<1x512xf32> -> vector<2x512xf32>
    %c0_10 = arith.constant 0 : index
    %c0_11 = arith.constant 0 : index
    %c0_12 = arith.constant 0 : index
    %17 = vector.load %arg4[%c0_10, %c0_11, %c0_12] : memref<2x512x256xf32, #tpu.memory_space<vmem>>, vector<1x512x256xf32>
    %18 = vector.shape_cast %17 : vector<1x512x256xf32> to vector<512x256xf32>
    %cst_13 = arith.constant dense<0.000000e+00> : vector<2x256xf32>
    %19 = tpu.matmul %16, %18, %cst_13 {dimension_numbers = #tpu.dot_dimension_numbers<[1], [0], [0], [1], [0, 0, 1, 1], [], []>} : vector<2x512xf32>, vector<512x256xf32>, vector<2x256xf32> -> vector<2x256xf32>
    %c2 = arith.constant 2 : index
    %c0_14 = arith.constant 0 : index
    %20 = vector.load %arg2[%c2, %c0_14] : memref<16x512xf32, #tpu.memory_space<vmem>>, vector<1x256xf32>
    %21 = vector.broadcast %20 : vector<1x256xf32> to vector<2x256xf32>
    %22 = arith.addf %19, %21 : vector<2x256xf32>
    %c1 = arith.constant 1 : index
    %c0_15 = arith.constant 0 : index
    %c0_16 = arith.constant 0 : index
    %23 = vector.load %arg0[%c1, %c0_15, %c0_16] : memref<2x32x216xf32, #tpu.memory_space<vmem>>, vector<1x32x216xf32>
    %24 = vector.shape_cast %23 : vector<1x32x216xf32> to vector<32x216xf32>
    %c1_17 = arith.constant 1 : index
    %c0_18 = arith.constant 0 : index
    %c0_19 = arith.constant 0 : index
    %25 = vector.load %arg3[%c1_17, %c0_18, %c0_19] : memref<2x216x512xf32, #tpu.memory_space<vmem>>, vector<1x216x512xf32>
    %26 = vector.shape_cast %25 : vector<1x216x512xf32> to vector<216x512xf32>
    %cst_20 = arith.constant dense<0.000000e+00> : vector<32x512xf32>
    %27 = tpu.matmul %24, %26, %cst_20 {dimension_numbers = #tpu.dot_dimension_numbers<[1], [0], [0], [1], [0, 0, 1, 1], [], []>} : vector<32x216xf32>, vector<216x512xf32>, vector<32x512xf32> -> vector<32x512xf32>
    %c1_21 = arith.constant 1 : index
    %c0_22 = arith.constant 0 : index
    %28 = vector.load %arg2[%c1_21, %c0_22] : memref<16x512xf32, #tpu.memory_space<vmem>>, vector<1x512xf32>
    %29 = vector.broadcast %28 : vector<1x512xf32> to vector<32x512xf32>
    %30 = arith.addf %27, %29 : vector<32x512xf32>
    %cst_23 = arith.constant 0.000000e+00 : f32
    %31 = vector.broadcast %cst_23 : f32 to vector<32x512xf32>
    %32 = arith.maximumf %30, %31 : vector<32x512xf32>
    %33 = vector.extract_strided_slice %32 {offsets = [0, 0], sizes = [16, 512], strides = [1, 1]} : vector<32x512xf32> to vector<16x512xf32>
    %cst_24 = arith.constant dense<0.000000e+00> : vector<512xf32>
    %34 = vector.multi_reduction <add>, %33, %cst_24 [0] : vector<16x512xf32> to vector<512xf32>
    %35 = vector.shape_cast %34 : vector<512xf32> to vector<1x512xf32>
    %36 = vector.extract_strided_slice %32 {offsets = [16, 0], sizes = [16, 512], strides = [1, 1]} : vector<32x512xf32> to vector<16x512xf32>
    %cst_25 = arith.constant dense<0.000000e+00> : vector<512xf32>
    %37 = vector.multi_reduction <add>, %36, %cst_25 [0] : vector<16x512xf32> to vector<512xf32>
    %38 = vector.shape_cast %37 : vector<512xf32> to vector<1x512xf32>
    %39 = tpu.concatenate %35, %38 in 0 : vector<1x512xf32>, vector<1x512xf32> -> vector<2x512xf32>
    %c1_26 = arith.constant 1 : index
    %c0_27 = arith.constant 0 : index
    %c0_28 = arith.constant 0 : index
    %40 = vector.load %arg4[%c1_26, %c0_27, %c0_28] : memref<2x512x256xf32, #tpu.memory_space<vmem>>, vector<1x512x256xf32>
    %41 = vector.shape_cast %40 : vector<1x512x256xf32> to vector<512x256xf32>
    %cst_29 = arith.constant dense<0.000000e+00> : vector<2x256xf32>
    %42 = tpu.matmul %39, %41, %cst_29 {dimension_numbers = #tpu.dot_dimension_numbers<[1], [0], [0], [1], [0, 0, 1, 1], [], []>} : vector<2x512xf32>, vector<512x256xf32>, vector<2x256xf32> -> vector<2x256xf32>
    %c3 = arith.constant 3 : index
    %c0_30 = arith.constant 0 : index
    %43 = vector.load %arg2[%c3, %c0_30] : memref<16x512xf32, #tpu.memory_space<vmem>>, vector<1x256xf32>
    %44 = vector.broadcast %43 : vector<1x256xf32> to vector<2x256xf32>
    %45 = arith.addf %42, %44 : vector<2x256xf32>
    %c0_31 = arith.constant 0 : index
    %c0_32 = arith.constant 0 : index
    %c0_33 = arith.constant 0 : index
    %46 = vector.load %arg5[%c0_31, %c0_32, %c0_33] : memref<2x256x256xf32, #tpu.memory_space<vmem>>, vector<1x256x256xf32>
    %47 = vector.shape_cast %46 : vector<1x256x256xf32> to vector<256x256xf32>
    %cst_34 = arith.constant dense<0.000000e+00> : vector<2x256xf32>
    %48 = tpu.matmul %45, %47, %cst_34 {dimension_numbers = #tpu.dot_dimension_numbers<[1], [0], [0], [1], [0, 0, 1, 1], [], []>} : vector<2x256xf32>, vector<256x256xf32>, vector<2x256xf32> -> vector<2x256xf32>
    %c4 = arith.constant 4 : index
    %c0_35 = arith.constant 0 : index
    %49 = vector.load %arg2[%c4, %c0_35] : memref<16x512xf32, #tpu.memory_space<vmem>>, vector<1x256xf32>
    %50 = vector.broadcast %49 : vector<1x256xf32> to vector<2x256xf32>
    %51 = arith.addf %48, %50 : vector<2x256xf32>
    %52 = arith.addf %22, %51 : vector<2x256xf32>
    %cst_36 = arith.constant dense<0.000000e+00> : vector<2xf32>
    %53 = vector.multi_reduction <add>, %52, %cst_36 [1] : vector<2x256xf32> to vector<2xf32>
    %54 = vector.shape_cast %53 : vector<2xf32> to vector<2x1xf32>
    %cst_37 = arith.constant 2.560000e+02 : f32
    %55 = vector.broadcast %cst_37 : f32 to vector<2x1xf32>
    %56 = arith.divf %54, %55 : vector<2x1xf32>
    %57 = vector.broadcast %56 : vector<2x1xf32> to vector<2x256xf32>
    %58 = arith.subf %52, %57 : vector<2x256xf32>
    %59 = arith.mulf %58, %58 : vector<2x256xf32>
    %cst_38 = arith.constant dense<0.000000e+00> : vector<2xf32>
    %60 = vector.multi_reduction <add>, %59, %cst_38 [1] : vector<2x256xf32> to vector<2xf32>
    %61 = vector.shape_cast %60 : vector<2xf32> to vector<2x1xf32>
    %cst_39 = arith.constant 2.560000e+02 : f32
    %62 = vector.broadcast %cst_39 : f32 to vector<2x1xf32>
    %63 = arith.divf %61, %62 : vector<2x1xf32>
    %64 = vector.broadcast %56 : vector<2x1xf32> to vector<2x256xf32>
    %65 = arith.subf %52, %64 : vector<2x256xf32>
    %cst_40 = arith.constant 9.99999974E-6 : f32
    %66 = vector.broadcast %cst_40 : f32 to vector<2x1xf32>
    %67 = arith.addf %63, %66 : vector<2x1xf32>
    %68 = math.rsqrt %67 : vector<2x1xf32>
    %69 = vector.broadcast %68 : vector<2x1xf32> to vector<2x256xf32>
    %70 = arith.mulf %65, %69 : vector<2x256xf32>
    %c5 = arith.constant 5 : index
    %c0_41 = arith.constant 0 : index
    %71 = vector.load %arg2[%c5, %c0_41] : memref<16x512xf32, #tpu.memory_space<vmem>>, vector<1x256xf32>
    %72 = vector.broadcast %71 : vector<1x256xf32> to vector<2x256xf32>
    %73 = arith.mulf %70, %72 : vector<2x256xf32>
    %c6 = arith.constant 6 : index
    %c0_42 = arith.constant 0 : index
    %74 = vector.load %arg2[%c6, %c0_42] : memref<16x512xf32, #tpu.memory_space<vmem>>, vector<1x256xf32>
    %75 = vector.broadcast %74 : vector<1x256xf32> to vector<2x256xf32>
    %76 = arith.addf %73, %75 : vector<2x256xf32>
    %c0_43 = arith.constant 0 : index
    %c0_44 = arith.constant 0 : index
    %77 = vector.load %arg6[%c0_43, %c0_44] : memref<256x512xf32, #tpu.memory_space<vmem>>, vector<256x512xf32>
    %cst_45 = arith.constant dense<0.000000e+00> : vector<2x512xf32>
    %78 = tpu.matmul %76, %77, %cst_45 {dimension_numbers = #tpu.dot_dimension_numbers<[1], [0], [0], [1], [0, 0, 1, 1], [], []>} : vector<2x256xf32>, vector<256x512xf32>, vector<2x512xf32> -> vector<2x512xf32>
    %c7 = arith.constant 7 : index
    %c0_46 = arith.constant 0 : index
    %79 = vector.load %arg2[%c7, %c0_46] : memref<16x512xf32, #tpu.memory_space<vmem>>, vector<1x512xf32>
    %80 = vector.broadcast %79 : vector<1x512xf32> to vector<2x512xf32>
    %81 = arith.addf %78, %80 : vector<2x512xf32>
    %cst_47 = arith.constant 0.000000e+00 : f32
    %82 = vector.broadcast %cst_47 : f32 to vector<2x512xf32>
    %83 = arith.maximumf %81, %82 : vector<2x512xf32>
    %c0_48 = arith.constant 0 : index
    %c0_49 = arith.constant 0 : index
    %84 = vector.load %arg7[%c0_48, %c0_49] : memref<512x256xf32, #tpu.memory_space<vmem>>, vector<512x256xf32>
    %cst_50 = arith.constant dense<0.000000e+00> : vector<2x256xf32>
    %85 = tpu.matmul %83, %84, %cst_50 {dimension_numbers = #tpu.dot_dimension_numbers<[1], [0], [0], [1], [0, 0, 1, 1], [], []>} : vector<2x512xf32>, vector<512x256xf32>, vector<2x256xf32> -> vector<2x256xf32>
    %c8 = arith.constant 8 : index
    %c0_51 = arith.constant 0 : index
    %86 = vector.load %arg2[%c8, %c0_51] : memref<16x512xf32, #tpu.memory_space<vmem>>, vector<1x256xf32>
    %87 = vector.broadcast %86 : vector<1x256xf32> to vector<2x256xf32>
    %88 = arith.addf %85, %87 : vector<2x256xf32>
    %89 = arith.addf %76, %88 : vector<2x256xf32>
    %cst_52 = arith.constant dense<0.000000e+00> : vector<2xf32>
    %90 = vector.multi_reduction <add>, %89, %cst_52 [1] : vector<2x256xf32> to vector<2xf32>
    %91 = vector.shape_cast %90 : vector<2xf32> to vector<2x1xf32>
    %cst_53 = arith.constant 2.560000e+02 : f32
    %92 = vector.broadcast %cst_53 : f32 to vector<2x1xf32>
    %93 = arith.divf %91, %92 : vector<2x1xf32>
    %94 = vector.broadcast %93 : vector<2x1xf32> to vector<2x256xf32>
    %95 = arith.subf %89, %94 : vector<2x256xf32>
    %96 = arith.mulf %95, %95 : vector<2x256xf32>
    %cst_54 = arith.constant dense<0.000000e+00> : vector<2xf32>
    %97 = vector.multi_reduction <add>, %96, %cst_54 [1] : vector<2x256xf32> to vector<2xf32>
    %98 = vector.shape_cast %97 : vector<2xf32> to vector<2x1xf32>
    %cst_55 = arith.constant 2.560000e+02 : f32
    %99 = vector.broadcast %cst_55 : f32 to vector<2x1xf32>
    %100 = arith.divf %98, %99 : vector<2x1xf32>
    %101 = vector.broadcast %93 : vector<2x1xf32> to vector<2x256xf32>
    %102 = arith.subf %89, %101 : vector<2x256xf32>
    %cst_56 = arith.constant 9.99999974E-6 : f32
    %103 = vector.broadcast %cst_56 : f32 to vector<2x1xf32>
    %104 = arith.addf %100, %103 : vector<2x1xf32>
    %105 = math.rsqrt %104 : vector<2x1xf32>
    %106 = vector.broadcast %105 : vector<2x1xf32> to vector<2x256xf32>
    %107 = arith.mulf %102, %106 : vector<2x256xf32>
    %c9 = arith.constant 9 : index
    %c0_57 = arith.constant 0 : index
    %108 = vector.load %arg2[%c9, %c0_57] : memref<16x512xf32, #tpu.memory_space<vmem>>, vector<1x256xf32>
    %109 = vector.broadcast %108 : vector<1x256xf32> to vector<2x256xf32>
    %110 = arith.mulf %107, %109 : vector<2x256xf32>
    %c10 = arith.constant 10 : index
    %c0_58 = arith.constant 0 : index
    %111 = vector.load %arg2[%c10, %c0_58] : memref<16x512xf32, #tpu.memory_space<vmem>>, vector<1x256xf32>
    %112 = vector.broadcast %111 : vector<1x256xf32> to vector<2x256xf32>
    %113 = arith.addf %110, %112 : vector<2x256xf32>
    %c1_59 = arith.constant 1 : index
    %c0_60 = arith.constant 0 : index
    %c0_61 = arith.constant 0 : index
    %114 = vector.load %arg5[%c1_59, %c0_60, %c0_61] : memref<2x256x256xf32, #tpu.memory_space<vmem>>, vector<1x256x256xf32>
    %115 = vector.shape_cast %114 : vector<1x256x256xf32> to vector<256x256xf32>
    %cst_62 = arith.constant dense<0.000000e+00> : vector<2x256xf32>
    %116 = tpu.matmul %113, %115, %cst_62 {dimension_numbers = #tpu.dot_dimension_numbers<[1], [0], [0], [1], [0, 0, 1, 1], [], []>} : vector<2x256xf32>, vector<256x256xf32>, vector<2x256xf32> -> vector<2x256xf32>
    %c0_63 = arith.constant 0 : index
    %c0_64 = arith.constant 0 : index
    %117 = vector.load %arg1[%c0_63, %c0_64] : memref<2x7xf32, #tpu.memory_space<vmem>>, vector<2x7xf32>
    %c0_65 = arith.constant 0 : index
    %c0_66 = arith.constant 0 : index
    %118 = vector.load %arg8[%c0_65, %c0_66] : memref<7x256xf32, #tpu.memory_space<vmem>>, vector<7x256xf32>
    %cst_67 = arith.constant dense<0.000000e+00> : vector<2x256xf32>
    %119 = tpu.matmul %117, %118, %cst_67 {dimension_numbers = #tpu.dot_dimension_numbers<[1], [0], [0], [1], [0, 0, 1, 1], [], []>} : vector<2x7xf32>, vector<7x256xf32>, vector<2x256xf32> -> vector<2x256xf32>
    %120 = arith.addf %116, %119 : vector<2x256xf32>
    %c11 = arith.constant 11 : index
    %c0_68 = arith.constant 0 : index
    %121 = vector.load %arg2[%c11, %c0_68] : memref<16x512xf32, #tpu.memory_space<vmem>>, vector<1x256xf32>
    %122 = vector.broadcast %121 : vector<1x256xf32> to vector<2x256xf32>
    %123 = arith.addf %120, %122 : vector<2x256xf32>
    %cst_69 = arith.constant 0.000000e+00 : f32
    %124 = vector.broadcast %cst_69 : f32 to vector<2x256xf32>
    %125 = arith.maximumf %123, %124 : vector<2x256xf32>
    %c0_70 = arith.constant 0 : index
    %c0_71 = arith.constant 0 : index
    %126 = vector.load %arg9[%c0_70, %c0_71] : memref<256x128xf32, #tpu.memory_space<vmem>>, vector<256x128xf32>
    %cst_72 = arith.constant dense<0.000000e+00> : vector<2x128xf32>
    %127 = tpu.matmul %125, %126, %cst_72 {dimension_numbers = #tpu.dot_dimension_numbers<[1], [0], [0], [1], [0, 0, 1, 1], [], []>} : vector<2x256xf32>, vector<256x128xf32>, vector<2x128xf32> -> vector<2x128xf32>
    %c12 = arith.constant 12 : index
    %c0_73 = arith.constant 0 : index
    %128 = vector.load %arg2[%c12, %c0_73] : memref<16x512xf32, #tpu.memory_space<vmem>>, vector<1x128xf32>
    %129 = vector.broadcast %128 : vector<1x128xf32> to vector<2x128xf32>
    %130 = arith.addf %127, %129 : vector<2x128xf32>
    %cst_74 = arith.constant 0.000000e+00 : f32
    %131 = vector.broadcast %cst_74 : f32 to vector<2x128xf32>
    %132 = arith.maximumf %130, %131 : vector<2x128xf32>
    %c0_75 = arith.constant 0 : index
    %c0_76 = arith.constant 0 : index
    %c0_77 = arith.constant 0 : index
    %133 = vector.load %arg10[%c0_75, %c0_76, %c0_77] : memref<2x128x128xf32, #tpu.memory_space<vmem>>, vector<1x128x128xf32>
    %134 = vector.shape_cast %133 : vector<1x128x128xf32> to vector<128x128xf32>
    %cst_78 = arith.constant dense<0.000000e+00> : vector<2x128xf32>
    %135 = tpu.matmul %132, %134, %cst_78 {dimension_numbers = #tpu.dot_dimension_numbers<[1], [0], [0], [1], [0, 0, 1, 1], [], []>} : vector<2x128xf32>, vector<128x128xf32>, vector<2x128xf32> -> vector<2x128xf32>
    %c13 = arith.constant 13 : index
    %c0_79 = arith.constant 0 : index
    %136 = vector.load %arg2[%c13, %c0_79] : memref<16x512xf32, #tpu.memory_space<vmem>>, vector<1x128xf32>
    %137 = vector.broadcast %136 : vector<1x128xf32> to vector<2x128xf32>
    %138 = arith.addf %135, %137 : vector<2x128xf32>
    %cst_80 = arith.constant 0.000000e+00 : f32
    %139 = vector.broadcast %cst_80 : f32 to vector<2x128xf32>
    %140 = arith.maximumf %138, %139 : vector<2x128xf32>
    %c1_81 = arith.constant 1 : index
    %c0_82 = arith.constant 0 : index
    %c0_83 = arith.constant 0 : index
    %141 = vector.load %arg10[%c1_81, %c0_82, %c0_83] : memref<2x128x128xf32, #tpu.memory_space<vmem>>, vector<1x128x128xf32>
    %142 = vector.shape_cast %141 : vector<1x128x128xf32> to vector<128x128xf32>
    %cst_84 = arith.constant dense<0.000000e+00> : vector<2x128xf32>
    %143 = tpu.matmul %140, %142, %cst_84 {dimension_numbers = #tpu.dot_dimension_numbers<[1], [0], [0], [1], [0, 0, 1, 1], [], []>} : vector<2x128xf32>, vector<128x128xf32>, vector<2x128xf32> -> vector<2x128xf32>
    %c14 = arith.constant 14 : index
    %c0_85 = arith.constant 0 : index
    %144 = vector.load %arg2[%c14, %c0_85] : memref<16x512xf32, #tpu.memory_space<vmem>>, vector<1x128xf32>
    %145 = vector.broadcast %144 : vector<1x128xf32> to vector<2x128xf32>
    %146 = arith.addf %143, %145 : vector<2x128xf32>
    %c0_86 = arith.constant 0 : index
    %c0_87 = arith.constant 0 : index
    %147 = vector.load %arg11[%c0_86, %c0_87] : memref<2x128xf32, #tpu.memory_space<vmem>>, vector<2x128xf32>
    tpu.vector_store %arg11[%c0_86, %c0_87], %146 {strides = array<i32>} : memref<2x128xf32, #tpu.memory_space<vmem>>, vector<2x128xf32>,
    return
  }
}

</mosaic_0001>

<llo_original>
// kernel: network_forward.1
$region0: #{network_forward.1}
  #allocation0 [shape = 'u32[]', space=smem, size = 0x4, offset = 0x4, fixed_abs, tag = 'smem constant byte address 0x4 - core index']
  #allocation1 [shape = 'u32[72,128]{1,0:T(1,128)}', space=vmem, size = 0x9000, scoped, tag = 'internal scratch']
  %s0 = inlined_call_operand.vmem [shape: f32[2,32,216], index: 0, kind: input, shape index: {}]
  %s1 = inlined_call_operand.vmem [shape: f32[2,7], index: 1, kind: input, shape index: {}]
  %s2 = inlined_call_operand.vmem [shape: f32[16,512], index: 2, kind: input, shape index: {}]
  %s3 = inlined_call_operand.hbm [shape: f32[2,216,512], index: 3, kind: input, shape index: {}]
  %s4 = inlined_call_operand.vmem [shape: f32[2,512,256], index: 4, kind: input, shape index: {}]
  %s5 = inlined_call_operand.vmem [shape: f32[2,256,256], index: 5, kind: input, shape index: {}]
  %s6 = inlined_call_operand.hbm [shape: f32[256,512], index: 6, kind: input, shape index: {}]
  %s7 = inlined_call_operand.hbm [shape: f32[512,256], index: 7, kind: input, shape index: {}]
  %s8 = inlined_call_operand.vmem [shape: f32[7,256], index: 8, kind: input, shape index: {}]
  %s9 = inlined_call_operand.vmem [shape: f32[256,128], index: 9, kind: input, shape index: {}]
  %s10 = inlined_call_operand.hbm [shape: f32[2,128,128], index: 10, kind: input, shape index: {}]
  %s11 = inlined_call_operand.hbm [shape: f32[2,128], index: 11, kind: output, shape index: {}]
  %s12 = sld [smem:[#allocation0]]
  $region70: #{network_forward.1} parent=0
    _
  %s14 = ssub.s32 1, %s12
  %s15 = scalar_select 0, %s14, %s12
  $region1: #{network_forward.1} parent=0
    #allocation2 [shape = 'u8[884736]{0}', space=vmem, size = 0xd8000, scoped, tag = 'input window, operand 3, single buffered']
    #allocation3 [shape = 's32[1]{0}', space=sflag, size = 0x4, scoped, tag = 'scoped memory for network_forward.1']
    #allocation4 [shape = 's32[1]{0}', space=sflag, size = 0x4, scoped, tag = 'scoped memory for network_forward.1']
    #allocation5 [shape = 'u8[524288]{0}', space=vmem, size = 0x80000, scoped, tag = 'input window, operand 6, single buffered']
    #allocation6 [shape = 's32[1]{0}', space=sflag, size = 0x4, scoped, tag = 'scoped memory for network_forward.1']
    #allocation7 [shape = 'u8[524288]{0}', space=vmem, size = 0x80000, scoped, tag = 'input window, operand 7, single buffered']
    #allocation8 [shape = 'u8[131072]{0}', space=vmem, size = 0x20000, scoped, tag = 'input window, operand 10, single buffered']
    #allocation9 [shape = 's32[1]{0}', space=sflag, size = 0x4, scoped, tag = 'scoped memory for network_forward.1']
    #allocation10 [shape = 'u8[1024]{0}', space=vmem, size = 0x400, scoped, tag = 'output window, operand 0, single buffered']
    %16 = vsyncpa [#allocation3], 0
    %17 = vsyncpa [#allocation6], 0
    %18 = vsyncpa [#allocation9], 0
    %19 = vsyncpa [#allocation4], 0
    // Predicated region
    $region2: #{network_forward.1} parent=1 // pred_check
      _
    $region3: #{network_forward.1} parent=1 // pred_check_branch
      %21 = sbr.rel (0) target = $region5
    $region4: #{network_forward.1} parent=1 // pred_region
      _
    $region5: #{network_forward.1} parent=1 // pred_fallthru
      _
    // Predicated region
    $region6: #{network_forward.1} parent=1 // pred_check
      _
    $region7: #{network_forward.1} parent=1 // pred_check_branch
      %23 = sbr.rel (0) target = $region9
    $region8: #{network_forward.1} parent=1 // pred_region
      _
    $region9: #{network_forward.1} parent=1 // pred_fallthru
      _
    // Predicated region
    $region10: #{network_forward.1} parent=1 // pred_check
      _
    $region11: #{network_forward.1} parent=1 // pred_check_branch
      %25 = sbr.rel (0) target = $region13
    $region12: #{network_forward.1} parent=1 // pred_region
      _
    $region13: #{network_forward.1} parent=1 // pred_fallthru
      _
    // Predicated region
    $region14: #{network_forward.1} parent=1 // pred_check
      _
    $region15: #{network_forward.1} parent=1 // pred_check_branch
      %27 = sbr.rel (0) target = $region17
    $region16: #{network_forward.1} parent=1 // pred_region
      %29 = vsyncadd [#allocation3], 0
      %s30 = sshll.u32 %s3, 4
      %s31 = int_to_ptr.hbm [resolvable:$true] %s30
      %s32 = sshll.u32 [#allocation2], 4
      %s33 = int_to_ptr.vmem [resolvable:$true] %s32
      %38 = dma.hbm_to_vmem [thread:$0]  %s31, 27648, %s33, [#allocation3], 512, 512, 32
    $region17: #{network_forward.1} parent=1 // pred_fallthru
      _
    // Predicated region
    $region18: #{network_forward.1} parent=1 // pred_check
      _
    $region19: #{network_forward.1} parent=1 // pred_check_branch
      %40 = sbr.rel (0) target = $region21
    $region20: #{network_forward.1} parent=1 // pred_region
      _
    $region21: #{network_forward.1} parent=1 // pred_fallthru
      _
    // Predicated region
    $region22: #{network_forward.1} parent=1 // pred_check
      _
    $region23: #{network_forward.1} parent=1 // pred_check_branch
      %42 = sbr.rel (0) target = $region25
    $region24: #{network_forward.1} parent=1 // pred_region
      _
    $region25: #{network_forward.1} parent=1 // pred_fallthru
      _
    // Predicated region
    $region26: #{network_forward.1} parent=1 // pred_check
      _
    $region27: #{network_forward.1} parent=1 // pred_check_branch
      %44 = sbr.rel (0) target = $region29
    $region28: #{network_forward.1} parent=1 // pred_region
      %46 = vsyncadd [#allocation6], 0
      %s47 = sshll.u32 %s6, 4
      %s48 = int_to_ptr.hbm [resolvable:$true] %s47
      %s49 = sshll.u32 [#allocation5], 4
      %s50 = int_to_ptr.vmem [resolvable:$true] %s49
      %55 = dma.hbm_to_vmem [thread:$0]  %s48, 16384, %s50, [#allocation6], 512, 512, 32
    $region29: #{network_forward.1} parent=1 // pred_fallthru
      _
    // Predicated region
    $region30: #{network_forward.1} parent=1 // pred_check
      _
    $region31: #{network_forward.1} parent=1 // pred_check_branch
      %57 = sbr.rel (0) target = $region33
    $region32: #{network_forward.1} parent=1 // pred_region
      %59 = vsyncadd [#allocation6], 0
      %s60 = sshll.u32 %s7, 4
      %s61 = int_to_ptr.hbm [resolvable:$true] %s60
      %s62 = sshll.u32 [#allocation7], 4
      %s63 = int_to_ptr.vmem [resolvable:$true] %s62
      %68 = dma.hbm_to_vmem [thread:$0]  %s61, 16384, %s63, [#allocation6], 256, 256, 16
    $region33: #{network_forward.1} parent=1 // pred_fallthru
      _
    // Predicated region
    $region34: #{network_forward.1} parent=1 // pred_check
      _
    $region35: #{network_forward.1} parent=1 // pred_check_branch
      %70 = sbr.rel (0) target = $region37
    $region36: #{network_forward.1} parent=1 // pred_region
      _
    $region37: #{network_forward.1} parent=1 // pred_fallthru
      _
    // Predicated region
    $region38: #{network_forward.1} parent=1 // pred_check
      _
    $region39: #{network_forward.1} parent=1 // pred_check_branch
      %72 = sbr.rel (0) target = $region41
    $region40: #{network_forward.1} parent=1 // pred_region
      _
    $region41: #{network_forward.1} parent=1 // pred_fallthru
      _
    // Predicated region
    $region42: #{network_forward.1} parent=1 // pred_check
      _
    $region43: #{network_forward.1} parent=1 // pred_check_branch
      %74 = sbr.rel (0) target = $region45
    $region44: #{network_forward.1} parent=1 // pred_region
      %76 = vsyncadd [#allocation9], 0
      %s77 = sshll.u32 %s10, 4
      %s78 = int_to_ptr.hbm [resolvable:$true] %s77
      %s79 = sshll.u32 [#allocation8], 4
      %s80 = int_to_ptr.vmem [resolvable:$true] %s79
      %85 = dma.hbm_to_vmem [thread:$0]  %s78, 4096, %s80, [#allocation9], 128, 128, 8
    $region45: #{network_forward.1} parent=1 // pred_fallthru
      _
    // Predicated region
    $region46: #{network_forward.1} parent=1 // pred_check
      _
    $region47: #{network_forward.1} parent=1 // pred_check_branch
      %87 = sbr.rel (0) target = $region49
    $region48: #{network_forward.1} parent=1 // pred_region
      %89 = dma.done [#allocation3], 27648
    $region49: #{network_forward.1} parent=1 // pred_fallthru
      _
    // Predicated region
    $region50: #{network_forward.1} parent=1 // pred_check
      _
    $region51: #{network_forward.1} parent=1 // pred_check_branch
      %91 = sbr.rel (0) target = $region53
    $region52: #{network_forward.1} parent=1 // pred_region
      %93 = dma.done [#allocation6], 16384
    $region53: #{network_forward.1} parent=1 // pred_fallthru
      _
    // Predicated region
    $region54: #{network_forward.1} parent=1 // pred_check
      _
    $region55: #{network_forward.1} parent=1 // pred_check_branch
      %95 = sbr.rel (0) target = $region57
    $region56: #{network_forward.1} parent=1 // pred_region
      %97 = dma.done [#allocation6], 16384
    $region57: #{network_forward.1} parent=1 // pred_fallthru
      _
    // Predicated region
    $region58: #{network_forward.1} parent=1 // pred_check
      _
    $region59: #{network_forward.1} parent=1 // pred_check_branch
      %99 = sbr.rel (0) target = $region61
    $region60: #{network_forward.1} parent=1 // pred_region
      %101 = dma.done [#allocation9], 4096
    $region61: #{network_forward.1} parent=1 // pred_fallthru
      _
    %v102 = vld [vmem:[%s0] sm:$0xff]
    %v103 = vld [vmem:[%s0 + $0x8] sm:$0xff]
    %v104 = vld [vmem:[%s0 + $0x10] sm:$0xff]
    %v105 = vld [vmem:[%s0 + $0x18] sm:$0xff]
    %v106 = vld [vmem:[%s0 + $0x20] sm:$0xff]
    %v107 = vld [vmem:[%s0 + $0x28] sm:$0xff]
    %v108 = vld [vmem:[%s0 + $0x30] sm:$0xff]
    %v109 = vld [vmem:[%s0 + $0x38] sm:$0xff]
    %v110 = vld [vmem:[#allocation2] sm:$0xff]
    %v111 = vld [vmem:[#allocation2 + $0x8] sm:$0xff]
    %v112 = vld [vmem:[#allocation2 + $0x10] sm:$0xff]
    %v113 = vld [vmem:[#allocation2 + $0x18] sm:$0xff]
    %v114 = vld [vmem:[#allocation2 + $0x20] sm:$0xff]
    %v115 = vld [vmem:[#allocation2 + $0x28] sm:$0xff]
    %v116 = vld [vmem:[#allocation2 + $0x30] sm:$0xff]
    %v117 = vld [vmem:[#allocation2 + $0x38] sm:$0xff]
    %v118 = vld [vmem:[#allocation2 + $0x40] sm:$0xff]
    %v119 = vld [vmem:[#allocation2 + $0x48] sm:$0xff]
    %v120 = vld [vmem:[#allocation2 + $0x50] sm:$0xff]
    %v121 = vld [vmem:[#allocation2 + $0x58] sm:$0xff]
    %v122 = vld [vmem:[#allocation2 + $0x60] sm:$0xff]
    %v123 = vld [vmem:[#allocation2 + $0x68] sm:$0xff]
    %v124 = vld [vmem:[#allocation2 + $0x70] sm:$0xff]
    %v125 = vld [vmem:[#allocation2 + $0x78] sm:$0xff]
    %v126 = vld [vmem:[#allocation2 + $0x80] sm:$0xff]
    %v127 = vld [vmem:[#allocation2 + $0x88] sm:$0xff]
    %v128 = vld [vmem:[#allocation2 + $0x90] sm:$0xff]
    %v129 = vld [vmem:[#allocation2 + $0x98] sm:$0xff]
    %v130 = vld [vmem:[#allocation2 + $0xa0] sm:$0xff]
    %v131 = vld [vmem:[#allocation2 + $0xa8] sm:$0xff]
    %v132 = vld [vmem:[#allocation2 + $0xb0] sm:$0xff]
    %v133 = vld [vmem:[#allocation2 + $0xb8] sm:$0xff]
    %v134 = vld [vmem:[#allocation2 + $0xc0] sm:$0xff]
    %v135 = vld [vmem:[#allocation2 + $0xc8] sm:$0xff]
    %v136 = vld [vmem:[#allocation2 + $0xd0] sm:$0xff]
    %v137 = vld [vmem:[#allocation2 + $0xd8] sm:$0xff]
    %v138 = vld [vmem:[#allocation2 + $0xe0] sm:$0xff]
    %v139 = vld [vmem:[#allocation2 + $0xe8] sm:$0xff]
    %v140 = vld [vmem:[#allocation2 + $0xf0] sm:$0xff]
    %v141 = vld [vmem:[#allocation2 + $0xf8] sm:$0xff]
    %v142 = vld [vmem:[#allocation2 + $0x100] sm:$0xff]
    %v143 = vld [vmem:[#allocation2 + $0x108] sm:$0xff]
    %v144 = vld [vmem:[#allocation2 + $0x110] sm:$0xff]
    %v145 = vld [vmem:[#allocation2 + $0x118] sm:$0xff]
    %v146 = vld [vmem:[#allocation2 + $0x120] sm:$0xff]
    %v147 = vld [vmem:[#allocation2 + $0x128] sm:$0xff]
    %v148 = vld [vmem:[#allocation2 + $0x130] sm:$0xff]
    %v149 = vld [vmem:[#allocation2 + $0x138] sm:$0xff]
    %v150 = vld [vmem:[#allocation2 + $0x140] sm:$0xff]
    %v151 = vld [vmem:[#allocation2 + $0x148] sm:$0xff]
    %v152 = vld [vmem:[#allocation2 + $0x150] sm:$0xff]
    %v153 = vld [vmem:[#allocation2 + $0x158] sm:$0xff]
    %v154 = vld [vmem:[#allocation2 + $0x160] sm:$0xff]
    %v155 = vld [vmem:[#allocation2 + $0x168] sm:$0xff]
    %v156 = vld [vmem:[#allocation2 + $0x170] sm:$0xff]
    %v157 = vld [vmem:[#allocation2 + $0x178] sm:$0xff]
    %v158 = vld [vmem:[#allocation2 + $0x180] sm:$0xff]
    %v159 = vld [vmem:[#allocation2 + $0x188] sm:$0xff]
    %v160 = vld [vmem:[#allocation2 + $0x190] sm:$0xff]
    %v161 = vld [vmem:[#allocation2 + $0x198] sm:$0xff]
    %v162 = vld [vmem:[#allocation2 + $0x1a0] sm:$0xff]
    %v163 = vld [vmem:[#allocation2 + $0x1a8] sm:$0xff]
    %v164 = vld [vmem:[#allocation2 + $0x1b0] sm:$0xff]
    %v165 = vld [vmem:[#allocation2 + $0x1b8] sm:$0xff]
    %v166 = vld [vmem:[#allocation2 + $0x1c0] sm:$0xff]
    %v167 = vld [vmem:[#allocation2 + $0x1c8] sm:$0xff]
    %v168 = vld [vmem:[#allocation2 + $0x1d0] sm:$0xff]
    %v169 = vld [vmem:[#allocation2 + $0x1d8] sm:$0xff]
    %v170 = vld [vmem:[#allocation2 + $0x1e0] sm:$0xff]
    %v171 = vld [vmem:[#allocation2 + $0x1e8] sm:$0xff]
    %v172 = vld [vmem:[#allocation2 + $0x1f0] sm:$0xff]
    %v173 = vld [vmem:[#allocation2 + $0x1f8] sm:$0xff]
    %v174 = vld [vmem:[#allocation2 + $0x200] sm:$0xff]
    %v175 = vld [vmem:[#allocation2 + $0x208] sm:$0xff]
    %v176 = vld [vmem:[#allocation2 + $0x210] sm:$0xff]
    %v177 = vld [vmem:[#allocation2 + $0x218] sm:$0xff]
    %v178 = vld [vmem:[#allocation2 + $0x220] sm:$0xff]
    %v179 = vld [vmem:[#allocation2 + $0x228] sm:$0xff]
    %v180 = vld [vmem:[#allocation2 + $0x230] sm:$0xff]
    %v181 = vld [vmem:[#allocation2 + $0x238] sm:$0xff]
    %v182 = vld [vmem:[#allocation2 + $0x240] sm:$0xff]
    %v183 = vld [vmem:[#allocation2 + $0x248] sm:$0xff]
    %v184 = vld [vmem:[#allocation2 + $0x250] sm:$0xff]
    %v185 = vld [vmem:[#allocation2 + $0x258] sm:$0xff]
    %v186 = vld [vmem:[#allocation2 + $0x260] sm:$0xff]
    %v187 = vld [vmem:[#allocation2 + $0x268] sm:$0xff]
    %v188 = vld [vmem:[#allocation2 + $0x270] sm:$0xff]
    %v189 = vld [vmem:[#allocation2 + $0x278] sm:$0xff]
    %v190 = vld [vmem:[#allocation2 + $0x280] sm:$0xff]
    %v191 = vld [vmem:[#allocation2 + $0x288] sm:$0xff]
    %v192 = vld [vmem:[#allocation2 + $0x290] sm:$0xff]
    %v193 = vld [vmem:[#allocation2 + $0x298] sm:$0xff]
    %v194 = vld [vmem:[#allocation2 + $0x2a0] sm:$0xff]
    %v195 = vld [vmem:[#allocation2 + $0x2a8] sm:$0xff]
    %v196 = vld [vmem:[#allocation2 + $0x2b0] sm:$0xff]
    %v197 = vld [vmem:[#allocation2 + $0x2b8] sm:$0xff]
    %v198 = vld [vmem:[#allocation2 + $0x2c0] sm:$0xff]
    %v199 = vld [vmem:[#allocation2 + $0x2c8] sm:$0xff]
    %v200 = vld [vmem:[#allocation2 + $0x2d0] sm:$0xff]
    %v201 = vld [vmem:[#allocation2 + $0x2d8] sm:$0xff]
    %v202 = vld [vmem:[#allocation2 + $0x2e0] sm:$0xff]
    %v203 = vld [vmem:[#allocation2 + $0x2e8] sm:$0xff]
    %v204 = vld [vmem:[#allocation2 + $0x2f0] sm:$0xff]
    %v205 = vld [vmem:[#allocation2 + $0x2f8] sm:$0xff]
    %v206 = vld [vmem:[#allocation2 + $0x300] sm:$0xff]
    %v207 = vld [vmem:[#allocation2 + $0x308] sm:$0xff]
    %v208 = vld [vmem:[#allocation2 + $0x310] sm:$0xff]
    %v209 = vld [vmem:[#allocation2 + $0x318] sm:$0xff]
    %v210 = vld [vmem:[#allocation2 + $0x320] sm:$0xff]
    %v211 = vld [vmem:[#allocation2 + $0x328] sm:$0xff]
    %v212 = vld [vmem:[#allocation2 + $0x330] sm:$0xff]
    %v213 = vld [vmem:[#allocation2 + $0x338] sm:$0xff]
    %v214 = vld [vmem:[#allocation2 + $0x340] sm:$0xff]
    %v215 = vld [vmem:[#allocation2 + $0x348] sm:$0xff]
    %v216 = vld [vmem:[#allocation2 + $0x350] sm:$0xff]
    %v217 = vld [vmem:[#allocation2 + $0x358] sm:$0xff]
    %v218 = vld [vmem:[%s2] ss:$8 sm:$0xf]
    %v220 = vperm.slane %v218, 0
    %v221 = vperm.slane %v218, 1
    %v222 = vperm.slane %v218, 2
    %v223 = vperm.slane %v218, 3
    %vm228 = vcmask 719872
    %v230 = vsel %vm228, %v103, 0
    %v233 = vsel %vm228, %v105, 0
    %v236 = vsel %vm228, %v107, 0
    %v239 = vsel %vm228, %v109, 0
    %241 = vmatpush.msra.mxu0 %v170
    %242 = vmatpush.msra.mxu0 %v166
    %243 = vmatpush.msra.mxu0 %v162
    %244 = vmatpush.msra.mxu0 %v158
    %245 = vmatpush.msra.mxu0 %v154
    %246 = vmatpush.msra.mxu0 %v150
    %247 = vmatpush.msra.mxu0 %v146
    %248 = vmatpush.msra.mxu0 %v142
    %249 = vmatpush.msra.mxu0 %v138
    %250 = vmatpush.msra.mxu0 %v134
    %251 = vmatpush.msra.mxu0 %v130
    %252 = vmatpush.msra.mxu0 %v126
    %253 = vmatpush.msra.mxu0 %v122
    %254 = vmatpush.msra.mxu0 %v118
    %255 = vmatpush.msra.mxu0 %v114
    %256 = vmatpush.msra.mxu0 %v110
    %257 = vmatmul.f32.gmra.mxu0 %v102
    %v258 = vpop.f32.mrf.mxu0
    %v259 = vadd.f32 %v220, %v258
    %260 = vmatmul.f32.gmra.mxu0 %v104
    %v261 = vpop.f32.mrf.mxu0
    %v262 = vadd.f32 %v220, %v261
    %263 = vmatmul.f32.gmra.mxu0 %v106
    %v264 = vpop.f32.mrf.mxu0
    %v265 = vadd.f32 %v220, %v264
    %266 = vmatmul.f32.gmra.mxu0 %v108
    %v267 = vpop.f32.mrf.mxu0
    %v268 = vadd.f32 %v220, %v267
    %269 = vdwg.mxu0
    %270 = vmatpush.msra.mxu0 0.0
    %271 = vmatpush.msra.mxu0 0.0
    %272 = vmatpush.msra.mxu0 0.0
    %273 = vmatpush.msra.mxu0 0.0
    %274 = vmatpush.msra.mxu0 0.0
    %275 = vmatpush.msra.mxu0 %v214
    %276 = vmatpush.msra.mxu0 %v210
    %277 = vmatpush.msra.mxu0 %v206
    %278 = vmatpush.msra.mxu0 %v202
    %279 = vmatpush.msra.mxu0 %v198
    %280 = vmatpush.msra.mxu0 %v194
    %281 = vmatpush.msra.mxu0 %v190
    %282 = vmatpush.msra.mxu0 %v186
    %283 = vmatpush.msra.mxu0 %v182
    %284 = vmatpush.msra.mxu0 %v178
    %285 = vmatpush.msra.mxu0 %v174
    %286 = vmatmul.f32.gmra.mxu0 %v230
    %v287 = vpop.f32.mrf.mxu0
    %v288 = vadd.f32 %v259, %v287
    %289 = vmatmul.f32.gmra.mxu0 %v233
    %v290 = vpop.f32.mrf.mxu0
    %v291 = vadd.f32 %v262, %v290
    %292 = vmatmul.f32.gmra.mxu0 %v236
    %v293 = vpop.f32.mrf.mxu0
    %v294 = vadd.f32 %v265, %v293
    %295 = vmatmul.f32.gmra.mxu0 %v239
    %v296 = vpop.f32.mrf.mxu0
    %v297 = vadd.f32 %v268, %v296
    %298 = vdwg.mxu0
    %299 = vmatpush.msra.mxu0 %v171
    %300 = vmatpush.msra.mxu0 %v167
    %301 = vmatpush.msra.mxu0 %v163
    %302 = vmatpush.msra.mxu0 %v159
    %303 = vmatpush.msra.mxu0 %v155
    %304 = vmatpush.msra.mxu0 %v151
    %305 = vmatpush.msra.mxu0 %v147
    %306 = vmatpush.msra.mxu0 %v143
    %307 = vmatpush.msra.mxu0 %v139
    %308 = vmatpush.msra.mxu0 %v135
    %309 = vmatpush.msra.mxu0 %v131
    %310 = vmatpush.msra.mxu0 %v127
    %311 = vmatpush.msra.mxu0 %v123
    %312 = vmatpush.msra.mxu0 %v119
    %313 = vmatpush.msra.mxu0 %v115
    %314 = vmatpush.msra.mxu0 %v111
    %315 = vmatmul.f32.gmra.mxu0 %v102
    %v316 = vpop.f32.mrf.mxu0
    %v317 = vadd.f32 %v221, %v316
    %318 = vmatmul.f32.gmra.mxu0 %v104
    %v319 = vpop.f32.mrf.mxu0
    %v320 = vadd.f32 %v221, %v319
    %321 = vmatmul.f32.gmra.mxu0 %v106
    %v322 = vpop.f32.mrf.mxu0
    %v323 = vadd.f32 %v221, %v322
    %324 = vmatmul.f32.gmra.mxu0 %v108
    %v325 = vpop.f32.mrf.mxu0
    %v326 = vadd.f32 %v221, %v325
    %327 = vdwg.mxu0
    %328 = vmatpush.msra.mxu0 0.0
    %329 = vmatpush.msra.mxu0 0.0
    %330 = vmatpush.msra.mxu0 0.0
    %331 = vmatpush.msra.mxu0 0.0
    %332 = vmatpush.msra.mxu0 0.0
    %333 = vmatpush.msra.mxu0 %v215
    %334 = vmatpush.msra.mxu0 %v211
    %335 = vmatpush.msra.mxu0 %v207
    %336 = vmatpush.msra.mxu0 %v203
    %337 = vmatpush.msra.mxu0 %v199
    %338 = vmatpush.msra.mxu0 %v195
    %339 = vmatpush.msra.mxu0 %v191
    %340 = vmatpush.msra.mxu0 %v187
    %341 = vmatpush.msra.mxu0 %v183
    %342 = vmatpush.msra.mxu0 %v179
    %343 = vmatpush.msra.mxu0 %v175
    %344 = vmatmul.f32.gmra.mxu0 %v230
    %v345 = vpop.f32.mrf.mxu0
    %v346 = vadd.f32 %v317, %v345
    %347 = vmatmul.f32.gmra.mxu0 %v233
    %v348 = vpop.f32.mrf.mxu0
    %v349 = vadd.f32 %v320, %v348
    %350 = vmatmul.f32.gmra.mxu0 %v236
    %v351 = vpop.f32.mrf.mxu0
    %v352 = vadd.f32 %v323, %v351
    %353 = vmatmul.f32.gmra.mxu0 %v239
    %v354 = vpop.f32.mrf.mxu0
    %v355 = vadd.f32 %v326, %v354
    %356 = vdwg.mxu0
    %357 = vmatpush.msra.mxu0 %v172
    %358 = vmatpush.msra.mxu0 %v168
    %359 = vmatpush.msra.mxu0 %v164
    %360 = vmatpush.msra.mxu0 %v160
    %361 = vmatpush.msra.mxu0 %v156
    %362 = vmatpush.msra.mxu0 %v152
    %363 = vmatpush.msra.mxu0 %v148
    %364 = vmatpush.msra.mxu0 %v144
    %365 = vmatpush.msra.mxu0 %v140
    %366 = vmatpush.msra.mxu0 %v136
    %367 = vmatpush.msra.mxu0 %v132
    %368 = vmatpush.msra.mxu0 %v128
    %369 = vmatpush.msra.mxu0 %v124
    %370 = vmatpush.msra.mxu0 %v120
    %371 = vmatpush.msra.mxu0 %v116
    %372 = vmatpush.msra.mxu0 %v112
    %373 = vmatmul.f32.gmra.mxu0 %v102
    %v374 = vpop.f32.mrf.mxu0
    %v375 = vadd.f32 %v222, %v374
    %376 = vmatmul.f32.gmra.mxu0 %v104
    %v377 = vpop.f32.mrf.mxu0
    %v378 = vadd.f32 %v222, %v377
    %379 = vmatmul.f32.gmra.mxu0 %v106
    %v380 = vpop.f32.mrf.mxu0
    %v381 = vadd.f32 %v222, %v380
    %382 = vmatmul.f32.gmra.mxu0 %v108
    %v383 = vpop.f32.mrf.mxu0
    %v384 = vadd.f32 %v222, %v383
    %385 = vdwg.mxu0
    %386 = vmatpush.msra.mxu0 0.0
    %387 = vmatpush.msra.mxu0 0.0
    %388 = vmatpush.msra.mxu0 0.0
    %389 = vmatpush.msra.mxu0 0.0
    %390 = vmatpush.msra.mxu0 0.0
    %391 = vmatpush.msra.mxu0 %v216
    %392 = vmatpush.msra.mxu0 %v212
    %393 = vmatpush.msra.mxu0 %v208
    %394 = vmatpush.msra.mxu0 %v204
    %395 = vmatpush.msra.mxu0 %v200
    %396 = vmatpush.msra.mxu0 %v196
    %397 = vmatpush.msra.mxu0 %v192
    %398 = vmatpush.msra.mxu0 %v188
    %399 = vmatpush.msra.mxu0 %v184
    %400 = vmatpush.msra.mxu0 %v180
    %401 = vmatpush.msra.mxu0 %v176
    %402 = vmatmul.f32.gmra.mxu0 %v230
    %v403 = vpop.f32.mrf.mxu0
    %v404 = vadd.f32 %v375, %v403
    %405 = vmatmul.f32.gmra.mxu0 %v233
    %v406 = vpop.f32.mrf.mxu0
    %v407 = vadd.f32 %v378, %v406
    %408 = vmatmul.f32.gmra.mxu0 %v236
    %v409 = vpop.f32.mrf.mxu0
    %v410 = vadd.f32 %v381, %v409
    %411 = vmatmul.f32.gmra.mxu0 %v239
    %v412 = vpop.f32.mrf.mxu0
    %v413 = vadd.f32 %v384, %v412
    %414 = vdwg.mxu0
    %415 = vmatpush.msra.mxu0 %v173
    %416 = vmatpush.msra.mxu0 %v169
    %417 = vmatpush.msra.mxu0 %v165
    %418 = vmatpush.msra.mxu0 %v161
    %419 = vmatpush.msra.mxu0 %v157
    %420 = vmatpush.msra.mxu0 %v153
    %421 = vmatpush.msra.mxu0 %v149
    %422 = vmatpush.msra.mxu0 %v145
    %423 = vmatpush.msra.mxu0 %v141
    %424 = vmatpush.msra.mxu0 %v137
    %425 = vmatpush.msra.mxu0 %v133
    %426 = vmatpush.msra.mxu0 %v129
    %427 = vmatpush.msra.mxu0 %v125
    %428 = vmatpush.msra.mxu0 %v121
    %429 = vmatpush.msra.mxu0 %v117
    %430 = vmatpush.msra.mxu0 %v113
    %431 = vmatmul.f32.gmra.mxu0 %v102
    %v432 = vpop.f32.mrf.mxu0
    %v433 = vadd.f32 %v223, %v432
    %434 = vmatmul.f32.gmra.mxu0 %v104
    %v435 = vpop.f32.mrf.mxu0
    %v436 = vadd.f32 %v223, %v435
    %437 = vmatmul.f32.gmra.mxu0 %v106
    %v438 = vpop.f32.mrf.mxu0
    %v439 = vadd.f32 %v223, %v438
    %440 = vmatmul.f32.gmra.mxu0 %v108
    %v441 = vpop.f32.mrf.mxu0
    %v442 = vadd.f32 %v223, %v441
    %443 = vdwg.mxu0
    %444 = vmatpush.msra.mxu0 0.0
    %445 = vmatpush.msra.mxu0 0.0
    %446 = vmatpush.msra.mxu0 0.0
    %447 = vmatpush.msra.mxu0 0.0
    %448 = vmatpush.msra.mxu0 0.0
    %449 = vmatpush.msra.mxu0 %v217
    %450 = vmatpush.msra.mxu0 %v213
    %451 = vmatpush.msra.mxu0 %v209
    %452 = vmatpush.msra.mxu0 %v205
    %453 = vmatpush.msra.mxu0 %v201
    %454 = vmatpush.msra.mxu0 %v197
    %455 = vmatpush.msra.mxu0 %v193
    %456 = vmatpush.msra.mxu0 %v189
    %457 = vmatpush.msra.mxu0 %v185
    %458 = vmatpush.msra.mxu0 %v181
    %459 = vmatpush.msra.mxu0 %v177
    %460 = vmatmul.f32.gmra.mxu0 %v230
    %v461 = vpop.f32.mrf.mxu0
    %v462 = vadd.f32 %v433, %v461
    %463 = vmatmul.f32.gmra.mxu0 %v233
    %v464 = vpop.f32.mrf.mxu0
    %v465 = vadd.f32 %v436, %v464
    %466 = vmatmul.f32.gmra.mxu0 %v236
    %v467 = vpop.f32.mrf.mxu0
    %v468 = vadd.f32 %v439, %v467
    %469 = vmatmul.f32.gmra.mxu0 %v239
    %v470 = vpop.f32.mrf.mxu0
    %v471 = vadd.f32 %v442, %v470
    %472 = vdwg.mxu0
    %v473 = vmax.f32 %v288, 0.0
    %v474 = vmax.f32 %v346, 0.0
    %v475 = vmax.f32 %v404, 0.0
    %v476 = vmax.f32 %v462, 0.0
    %v477 = vmax.f32 %v291, 0.0
    %v478 = vmax.f32 %v349, 0.0
    %v479 = vmax.f32 %v407, 0.0
    %v480 = vmax.f32 %v465, 0.0
    %v481 = vmax.f32 %v294, 0.0
    %v482 = vmax.f32 %v352, 0.0
    %v483 = vmax.f32 %v410, 0.0
    %v484 = vmax.f32 %v468, 0.0
    %v485 = vmax.f32 %v297, 0.0
    %v486 = vmax.f32 %v355, 0.0
    %v487 = vmax.f32 %v413, 0.0
    %v488 = vmax.f32 %v471, 0.0
    %v489 = vadd.f32 %v473, %v477
    %v490 = vrot.slane %v489, 4
    %v491 = vadd.f32 %v489, %v490
    %v492 = vrot.slane %v491, 2
    %v493 = vadd.f32 %v491, %v492
    %v494 = vrot.slane %v493, 1
    %v495 = vadd.f32 %v493, %v494
    %v496 = vadd.f32 %v474, %v478
    %v497 = vrot.slane %v496, 4
    %v498 = vadd.f32 %v496, %v497
    %v499 = vrot.slane %v498, 2
    %v500 = vadd.f32 %v498, %v499
    %v501 = vrot.slane %v500, 1
    %v502 = vadd.f32 %v500, %v501
    %v503 = vadd.f32 %v475, %v479
    %v504 = vrot.slane %v503, 4
    %v505 = vadd.f32 %v503, %v504
    %v506 = vrot.slane %v505, 2
    %v507 = vadd.f32 %v505, %v506
    %v508 = vrot.slane %v507, 1
    %v509 = vadd.f32 %v507, %v508
    %v510 = vadd.f32 %v476, %v480
    %v511 = vrot.slane %v510, 4
    %v512 = vadd.f32 %v510, %v511
    %v513 = vrot.slane %v512, 2
    %v514 = vadd.f32 %v512, %v513
    %v515 = vrot.slane %v514, 1
    %v516 = vadd.f32 %v514, %v515
    %v517 = vadd.f32 %v481, %v485
    %v518 = vrot.slane %v517, 4
    %v519 = vadd.f32 %v517, %v518
    %v520 = vrot.slane %v519, 2
    %v521 = vadd.f32 %v519, %v520
    %v522 = vrot.slane %v521, 1
    %v523 = vadd.f32 %v521, %v522
    %v524 = vadd.f32 %v482, %v486
    %v525 = vrot.slane %v524, 4
    %v526 = vadd.f32 %v524, %v525
    %v527 = vrot.slane %v526, 2
    %v528 = vadd.f32 %v526, %v527
    %v529 = vrot.slane %v528, 1
    %v530 = vadd.f32 %v528, %v529
    %v531 = vadd.f32 %v483, %v487
    %v532 = vrot.slane %v531, 4
    %v533 = vadd.f32 %v531, %v532
    %v534 = vrot.slane %v533, 2
    %v535 = vadd.f32 %v533, %v534
    %v536 = vrot.slane %v535, 1
    %v537 = vadd.f32 %v535, %v536
    %v538 = vadd.f32 %v484, %v488
    %v539 = vrot.slane %v538, 4
    %v540 = vadd.f32 %v538, %v539
    %v541 = vrot.slane %v540, 2
    %v542 = vadd.f32 %v540, %v541
    %v543 = vrot.slane %v542, 1
    %v544 = vadd.f32 %v542, %v543
    %vm545 = vcmask 1040384
    %v546 = vsel %vm545, %v495, %v523
    %v547 = vsel %vm545, %v502, %v530
    %v548 = vsel %vm545, %v509, %v537
    %v549 = vsel %vm545, %v516, %v544
    %v550 = vld [vmem:[%s4] sm:$0xff]
    %v551 = vld [vmem:[%s4 + $0x8] sm:$0xff]
    %v552 = vld [vmem:[%s4 + $0x10] sm:$0xff]
    %v553 = vld [vmem:[%s4 + $0x18] sm:$0xff]
    %v554 = vld [vmem:[%s4 + $0x20] sm:$0xff]
    %v555 = vld [vmem:[%s4 + $0x28] sm:$0xff]
    %v556 = vld [vmem:[%s4 + $0x30] sm:$0xff]
    %v557 = vld [vmem:[%s4 + $0x38] sm:$0xff]
    %v558 = vld [vmem:[%s4 + $0x40] sm:$0xff]
    %v559 = vld [vmem:[%s4 + $0x48] sm:$0xff]
    %v560 = vld [vmem:[%s4 + $0x50] sm:$0xff]
    %v561 = vld [vmem:[%s4 + $0x58] sm:$0xff]
    %v562 = vld [vmem:[%s4 + $0x60] sm:$0xff]
    %v563 = vld [vmem:[%s4 + $0x68] sm:$0xff]
    %v564 = vld [vmem:[%s4 + $0x70] sm:$0xff]
    %v565 = vld [vmem:[%s4 + $0x78] sm:$0xff]
    %v566 = vld [vmem:[%s4 + $0x80] sm:$0xff]
    %v567 = vld [vmem:[%s4 + $0x88] sm:$0xff]
    %v568 = vld [vmem:[%s4 + $0x90] sm:$0xff]
    %v569 = vld [vmem:[%s4 + $0x98] sm:$0xff]
    %v570 = vld [vmem:[%s4 + $0xa0] sm:$0xff]
    %v571 = vld [vmem:[%s4 + $0xa8] sm:$0xff]
    %v572 = vld [vmem:[%s4 + $0xb0] sm:$0xff]
    %v573 = vld [vmem:[%s4 + $0xb8] sm:$0xff]
    %v574 = vld [vmem:[%s4 + $0xc0] sm:$0xff]
    %v575 = vld [vmem:[%s4 + $0xc8] sm:$0xff]
    %v576 = vld [vmem:[%s4 + $0xd0] sm:$0xff]
    %v577 = vld [vmem:[%s4 + $0xd8] sm:$0xff]
    %v578 = vld [vmem:[%s4 + $0xe0] sm:$0xff]
    %v579 = vld [vmem:[%s4 + $0xe8] sm:$0xff]
    %v580 = vld [vmem:[%s4 + $0xf0] sm:$0xff]
    %v581 = vld [vmem:[%s4 + $0xf8] sm:$0xff]
    %v582 = vld [vmem:[%s4 + $0x100] sm:$0xff]
    %v583 = vld [vmem:[%s4 + $0x108] sm:$0xff]
    %v584 = vld [vmem:[%s4 + $0x110] sm:$0xff]
    %v585 = vld [vmem:[%s4 + $0x118] sm:$0xff]
    %v586 = vld [vmem:[%s4 + $0x120] sm:$0xff]
    %v587 = vld [vmem:[%s4 + $0x128] sm:$0xff]
    %v588 = vld [vmem:[%s4 + $0x130] sm:$0xff]
    %v589 = vld [vmem:[%s4 + $0x138] sm:$0xff]
    %v590 = vld [vmem:[%s4 + $0x140] sm:$0xff]
    %v591 = vld [vmem:[%s4 + $0x148] sm:$0xff]
    %v592 = vld [vmem:[%s4 + $0x150] sm:$0xff]
    %v593 = vld [vmem:[%s4 + $0x158] sm:$0xff]
    %v594 = vld [vmem:[%s4 + $0x160] sm:$0xff]
    %v595 = vld [vmem:[%s4 + $0x168] sm:$0xff]
    %v596 = vld [vmem:[%s4 + $0x170] sm:$0xff]
    %v597 = vld [vmem:[%s4 + $0x178] sm:$0xff]
    %v598 = vld [vmem:[%s4 + $0x180] sm:$0xff]
    %v599 = vld [vmem:[%s4 + $0x188] sm:$0xff]
    %v600 = vld [vmem:[%s4 + $0x190] sm:$0xff]
    %v601 = vld [vmem:[%s4 + $0x198] sm:$0xff]
    %v602 = vld [vmem:[%s4 + $0x1a0] sm:$0xff]
    %v603 = vld [vmem:[%s4 + $0x1a8] sm:$0xff]
    %v604 = vld [vmem:[%s4 + $0x1b0] sm:$0xff]
    %v605 = vld [vmem:[%s4 + $0x1b8] sm:$0xff]
    %v606 = vld [vmem:[%s4 + $0x1c0] sm:$0xff]
    %v607 = vld [vmem:[%s4 + $0x1c8] sm:$0xff]
    %v608 = vld [vmem:[%s4 + $0x1d0] sm:$0xff]
    %v609 = vld [vmem:[%s4 + $0x1d8] sm:$0xff]
    %v610 = vld [vmem:[%s4 + $0x1e0] sm:$0xff]
    %v611 = vld [vmem:[%s4 + $0x1e8] sm:$0xff]
    %v612 = vld [vmem:[%s4 + $0x1f0] sm:$0xff]
    %v613 = vld [vmem:[%s4 + $0x1f8] sm:$0xff]
    %v614 = vld [vmem:[%s4 + $0x200] sm:$0xff]
    %v615 = vld [vmem:[%s4 + $0x208] sm:$0xff]
    %v616 = vld [vmem:[%s4 + $0x210] sm:$0xff]
    %v617 = vld [vmem:[%s4 + $0x218] sm:$0xff]
    %v618 = vld [vmem:[%s4 + $0x220] sm:$0xff]
    %v619 = vld [vmem:[%s4 + $0x228] sm:$0xff]
    %v620 = vld [vmem:[%s4 + $0x230] sm:$0xff]
    %v621 = vld [vmem:[%s4 + $0x238] sm:$0xff]
    %v622 = vld [vmem:[%s4 + $0x240] sm:$0xff]
    %v623 = vld [vmem:[%s4 + $0x248] sm:$0xff]
    %v624 = vld [vmem:[%s4 + $0x250] sm:$0xff]
    %v625 = vld [vmem:[%s4 + $0x258] sm:$0xff]
    %v626 = vld [vmem:[%s4 + $0x260] sm:$0xff]
    %v627 = vld [vmem:[%s4 + $0x268] sm:$0xff]
    %v628 = vld [vmem:[%s4 + $0x270] sm:$0xff]
    %v629 = vld [vmem:[%s4 + $0x278] sm:$0xff]
    %v630 = vld [vmem:[%s4 + $0x280] sm:$0xff]
    %v631 = vld [vmem:[%s4 + $0x288] sm:$0xff]
    %v632 = vld [vmem:[%s4 + $0x290] sm:$0xff]
    %v633 = vld [vmem:[%s4 + $0x298] sm:$0xff]
    %v634 = vld [vmem:[%s4 + $0x2a0] sm:$0xff]
    %v635 = vld [vmem:[%s4 + $0x2a8] sm:$0xff]
    %v636 = vld [vmem:[%s4 + $0x2b0] sm:$0xff]
    %v637 = vld [vmem:[%s4 + $0x2b8] sm:$0xff]
    %v638 = vld [vmem:[%s4 + $0x2c0] sm:$0xff]
    %v639 = vld [vmem:[%s4 + $0x2c8] sm:$0xff]
    %v640 = vld [vmem:[%s4 + $0x2d0] sm:$0xff]
    %v641 = vld [vmem:[%s4 + $0x2d8] sm:$0xff]
    %v642 = vld [vmem:[%s4 + $0x2e0] sm:$0xff]
    %v643 = vld [vmem:[%s4 + $0x2e8] sm:$0xff]
    %v644 = vld [vmem:[%s4 + $0x2f0] sm:$0xff]
    %v645 = vld [vmem:[%s4 + $0x2f8] sm:$0xff]
    %v646 = vld [vmem:[%s4 + $0x300] sm:$0xff]
    %v647 = vld [vmem:[%s4 + $0x308] sm:$0xff]
    %v648 = vld [vmem:[%s4 + $0x310] sm:$0xff]
    %v649 = vld [vmem:[%s4 + $0x318] sm:$0xff]
    %v650 = vld [vmem:[%s4 + $0x320] sm:$0xff]
    %v651 = vld [vmem:[%s4 + $0x328] sm:$0xff]
    %v652 = vld [vmem:[%s4 + $0x330] sm:$0xff]
    %v653 = vld [vmem:[%s4 + $0x338] sm:$0xff]
    %v654 = vld [vmem:[%s4 + $0x340] sm:$0xff]
    %v655 = vld [vmem:[%s4 + $0x348] sm:$0xff]
    %v656 = vld [vmem:[%s4 + $0x350] sm:$0xff]
    %v657 = vld [vmem:[%s4 + $0x358] sm:$0xff]
    %v658 = vld [vmem:[%s4 + $0x360] sm:$0xff]
    %v659 = vld [vmem:[%s4 + $0x368] sm:$0xff]
    %v660 = vld [vmem:[%s4 + $0x370] sm:$0xff]
    %v661 = vld [vmem:[%s4 + $0x378] sm:$0xff]
    %v662 = vld [vmem:[%s4 + $0x380] sm:$0xff]
    %v663 = vld [vmem:[%s4 + $0x388] sm:$0xff]
    %v664 = vld [vmem:[%s4 + $0x390] sm:$0xff]
    %v665 = vld [vmem:[%s4 + $0x398] sm:$0xff]
    %v666 = vld [vmem:[%s4 + $0x3a0] sm:$0xff]
    %v667 = vld [vmem:[%s4 + $0x3a8] sm:$0xff]
    %v668 = vld [vmem:[%s4 + $0x3b0] sm:$0xff]
    %v669 = vld [vmem:[%s4 + $0x3b8] sm:$0xff]
    %v670 = vld [vmem:[%s4 + $0x3c0] sm:$0xff]
    %v671 = vld [vmem:[%s4 + $0x3c8] sm:$0xff]
    %v672 = vld [vmem:[%s4 + $0x3d0] sm:$0xff]
    %v673 = vld [vmem:[%s4 + $0x3d8] sm:$0xff]
    %v674 = vld [vmem:[%s4 + $0x3e0] sm:$0xff]
    %v675 = vld [vmem:[%s4 + $0x3e8] sm:$0xff]
    %v676 = vld [vmem:[%s4 + $0x3f0] sm:$0xff]
    %v677 = vld [vmem:[%s4 + $0x3f8] sm:$0xff]
    %s678 = scalar_lea.vmem %s2, 2
    %v679 = vld [vmem:[%s678] ss:$8 sm:$0x3]
    %v681 = vperm.slane %v679, 0
    %v682 = vperm.slane %v679, 1
    %685 = vmatpush.msra.mxu0 %v580
    %686 = vmatpush.msra.mxu0 %v578
    %687 = vmatpush.msra.mxu0 %v576
    %688 = vmatpush.msra.mxu0 %v574
    %689 = vmatpush.msra.mxu0 %v572
    %690 = vmatpush.msra.mxu0 %v570
    %691 = vmatpush.msra.mxu0 %v568
    %692 = vmatpush.msra.mxu0 %v566
    %693 = vmatpush.msra.mxu0 %v564
    %694 = vmatpush.msra.mxu0 %v562
    %695 = vmatpush.msra.mxu0 %v560
    %696 = vmatpush.msra.mxu0 %v558
    %697 = vmatpush.msra.mxu0 %v556
    %698 = vmatpush.msra.mxu0 %v554
    %699 = vmatpush.msra.mxu0 %v552
    %700 = vmatpush.msra.mxu0 %v550
    %701 = vmatmul.f32.gmra.mxu0 %v546
    %v702 = vpop.f32.mrf.mxu0
    %v703 = vadd.f32 %v681, %v702
    %704 = vdwg.mxu0
    %705 = vmatpush.msra.mxu0 %v612
    %706 = vmatpush.msra.mxu0 %v610
    %707 = vmatpush.msra.mxu0 %v608
    %708 = vmatpush.msra.mxu0 %v606
    %709 = vmatpush.msra.mxu0 %v604
    %710 = vmatpush.msra.mxu0 %v602
    %711 = vmatpush.msra.mxu0 %v600
    %712 = vmatpush.msra.mxu0 %v598
    %713 = vmatpush.msra.mxu0 %v596
    %714 = vmatpush.msra.mxu0 %v594
    %715 = vmatpush.msra.mxu0 %v592
    %716 = vmatpush.msra.mxu0 %v590
    %717 = vmatpush.msra.mxu0 %v588
    %718 = vmatpush.msra.mxu0 %v586
    %719 = vmatpush.msra.mxu0 %v584
    %720 = vmatpush.msra.mxu0 %v582
    %721 = vmatmul.f32.gmra.mxu0 %v547
    %v722 = vpop.f32.mrf.mxu0
    %v723 = vadd.f32 %v703, %v722
    %724 = vdwg.mxu0
    %725 = vmatpush.msra.mxu0 %v644
    %726 = vmatpush.msra.mxu0 %v642
    %727 = vmatpush.msra.mxu0 %v640
    %728 = vmatpush.msra.mxu0 %v638
    %729 = vmatpush.msra.mxu0 %v636
    %730 = vmatpush.msra.mxu0 %v634
    %731 = vmatpush.msra.mxu0 %v632
    %732 = vmatpush.msra.mxu0 %v630
    %733 = vmatpush.msra.mxu0 %v628
    %734 = vmatpush.msra.mxu0 %v626
    %735 = vmatpush.msra.mxu0 %v624
    %736 = vmatpush.msra.mxu0 %v622
    %737 = vmatpush.msra.mxu0 %v620
    %738 = vmatpush.msra.mxu0 %v618
    %739 = vmatpush.msra.mxu0 %v616
    %740 = vmatpush.msra.mxu0 %v614
    %741 = vmatmul.f32.gmra.mxu0 %v548
    %v742 = vpop.f32.mrf.mxu0
    %v743 = vadd.f32 %v723, %v742
    %744 = vdwg.mxu0
    %745 = vmatpush.msra.mxu0 %v676
    %746 = vmatpush.msra.mxu0 %v674
    %747 = vmatpush.msra.mxu0 %v672
    %748 = vmatpush.msra.mxu0 %v670
    %749 = vmatpush.msra.mxu0 %v668
    %750 = vmatpush.msra.mxu0 %v666
    %751 = vmatpush.msra.mxu0 %v664
    %752 = vmatpush.msra.mxu0 %v662
    %753 = vmatpush.msra.mxu0 %v660
    %754 = vmatpush.msra.mxu0 %v658
    %755 = vmatpush.msra.mxu0 %v656
    %756 = vmatpush.msra.mxu0 %v654
    %757 = vmatpush.msra.mxu0 %v652
    %758 = vmatpush.msra.mxu0 %v650
    %759 = vmatpush.msra.mxu0 %v648
    %760 = vmatpush.msra.mxu0 %v646
    %761 = vmatmul.f32.gmra.mxu0 %v549
    %v762 = vpop.f32.mrf.mxu0
    %v763 = vadd.f32 %v743, %v762
    %764 = vdwg.mxu0
    %765 = vmatpush.msra.mxu0 %v581
    %766 = vmatpush.msra.mxu0 %v579
    %767 = vmatpush.msra.mxu0 %v577
    %768 = vmatpush.msra.mxu0 %v575
    %769 = vmatpush.msra.mxu0 %v573
    %770 = vmatpush.msra.mxu0 %v571
    %771 = vmatpush.msra.mxu0 %v569
    %772 = vmatpush.msra.mxu0 %v567
    %773 = vmatpush.msra.mxu0 %v565
    %774 = vmatpush.msra.mxu0 %v563
    %775 = vmatpush.msra.mxu0 %v561
    %776 = vmatpush.msra.mxu0 %v559
    %777 = vmatpush.msra.mxu0 %v557
    %778 = vmatpush.msra.mxu0 %v555
    %779 = vmatpush.msra.mxu0 %v553
    %780 = vmatpush.msra.mxu0 %v551
    %781 = vmatmul.f32.gmra.mxu0 %v546
    %v782 = vpop.f32.mrf.mxu0
    %v783 = vadd.f32 %v682, %v782
    %784 = vdwg.mxu0
    %785 = vmatpush.msra.mxu0 %v613
    %786 = vmatpush.msra.mxu0 %v611
    %787 = vmatpush.msra.mxu0 %v609
    %788 = vmatpush.msra.mxu0 %v607
    %789 = vmatpush.msra.mxu0 %v605
    %790 = vmatpush.msra.mxu0 %v603
    %791 = vmatpush.msra.mxu0 %v601
    %792 = vmatpush.msra.mxu0 %v599
    %793 = vmatpush.msra.mxu0 %v597
    %794 = vmatpush.msra.mxu0 %v595
    %795 = vmatpush.msra.mxu0 %v593
    %796 = vmatpush.msra.mxu0 %v591
    %797 = vmatpush.msra.mxu0 %v589
    %798 = vmatpush.msra.mxu0 %v587
    %799 = vmatpush.msra.mxu0 %v585
    %800 = vmatpush.msra.mxu0 %v583
    %801 = vmatmul.f32.gmra.mxu0 %v547
    %v802 = vpop.f32.mrf.mxu0
    %v803 = vadd.f32 %v783, %v802
    %804 = vdwg.mxu0
    %805 = vmatpush.msra.mxu0 %v645
    %806 = vmatpush.msra.mxu0 %v643
    %807 = vmatpush.msra.mxu0 %v641
    %808 = vmatpush.msra.mxu0 %v639
    %809 = vmatpush.msra.mxu0 %v637
    %810 = vmatpush.msra.mxu0 %v635
    %811 = vmatpush.msra.mxu0 %v633
    %812 = vmatpush.msra.mxu0 %v631
    %813 = vmatpush.msra.mxu0 %v629
    %814 = vmatpush.msra.mxu0 %v627
    %815 = vmatpush.msra.mxu0 %v625
    %816 = vmatpush.msra.mxu0 %v623
    %817 = vmatpush.msra.mxu0 %v621
    %818 = vmatpush.msra.mxu0 %v619
    %819 = vmatpush.msra.mxu0 %v617
    %820 = vmatpush.msra.mxu0 %v615
    %821 = vmatmul.f32.gmra.mxu0 %v548
    %v822 = vpop.f32.mrf.mxu0
    %v823 = vadd.f32 %v803, %v822
    %824 = vdwg.mxu0
    %825 = vmatpush.msra.mxu0 %v677
    %826 = vmatpush.msra.mxu0 %v675
    %827 = vmatpush.msra.mxu0 %v673
    %828 = vmatpush.msra.mxu0 %v671
    %829 = vmatpush.msra.mxu0 %v669
    %830 = vmatpush.msra.mxu0 %v667
    %831 = vmatpush.msra.mxu0 %v665
    %832 = vmatpush.msra.mxu0 %v663
    %833 = vmatpush.msra.mxu0 %v661
    %834 = vmatpush.msra.mxu0 %v659
    %835 = vmatpush.msra.mxu0 %v657
    %836 = vmatpush.msra.mxu0 %v655
    %837 = vmatpush.msra.mxu0 %v653
    %838 = vmatpush.msra.mxu0 %v651
    %839 = vmatpush.msra.mxu0 %v649
    %840 = vmatpush.msra.mxu0 %v647
    %841 = vmatmul.f32.gmra.mxu0 %v549
    %v842 = vpop.f32.mrf.mxu0
    %v843 = vadd.f32 %v823, %v842
    %844 = vdwg.mxu0
    %s845 = scalar_lea.vmem %s0, 64
    %v846 = vld [vmem:[%s845] sm:$0xff]
    %v847 = vld [vmem:[%s845 + $0x8] sm:$0xff]
    %v848 = vld [vmem:[%s845 + $0x10] sm:$0xff]
    %v849 = vld [vmem:[%s845 + $0x18] sm:$0xff]
    %v850 = vld [vmem:[%s845 + $0x20] sm:$0xff]
    %v851 = vld [vmem:[%s845 + $0x28] sm:$0xff]
    %v852 = vld [vmem:[%s845 + $0x30] sm:$0xff]
    %v853 = vld [vmem:[%s845 + $0x38] sm:$0xff]
    %s854 = scalar_lea.vmem [#allocation2], 864
    %v855 = vld [vmem:[%s854] sm:$0xff]
    %v856 = vld [vmem:[%s854 + $0x8] sm:$0xff]
    %v857 = vld [vmem:[%s854 + $0x10] sm:$0xff]
    %v858 = vld [vmem:[%s854 + $0x18] sm:$0xff]
    %v859 = vld [vmem:[%s854 + $0x20] sm:$0xff]
    %v860 = vld [vmem:[%s854 + $0x28] sm:$0xff]
    %v861 = vld [vmem:[%s854 + $0x30] sm:$0xff]
    %v862 = vld [vmem:[%s854 + $0x38] sm:$0xff]
    %v863 = vld [vmem:[%s854 + $0x40] sm:$0xff]
    %v864 = vld [vmem:[%s854 + $0x48] sm:$0xff]
    %v865 = vld [vmem:[%s854 + $0x50] sm:$0xff]
    %v866 = vld [vmem:[%s854 + $0x58] sm:$0xff]
    %v867 = vld [vmem:[%s854 + $0x60] sm:$0xff]
    %v868 = vld [vmem:[%s854 + $0x68] sm:$0xff]
    %v869 = vld [vmem:[%s854 + $0x70] sm:$0xff]
    %v870 = vld [vmem:[%s854 + $0x78] sm:$0xff]
    %v871 = vld [vmem:[%s854 + $0x80] sm:$0xff]
    %v872 = vld [vmem:[%s854 + $0x88] sm:$0xff]
    %v873 = vld [vmem:[%s854 + $0x90] sm:$0xff]
    %v874 = vld [vmem:[%s854 + $0x98] sm:$0xff]
    %v875 = vld [vmem:[%s854 + $0xa0] sm:$0xff]
    %v876 = vld [vmem:[%s854 + $0xa8] sm:$0xff]
    %v877 = vld [vmem:[%s854 + $0xb0] sm:$0xff]
    %v878 = vld [vmem:[%s854 + $0xb8] sm:$0xff]
    %v879 = vld [vmem:[%s854 + $0xc0] sm:$0xff]
    %v880 = vld [vmem:[%s854 + $0xc8] sm:$0xff]
    %v881 = vld [vmem:[%s854 + $0xd0] sm:$0xff]
    %v882 = vld [vmem:[%s854 + $0xd8] sm:$0xff]
    %v883 = vld [vmem:[%s854 + $0xe0] sm:$0xff]
    %v884 = vld [vmem:[%s854 + $0xe8] sm:$0xff]
    %v885 = vld [vmem:[%s854 + $0xf0] sm:$0xff]
    %v886 = vld [vmem:[%s854 + $0xf8] sm:$0xff]
    %v887 = vld [vmem:[%s854 + $0x100] sm:$0xff]
    %v888 = vld [vmem:[%s854 + $0x108] sm:$0xff]
    %v889 = vld [vmem:[%s854 + $0x110] sm:$0xff]
    %v890 = vld [vmem:[%s854 + $0x118] sm:$0xff]
    %v891 = vld [vmem:[%s854 + $0x120] sm:$0xff]
    %v892 = vld [vmem:[%s854 + $0x128] sm:$0xff]
    %v893 = vld [vmem:[%s854 + $0x130] sm:$0xff]
    %v894 = vld [vmem:[%s854 + $0x138] sm:$0xff]
    %v895 = vld [vmem:[%s854 + $0x140] sm:$0xff]
    %v896 = vld [vmem:[%s854 + $0x148] sm:$0xff]
    %v897 = vld [vmem:[%s854 + $0x150] sm:$0xff]
    %v898 = vld [vmem:[%s854 + $0x158] sm:$0xff]
    %v899 = vld [vmem:[%s854 + $0x160] sm:$0xff]
    %v900 = vld [vmem:[%s854 + $0x168] sm:$0xff]
    %v901 = vld [vmem:[%s854 + $0x170] sm:$0xff]
    %v902 = vld [vmem:[%s854 + $0x178] sm:$0xff]
    %v903 = vld [vmem:[%s854 + $0x180] sm:$0xff]
    %v904 = vld [vmem:[%s854 + $0x188] sm:$0xff]
    %v905 = vld [vmem:[%s854 + $0x190] sm:$0xff]
    %v906 = vld [vmem:[%s854 + $0x198] sm:$0xff]
    %v907 = vld [vmem:[%s854 + $0x1a0] sm:$0xff]
    %v908 = vld [vmem:[%s854 + $0x1a8] sm:$0xff]
    %v909 = vld [vmem:[%s854 + $0x1b0] sm:$0xff]
    %v910 = vld [vmem:[%s854 + $0x1b8] sm:$0xff]
    %v911 = vld [vmem:[%s854 + $0x1c0] sm:$0xff]
    %v912 = vld [vmem:[%s854 + $0x1c8] sm:$0xff]
    %v913 = vld [vmem:[%s854 + $0x1d0] sm:$0xff]
    %v914 = vld [vmem:[%s854 + $0x1d8] sm:$0xff]
    %v915 = vld [vmem:[%s854 + $0x1e0] sm:$0xff]
    %v916 = vld [vmem:[%s854 + $0x1e8] sm:$0xff]
    %v917 = vld [vmem:[%s854 + $0x1f0] sm:$0xff]
    %v918 = vld [vmem:[%s854 + $0x1f8] sm:$0xff]
    %v919 = vld [vmem:[%s854 + $0x200] sm:$0xff]
    %v920 = vld [vmem:[%s854 + $0x208] sm:$0xff]
    %v921 = vld [vmem:[%s854 + $0x210] sm:$0xff]
    %v922 = vld [vmem:[%s854 + $0x218] sm:$0xff]
    %v923 = vld [vmem:[%s854 + $0x220] sm:$0xff]
    %v924 = vld [vmem:[%s854 + $0x228] sm:$0xff]
    %v925 = vld [vmem:[%s854 + $0x230] sm:$0xff]
    %v926 = vld [vmem:[%s854 + $0x238] sm:$0xff]
    %v927 = vld [vmem:[%s854 + $0x240] sm:$0xff]
    %v928 = vld [vmem:[%s854 + $0x248] sm:$0xff]
    %v929 = vld [vmem:[%s854 + $0x250] sm:$0xff]
    %v930 = vld [vmem:[%s854 + $0x258] sm:$0xff]
    %v931 = vld [vmem:[%s854 + $0x260] sm:$0xff]
    %v932 = vld [vmem:[%s854 + $0x268] sm:$0xff]
    %v933 = vld [vmem:[%s854 + $0x270] sm:$0xff]
    %v934 = vld [vmem:[%s854 + $0x278] sm:$0xff]
    %v935 = vld [vmem:[%s854 + $0x280] sm:$0xff]
    %v936 = vld [vmem:[%s854 + $0x288] sm:$0xff]
    %v937 = vld [vmem:[%s854 + $0x290] sm:$0xff]
    %v938 = vld [vmem:[%s854 + $0x298] sm:$0xff]
    %v939 = vld [vmem:[%s854 + $0x2a0] sm:$0xff]
    %v940 = vld [vmem:[%s854 + $0x2a8] sm:$0xff]
    %v941 = vld [vmem:[%s854 + $0x2b0] sm:$0xff]
    %v942 = vld [vmem:[%s854 + $0x2b8] sm:$0xff]
    %v943 = vld [vmem:[%s854 + $0x2c0] sm:$0xff]
    %v944 = vld [vmem:[%s854 + $0x2c8] sm:$0xff]
    %v945 = vld [vmem:[%s854 + $0x2d0] sm:$0xff]
    %v946 = vld [vmem:[%s854 + $0x2d8] sm:$0xff]
    %v947 = vld [vmem:[%s854 + $0x2e0] sm:$0xff]
    %v948 = vld [vmem:[%s854 + $0x2e8] sm:$0xff]
    %v949 = vld [vmem:[%s854 + $0x2f0] sm:$0xff]
    %v950 = vld [vmem:[%s854 + $0x2f8] sm:$0xff]
    %v951 = vld [vmem:[%s854 + $0x300] sm:$0xff]
    %v952 = vld [vmem:[%s854 + $0x308] sm:$0xff]
    %v953 = vld [vmem:[%s854 + $0x310] sm:$0xff]
    %v954 = vld [vmem:[%s854 + $0x318] sm:$0xff]
    %v955 = vld [vmem:[%s854 + $0x320] sm:$0xff]
    %v956 = vld [vmem:[%s854 + $0x328] sm:$0xff]
    %v957 = vld [vmem:[%s854 + $0x330] sm:$0xff]
    %v958 = vld [vmem:[%s854 + $0x338] sm:$0xff]
    %v959 = vld [vmem:[%s854 + $0x340] sm:$0xff]
    %v960 = vld [vmem:[%s854 + $0x348] sm:$0xff]
    %v961 = vld [vmem:[%s854 + $0x350] sm:$0xff]
    %v962 = vld [vmem:[%s854 + $0x358] sm:$0xff]
    %s963 = scalar_lea.vmem %s2, 1
    %v964 = vld [vmem:[%s963] ss:$8 sm:$0xf]
    %v966 = vperm.slane %v964, 0
    %v967 = vperm.slane %v964, 1
    %v968 = vperm.slane %v964, 2
    %v969 = vperm.slane %v964, 3
    %v975 = vsel %vm228, %v847, 0
    %v978 = vsel %vm228, %v849, 0
    %v981 = vsel %vm228, %v851, 0
    %v984 = vsel %vm228, %v853, 0
    %986 = vmatpush.msra.mxu0 %v915
    %987 = vmatpush.msra.mxu0 %v911
    %988 = vmatpush.msra.mxu0 %v907
    %989 = vmatpush.msra.mxu0 %v903
    %990 = vmatpush.msra.mxu0 %v899
    %991 = vmatpush.msra.mxu0 %v895
    %992 = vmatpush.msra.mxu0 %v891
    %993 = vmatpush.msra.mxu0 %v887
    %994 = vmatpush.msra.mxu0 %v883
    %995 = vmatpush.msra.mxu0 %v879
    %996 = vmatpush.msra.mxu0 %v875
    %997 = vmatpush.msra.mxu0 %v871
    %998 = vmatpush.msra.mxu0 %v867
    %999 = vmatpush.msra.mxu0 %v863
    %1000 = vmatpush.msra.mxu0 %v859
    %1001 = vmatpush.msra.mxu0 %v855
    %1002 = vmatmul.f32.gmra.mxu0 %v846
    %v1003 = vpop.f32.mrf.mxu0
    %v1004 = vadd.f32 %v966, %v1003
    %1005 = vmatmul.f32.gmra.mxu0 %v848
    %v1006 = vpop.f32.mrf.mxu0
    %v1007 = vadd.f32 %v966, %v1006
    %1008 = vmatmul.f32.gmra.mxu0 %v850
    %v1009 = vpop.f32.mrf.mxu0
    %v1010 = vadd.f32 %v966, %v1009
    %1011 = vmatmul.f32.gmra.mxu0 %v852
    %v1012 = vpop.f32.mrf.mxu0
    %v1013 = vadd.f32 %v966, %v1012
    %1014 = vdwg.mxu0
    %1015 = vmatpush.msra.mxu0 0.0
    %1016 = vmatpush.msra.mxu0 0.0
    %1017 = vmatpush.msra.mxu0 0.0
    %1018 = vmatpush.msra.mxu0 0.0
    %1019 = vmatpush.msra.mxu0 0.0
    %1020 = vmatpush.msra.mxu0 %v959
    %1021 = vmatpush.msra.mxu0 %v955
    %1022 = vmatpush.msra.mxu0 %v951
    %1023 = vmatpush.msra.mxu0 %v947
    %1024 = vmatpush.msra.mxu0 %v943
    %1025 = vmatpush.msra.mxu0 %v939
    %1026 = vmatpush.msra.mxu0 %v935
    %1027 = vmatpush.msra.mxu0 %v931
    %1028 = vmatpush.msra.mxu0 %v927
    %1029 = vmatpush.msra.mxu0 %v923
    %1030 = vmatpush.msra.mxu0 %v919
    %1031 = vmatmul.f32.gmra.mxu0 %v975
    %v1032 = vpop.f32.mrf.mxu0
    %v1033 = vadd.f32 %v1004, %v1032
    %1034 = vmatmul.f32.gmra.mxu0 %v978
    %v1035 = vpop.f32.mrf.mxu0
    %v1036 = vadd.f32 %v1007, %v1035
    %1037 = vmatmul.f32.gmra.mxu0 %v981
    %v1038 = vpop.f32.mrf.mxu0
    %v1039 = vadd.f32 %v1010, %v1038
    %1040 = vmatmul.f32.gmra.mxu0 %v984
    %v1041 = vpop.f32.mrf.mxu0
    %v1042 = vadd.f32 %v1013, %v1041
    %1043 = vdwg.mxu0
    %1044 = vmatpush.msra.mxu0 %v916
    %1045 = vmatpush.msra.mxu0 %v912
    %1046 = vmatpush.msra.mxu0 %v908
    %1047 = vmatpush.msra.mxu0 %v904
    %1048 = vmatpush.msra.mxu0 %v900
    %1049 = vmatpush.msra.mxu0 %v896
    %1050 = vmatpush.msra.mxu0 %v892
    %1051 = vmatpush.msra.mxu0 %v888
    %1052 = vmatpush.msra.mxu0 %v884
    %1053 = vmatpush.msra.mxu0 %v880
    %1054 = vmatpush.msra.mxu0 %v876
    %1055 = vmatpush.msra.mxu0 %v872
    %1056 = vmatpush.msra.mxu0 %v868
    %1057 = vmatpush.msra.mxu0 %v864
    %1058 = vmatpush.msra.mxu0 %v860
    %1059 = vmatpush.msra.mxu0 %v856
    %1060 = vmatmul.f32.gmra.mxu0 %v846
    %v1061 = vpop.f32.mrf.mxu0
    %v1062 = vadd.f32 %v967, %v1061
    %1063 = vmatmul.f32.gmra.mxu0 %v848
    %v1064 = vpop.f32.mrf.mxu0
    %v1065 = vadd.f32 %v967, %v1064
    %1066 = vmatmul.f32.gmra.mxu0 %v850
    %v1067 = vpop.f32.mrf.mxu0
    %v1068 = vadd.f32 %v967, %v1067
    %1069 = vmatmul.f32.gmra.mxu0 %v852
    %v1070 = vpop.f32.mrf.mxu0
    %v1071 = vadd.f32 %v967, %v1070
    %1072 = vdwg.mxu0
    %1073 = vmatpush.msra.mxu0 0.0
    %1074 = vmatpush.msra.mxu0 0.0
    %1075 = vmatpush.msra.mxu0 0.0
    %1076 = vmatpush.msra.mxu0 0.0
    %1077 = vmatpush.msra.mxu0 0.0
    %1078 = vmatpush.msra.mxu0 %v960
    %1079 = vmatpush.msra.mxu0 %v956
    %1080 = vmatpush.msra.mxu0 %v952
    %1081 = vmatpush.msra.mxu0 %v948
    %1082 = vmatpush.msra.mxu0 %v944
    %1083 = vmatpush.msra.mxu0 %v940
    %1084 = vmatpush.msra.mxu0 %v936
    %1085 = vmatpush.msra.mxu0 %v932
    %1086 = vmatpush.msra.mxu0 %v928
    %1087 = vmatpush.msra.mxu0 %v924
    %1088 = vmatpush.msra.mxu0 %v920
    %1089 = vmatmul.f32.gmra.mxu0 %v975
    %v1090 = vpop.f32.mrf.mxu0
    %v1091 = vadd.f32 %v1062, %v1090
    %1092 = vmatmul.f32.gmra.mxu0 %v978
    %v1093 = vpop.f32.mrf.mxu0
    %v1094 = vadd.f32 %v1065, %v1093
    %1095 = vmatmul.f32.gmra.mxu0 %v981
    %v1096 = vpop.f32.mrf.mxu0
    %v1097 = vadd.f32 %v1068, %v1096
    %1098 = vmatmul.f32.gmra.mxu0 %v984
    %v1099 = vpop.f32.mrf.mxu0
    %v1100 = vadd.f32 %v1071, %v1099
    %1101 = vdwg.mxu0
    %1102 = vmatpush.msra.mxu0 %v917
    %1103 = vmatpush.msra.mxu0 %v913
    %1104 = vmatpush.msra.mxu0 %v909
    %1105 = vmatpush.msra.mxu0 %v905
    %1106 = vmatpush.msra.mxu0 %v901
    %1107 = vmatpush.msra.mxu0 %v897
    %1108 = vmatpush.msra.mxu0 %v893
    %1109 = vmatpush.msra.mxu0 %v889
    %1110 = vmatpush.msra.mxu0 %v885
    %1111 = vmatpush.msra.mxu0 %v881
    %1112 = vmatpush.msra.mxu0 %v877
    %1113 = vmatpush.msra.mxu0 %v873
    %1114 = vmatpush.msra.mxu0 %v869
    %1115 = vmatpush.msra.mxu0 %v865
    %1116 = vmatpush.msra.mxu0 %v861
    %1117 = vmatpush.msra.mxu0 %v857
    %1118 = vmatmul.f32.gmra.mxu0 %v846
    %v1119 = vpop.f32.mrf.mxu0
    %v1120 = vadd.f32 %v968, %v1119
    %1121 = vmatmul.f32.gmra.mxu0 %v848
    %v1122 = vpop.f32.mrf.mxu0
    %v1123 = vadd.f32 %v968, %v1122
    %1124 = vmatmul.f32.gmra.mxu0 %v850
    %v1125 = vpop.f32.mrf.mxu0
    %v1126 = vadd.f32 %v968, %v1125
    %1127 = vmatmul.f32.gmra.mxu0 %v852
    %v1128 = vpop.f32.mrf.mxu0
    %v1129 = vadd.f32 %v968, %v1128
    %1130 = vdwg.mxu0
    %1131 = vmatpush.msra.mxu0 0.0
    %1132 = vmatpush.msra.mxu0 0.0
    %1133 = vmatpush.msra.mxu0 0.0
    %1134 = vmatpush.msra.mxu0 0.0
    %1135 = vmatpush.msra.mxu0 0.0
    %1136 = vmatpush.msra.mxu0 %v961
    %1137 = vmatpush.msra.mxu0 %v957
    %1138 = vmatpush.msra.mxu0 %v953
    %1139 = vmatpush.msra.mxu0 %v949
    %1140 = vmatpush.msra.mxu0 %v945
    %1141 = vmatpush.msra.mxu0 %v941
    %1142 = vmatpush.msra.mxu0 %v937
    %1143 = vmatpush.msra.mxu0 %v933
    %1144 = vmatpush.msra.mxu0 %v929
    %1145 = vmatpush.msra.mxu0 %v925
    %1146 = vmatpush.msra.mxu0 %v921
    %1147 = vmatmul.f32.gmra.mxu0 %v975
    %v1148 = vpop.f32.mrf.mxu0
    %v1149 = vadd.f32 %v1120, %v1148
    %1150 = vmatmul.f32.gmra.mxu0 %v978
    %v1151 = vpop.f32.mrf.mxu0
    %v1152 = vadd.f32 %v1123, %v1151
    %1153 = vmatmul.f32.gmra.mxu0 %v981
    %v1154 = vpop.f32.mrf.mxu0
    %v1155 = vadd.f32 %v1126, %v1154
    %1156 = vmatmul.f32.gmra.mxu0 %v984
    %v1157 = vpop.f32.mrf.mxu0
    %v1158 = vadd.f32 %v1129, %v1157
    %1159 = vdwg.mxu0
    %1160 = vmatpush.msra.mxu0 %v918
    %1161 = vmatpush.msra.mxu0 %v914
    %1162 = vmatpush.msra.mxu0 %v910
    %1163 = vmatpush.msra.mxu0 %v906
    %1164 = vmatpush.msra.mxu0 %v902
    %1165 = vmatpush.msra.mxu0 %v898
    %1166 = vmatpush.msra.mxu0 %v894
    %1167 = vmatpush.msra.mxu0 %v890
    %1168 = vmatpush.msra.mxu0 %v886
    %1169 = vmatpush.msra.mxu0 %v882
    %1170 = vmatpush.msra.mxu0 %v878
    %1171 = vmatpush.msra.mxu0 %v874
    %1172 = vmatpush.msra.mxu0 %v870
    %1173 = vmatpush.msra.mxu0 %v866
    %1174 = vmatpush.msra.mxu0 %v862
    %1175 = vmatpush.msra.mxu0 %v858
    %1176 = vmatmul.f32.gmra.mxu0 %v846
    %v1177 = vpop.f32.mrf.mxu0
    %v1178 = vadd.f32 %v969, %v1177
    %1179 = vmatmul.f32.gmra.mxu0 %v848
    %v1180 = vpop.f32.mrf.mxu0
    %v1181 = vadd.f32 %v969, %v1180
    %1182 = vmatmul.f32.gmra.mxu0 %v850
    %v1183 = vpop.f32.mrf.mxu0
    %v1184 = vadd.f32 %v969, %v1183
    %1185 = vmatmul.f32.gmra.mxu0 %v852
    %v1186 = vpop.f32.mrf.mxu0
    %v1187 = vadd.f32 %v969, %v1186
    %1188 = vdwg.mxu0
    %1189 = vmatpush.msra.mxu0 0.0
    %1190 = vmatpush.msra.mxu0 0.0
    %1191 = vmatpush.msra.mxu0 0.0
    %1192 = vmatpush.msra.mxu0 0.0
    %1193 = vmatpush.msra.mxu0 0.0
    %1194 = vmatpush.msra.mxu0 %v962
    %1195 = vmatpush.msra.mxu0 %v958
    %1196 = vmatpush.msra.mxu0 %v954
    %1197 = vmatpush.msra.mxu0 %v950
    %1198 = vmatpush.msra.mxu0 %v946
    %1199 = vmatpush.msra.mxu0 %v942
    %1200 = vmatpush.msra.mxu0 %v938
    %1201 = vmatpush.msra.mxu0 %v934
    %1202 = vmatpush.msra.mxu0 %v930
    %1203 = vmatpush.msra.mxu0 %v926
    %1204 = vmatpush.msra.mxu0 %v922
    %1205 = vmatmul.f32.gmra.mxu0 %v975
    %v1206 = vpop.f32.mrf.mxu0
    %v1207 = vadd.f32 %v1178, %v1206
    %1208 = vmatmul.f32.gmra.mxu0 %v978
    %v1209 = vpop.f32.mrf.mxu0
    %v1210 = vadd.f32 %v1181, %v1209
    %1211 = vmatmul.f32.gmra.mxu0 %v981
    %v1212 = vpop.f32.mrf.mxu0
    %v1213 = vadd.f32 %v1184, %v1212
    %1214 = vmatmul.f32.gmra.mxu0 %v984
    %v1215 = vpop.f32.mrf.mxu0
    %v1216 = vadd.f32 %v1187, %v1215
    %1217 = vdwg.mxu0
    %v1218 = vmax.f32 %v1033, 0.0
    %v1219 = vmax.f32 %v1091, 0.0
    %v1220 = vmax.f32 %v1149, 0.0
    %v1221 = vmax.f32 %v1207, 0.0
    %v1222 = vmax.f32 %v1036, 0.0
    %v1223 = vmax.f32 %v1094, 0.0
    %v1224 = vmax.f32 %v1152, 0.0
    %v1225 = vmax.f32 %v1210, 0.0
    %v1226 = vmax.f32 %v1039, 0.0
    %v1227 = vmax.f32 %v1097, 0.0
    %v1228 = vmax.f32 %v1155, 0.0
    %v1229 = vmax.f32 %v1213, 0.0
    %v1230 = vmax.f32 %v1042, 0.0
    %v1231 = vmax.f32 %v1100, 0.0
    %v1232 = vmax.f32 %v1158, 0.0
    %v1233 = vmax.f32 %v1216, 0.0
    %v1234 = vadd.f32 %v1218, %v1222
    %v1235 = vrot.slane %v1234, 4
    %v1236 = vadd.f32 %v1234, %v1235
    %v1237 = vrot.slane %v1236, 2
    %v1238 = vadd.f32 %v1236, %v1237
    %v1239 = vrot.slane %v1238, 1
    %v1240 = vadd.f32 %v1238, %v1239
    %v1241 = vadd.f32 %v1219, %v1223
    %v1242 = vrot.slane %v1241, 4
    %v1243 = vadd.f32 %v1241, %v1242
    %v1244 = vrot.slane %v1243, 2
    %v1245 = vadd.f32 %v1243, %v1244
    %v1246 = vrot.slane %v1245, 1
    %v1247 = vadd.f32 %v1245, %v1246
    %v1248 = vadd.f32 %v1220, %v1224
    %v1249 = vrot.slane %v1248, 4
    %v1250 = vadd.f32 %v1248, %v1249
    %v1251 = vrot.slane %v1250, 2
    %v1252 = vadd.f32 %v1250, %v1251
    %v1253 = vrot.slane %v1252, 1
    %v1254 = vadd.f32 %v1252, %v1253
    %v1255 = vadd.f32 %v1221, %v1225
    %v1256 = vrot.slane %v1255, 4
    %v1257 = vadd.f32 %v1255, %v1256
    %v1258 = vrot.slane %v1257, 2
    %v1259 = vadd.f32 %v1257, %v1258
    %v1260 = vrot.slane %v1259, 1
    %v1261 = vadd.f32 %v1259, %v1260
    %v1262 = vadd.f32 %v1226, %v1230
    %v1263 = vrot.slane %v1262, 4
    %v1264 = vadd.f32 %v1262, %v1263
    %v1265 = vrot.slane %v1264, 2
    %v1266 = vadd.f32 %v1264, %v1265
    %v1267 = vrot.slane %v1266, 1
    %v1268 = vadd.f32 %v1266, %v1267
    %v1269 = vadd.f32 %v1227, %v1231
    %v1270 = vrot.slane %v1269, 4
    %v1271 = vadd.f32 %v1269, %v1270
    %v1272 = vrot.slane %v1271, 2
    %v1273 = vadd.f32 %v1271, %v1272
    %v1274 = vrot.slane %v1273, 1
    %v1275 = vadd.f32 %v1273, %v1274
    %v1276 = vadd.f32 %v1228, %v1232
    %v1277 = vrot.slane %v1276, 4
    %v1278 = vadd.f32 %v1276, %v1277
    %v1279 = vrot.slane %v1278, 2
    %v1280 = vadd.f32 %v1278, %v1279
    %v1281 = vrot.slane %v1280, 1
    %v1282 = vadd.f32 %v1280, %v1281
    %v1283 = vadd.f32 %v1229, %v1233
    %v1284 = vrot.slane %v1283, 4
    %v1285 = vadd.f32 %v1283, %v1284
    %v1286 = vrot.slane %v1285, 2
    %v1287 = vadd.f32 %v1285, %v1286
    %v1288 = vrot.slane %v1287, 1
    %v1289 = vadd.f32 %v1287, %v1288
    %v1290 = vsel %vm545, %v1240, %v1268
    %v1291 = vsel %vm545, %v1247, %v1275
    %v1292 = vsel %vm545, %v1254, %v1282
    %v1293 = vsel %vm545, %v1261, %v1289
    %s1294 = scalar_lea.vmem %s4, 1024
    %v1295 = vld [vmem:[%s1294] sm:$0xff]
    %v1296 = vld [vmem:[%s1294 + $0x8] sm:$0xff]
    %v1297 = vld [vmem:[%s1294 + $0x10] sm:$0xff]
    %v1298 = vld [vmem:[%s1294 + $0x18] sm:$0xff]
    %v1299 = vld [vmem:[%s1294 + $0x20] sm:$0xff]
    %v1300 = vld [vmem:[%s1294 + $0x28] sm:$0xff]
    %v1301 = vld [vmem:[%s1294 + $0x30] sm:$0xff]
    %v1302 = vld [vmem:[%s1294 + $0x38] sm:$0xff]
    %v1303 = vld [vmem:[%s1294 + $0x40] sm:$0xff]
    %v1304 = vld [vmem:[%s1294 + $0x48] sm:$0xff]
    %v1305 = vld [vmem:[%s1294 + $0x50] sm:$0xff]
    %v1306 = vld [vmem:[%s1294 + $0x58] sm:$0xff]
    %v1307 = vld [vmem:[%s1294 + $0x60] sm:$0xff]
    %v1308 = vld [vmem:[%s1294 + $0x68] sm:$0xff]
    %v1309 = vld [vmem:[%s1294 + $0x70] sm:$0xff]
    %v1310 = vld [vmem:[%s1294 + $0x78] sm:$0xff]
    %v1311 = vld [vmem:[%s1294 + $0x80] sm:$0xff]
    %v1312 = vld [vmem:[%s1294 + $0x88] sm:$0xff]
    %v1313 = vld [vmem:[%s1294 + $0x90] sm:$0xff]
    %v1314 = vld [vmem:[%s1294 + $0x98] sm:$0xff]
    %v1315 = vld [vmem:[%s1294 + $0xa0] sm:$0xff]
    %v1316 = vld [vmem:[%s1294 + $0xa8] sm:$0xff]
    %v1317 = vld [vmem:[%s1294 + $0xb0] sm:$0xff]
    %v1318 = vld [vmem:[%s1294 + $0xb8] sm:$0xff]
    %v1319 = vld [vmem:[%s1294 + $0xc0] sm:$0xff]
    %v1320 = vld [vmem:[%s1294 + $0xc8] sm:$0xff]
    %v1321 = vld [vmem:[%s1294 + $0xd0] sm:$0xff]
    %v1322 = vld [vmem:[%s1294 + $0xd8] sm:$0xff]
    %v1323 = vld [vmem:[%s1294 + $0xe0] sm:$0xff]
    %v1324 = vld [vmem:[%s1294 + $0xe8] sm:$0xff]
    %v1325 = vld [vmem:[%s1294 + $0xf0] sm:$0xff]
    %v1326 = vld [vmem:[%s1294 + $0xf8] sm:$0xff]
    %v1327 = vld [vmem:[%s1294 + $0x100] sm:$0xff]
    %v1328 = vld [vmem:[%s1294 + $0x108] sm:$0xff]
    %v1329 = vld [vmem:[%s1294 + $0x110] sm:$0xff]
    %v1330 = vld [vmem:[%s1294 + $0x118] sm:$0xff]
    %v1331 = vld [vmem:[%s1294 + $0x120] sm:$0xff]
    %v1332 = vld [vmem:[%s1294 + $0x128] sm:$0xff]
    %v1333 = vld [vmem:[%s1294 + $0x130] sm:$0xff]
    %v1334 = vld [vmem:[%s1294 + $0x138] sm:$0xff]
    %v1335 = vld [vmem:[%s1294 + $0x140] sm:$0xff]
    %v1336 = vld [vmem:[%s1294 + $0x148] sm:$0xff]
    %v1337 = vld [vmem:[%s1294 + $0x150] sm:$0xff]
    %v1338 = vld [vmem:[%s1294 + $0x158] sm:$0xff]
    %v1339 = vld [vmem:[%s1294 + $0x160] sm:$0xff]
    %v1340 = vld [vmem:[%s1294 + $0x168] sm:$0xff]
    %v1341 = vld [vmem:[%s1294 + $0x170] sm:$0xff]
    %v1342 = vld [vmem:[%s1294 + $0x178] sm:$0xff]
    %v1343 = vld [vmem:[%s1294 + $0x180] sm:$0xff]
    %v1344 = vld [vmem:[%s1294 + $0x188] sm:$0xff]
    %v1345 = vld [vmem:[%s1294 + $0x190] sm:$0xff]
    %v1346 = vld [vmem:[%s1294 + $0x198] sm:$0xff]
    %v1347 = vld [vmem:[%s1294 + $0x1a0] sm:$0xff]
    %v1348 = vld [vmem:[%s1294 + $0x1a8] sm:$0xff]
    %v1349 = vld [vmem:[%s1294 + $0x1b0] sm:$0xff]
    %v1350 = vld [vmem:[%s1294 + $0x1b8] sm:$0xff]
    %v1351 = vld [vmem:[%s1294 + $0x1c0] sm:$0xff]
    %v1352 = vld [vmem:[%s1294 + $0x1c8] sm:$0xff]
    %v1353 = vld [vmem:[%s1294 + $0x1d0] sm:$0xff]
    %v1354 = vld [vmem:[%s1294 + $0x1d8] sm:$0xff]
    %v1355 = vld [vmem:[%s1294 + $0x1e0] sm:$0xff]
    %v1356 = vld [vmem:[%s1294 + $0x1e8] sm:$0xff]
    %v1357 = vld [vmem:[%s1294 + $0x1f0] sm:$0xff]
    %v1358 = vld [vmem:[%s1294 + $0x1f8] sm:$0xff]
    %v1359 = vld [vmem:[%s1294 + $0x200] sm:$0xff]
    %v1360 = vld [vmem:[%s1294 + $0x208] sm:$0xff]
    %v1361 = vld [vmem:[%s1294 + $0x210] sm:$0xff]
    %v1362 = vld [vmem:[%s1294 + $0x218] sm:$0xff]
    %v1363 = vld [vmem:[%s1294 + $0x220] sm:$0xff]
    %v1364 = vld [vmem:[%s1294 + $0x228] sm:$0xff]
    %v1365 = vld [vmem:[%s1294 + $0x230] sm:$0xff]
    %v1366 = vld [vmem:[%s1294 + $0x238] sm:$0xff]
    %v1367 = vld [vmem:[%s1294 + $0x240] sm:$0xff]
    %v1368 = vld [vmem:[%s1294 + $0x248] sm:$0xff]
    %v1369 = vld [vmem:[%s1294 + $0x250] sm:$0xff]
    %v1370 = vld [vmem:[%s1294 + $0x258] sm:$0xff]
    %v1371 = vld [vmem:[%s1294 + $0x260] sm:$0xff]
    %v1372 = vld [vmem:[%s1294 + $0x268] sm:$0xff]
    %v1373 = vld [vmem:[%s1294 + $0x270] sm:$0xff]
    %v1374 = vld [vmem:[%s1294 + $0x278] sm:$0xff]
    %v1375 = vld [vmem:[%s1294 + $0x280] sm:$0xff]
    %v1376 = vld [vmem:[%s1294 + $0x288] sm:$0xff]
    %v1377 = vld [vmem:[%s1294 + $0x290] sm:$0xff]
    %v1378 = vld [vmem:[%s1294 + $0x298] sm:$0xff]
    %v1379 = vld [vmem:[%s1294 + $0x2a0] sm:$0xff]
    %v1380 = vld [vmem:[%s1294 + $0x2a8] sm:$0xff]
    %v1381 = vld [vmem:[%s1294 + $0x2b0] sm:$0xff]
    %v1382 = vld [vmem:[%s1294 + $0x2b8] sm:$0xff]
    %v1383 = vld [vmem:[%s1294 + $0x2c0] sm:$0xff]
    %v1384 = vld [vmem:[%s1294 + $0x2c8] sm:$0xff]
    %v1385 = vld [vmem:[%s1294 + $0x2d0] sm:$0xff]
    %v1386 = vld [vmem:[%s1294 + $0x2d8] sm:$0xff]
    %v1387 = vld [vmem:[%s1294 + $0x2e0] sm:$0xff]
    %v1388 = vld [vmem:[%s1294 + $0x2e8] sm:$0xff]
    %v1389 = vld [vmem:[%s1294 + $0x2f0] sm:$0xff]
    %v1390 = vld [vmem:[%s1294 + $0x2f8] sm:$0xff]
    %v1391 = vld [vmem:[%s1294 + $0x300] sm:$0xff]
    %v1392 = vld [vmem:[%s1294 + $0x308] sm:$0xff]
    %v1393 = vld [vmem:[%s1294 + $0x310] sm:$0xff]
    %v1394 = vld [vmem:[%s1294 + $0x318] sm:$0xff]
    %v1395 = vld [vmem:[%s1294 + $0x320] sm:$0xff]
    %v1396 = vld [vmem:[%s1294 + $0x328] sm:$0xff]
    %v1397 = vld [vmem:[%s1294 + $0x330] sm:$0xff]
    %v1398 = vld [vmem:[%s1294 + $0x338] sm:$0xff]
    %v1399 = vld [vmem:[%s1294 + $0x340] sm:$0xff]
    %v1400 = vld [vmem:[%s1294 + $0x348] sm:$0xff]
    %v1401 = vld [vmem:[%s1294 + $0x350] sm:$0xff]
    %v1402 = vld [vmem:[%s1294 + $0x358] sm:$0xff]
    %v1403 = vld [vmem:[%s1294 + $0x360] sm:$0xff]
    %v1404 = vld [vmem:[%s1294 + $0x368] sm:$0xff]
    %v1405 = vld [vmem:[%s1294 + $0x370] sm:$0xff]
    %v1406 = vld [vmem:[%s1294 + $0x378] sm:$0xff]
    %v1407 = vld [vmem:[%s1294 + $0x380] sm:$0xff]
    %v1408 = vld [vmem:[%s1294 + $0x388] sm:$0xff]
    %v1409 = vld [vmem:[%s1294 + $0x390] sm:$0xff]
    %v1410 = vld [vmem:[%s1294 + $0x398] sm:$0xff]
    %v1411 = vld [vmem:[%s1294 + $0x3a0] sm:$0xff]
    %v1412 = vld [vmem:[%s1294 + $0x3a8] sm:$0xff]
    %v1413 = vld [vmem:[%s1294 + $0x3b0] sm:$0xff]
    %v1414 = vld [vmem:[%s1294 + $0x3b8] sm:$0xff]
    %v1415 = vld [vmem:[%s1294 + $0x3c0] sm:$0xff]
    %v1416 = vld [vmem:[%s1294 + $0x3c8] sm:$0xff]
    %v1417 = vld [vmem:[%s1294 + $0x3d0] sm:$0xff]
    %v1418 = vld [vmem:[%s1294 + $0x3d8] sm:$0xff]
    %v1419 = vld [vmem:[%s1294 + $0x3e0] sm:$0xff]
    %v1420 = vld [vmem:[%s1294 + $0x3e8] sm:$0xff]
    %v1421 = vld [vmem:[%s1294 + $0x3f0] sm:$0xff]
    %v1422 = vld [vmem:[%s1294 + $0x3f8] sm:$0xff]
    %s1423 = scalar_lea.vmem %s2, 3
    %v1424 = vld [vmem:[%s1423] ss:$8 sm:$0x3]
    %v1426 = vperm.slane %v1424, 0
    %v1427 = vperm.slane %v1424, 1
    %1430 = vmatpush.msra.mxu0 %v1325
    %1431 = vmatpush.msra.mxu0 %v1323
    %1432 = vmatpush.msra.mxu0 %v1321
    %1433 = vmatpush.msra.mxu0 %v1319
    %1434 = vmatpush.msra.mxu0 %v1317
    %1435 = vmatpush.msra.mxu0 %v1315
    %1436 = vmatpush.msra.mxu0 %v1313
    %1437 = vmatpush.msra.mxu0 %v1311
    %1438 = vmatpush.msra.mxu0 %v1309
    %1439 = vmatpush.msra.mxu0 %v1307
    %1440 = vmatpush.msra.mxu0 %v1305
    %1441 = vmatpush.msra.mxu0 %v1303
    %1442 = vmatpush.msra.mxu0 %v1301
    %1443 = vmatpush.msra.mxu0 %v1299
    %1444 = vmatpush.msra.mxu0 %v1297
    %1445 = vmatpush.msra.mxu0 %v1295
    %1446 = vmatmul.f32.gmra.mxu0 %v1290
    %v1447 = vpop.f32.mrf.mxu0
    %v1448 = vadd.f32 %v1426, %v1447
    %1449 = vdwg.mxu0
    %1450 = vmatpush.msra.mxu0 %v1357
    %1451 = vmatpush.msra.mxu0 %v1355
    %1452 = vmatpush.msra.mxu0 %v1353
    %1453 = vmatpush.msra.mxu0 %v1351
    %1454 = vmatpush.msra.mxu0 %v1349
    %1455 = vmatpush.msra.mxu0 %v1347
    %1456 = vmatpush.msra.mxu0 %v1345
    %1457 = vmatpush.msra.mxu0 %v1343
    %1458 = vmatpush.msra.mxu0 %v1341
    %1459 = vmatpush.msra.mxu0 %v1339
    %1460 = vmatpush.msra.mxu0 %v1337
    %1461 = vmatpush.msra.mxu0 %v1335
    %1462 = vmatpush.msra.mxu0 %v1333
    %1463 = vmatpush.msra.mxu0 %v1331
    %1464 = vmatpush.msra.mxu0 %v1329
    %1465 = vmatpush.msra.mxu0 %v1327
    %1466 = vmatmul.f32.gmra.mxu0 %v1291
    %v1467 = vpop.f32.mrf.mxu0
    %v1468 = vadd.f32 %v1448, %v1467
    %1469 = vdwg.mxu0
    %1470 = vmatpush.msra.mxu0 %v1389
    %1471 = vmatpush.msra.mxu0 %v1387
    %1472 = vmatpush.msra.mxu0 %v1385
    %1473 = vmatpush.msra.mxu0 %v1383
    %1474 = vmatpush.msra.mxu0 %v1381
    %1475 = vmatpush.msra.mxu0 %v1379
    %1476 = vmatpush.msra.mxu0 %v1377
    %1477 = vmatpush.msra.mxu0 %v1375
    %1478 = vmatpush.msra.mxu0 %v1373
    %1479 = vmatpush.msra.mxu0 %v1371
    %1480 = vmatpush.msra.mxu0 %v1369
    %1481 = vmatpush.msra.mxu0 %v1367
    %1482 = vmatpush.msra.mxu0 %v1365
    %1483 = vmatpush.msra.mxu0 %v1363
    %1484 = vmatpush.msra.mxu0 %v1361
    %1485 = vmatpush.msra.mxu0 %v1359
    %1486 = vmatmul.f32.gmra.mxu0 %v1292
    %v1487 = vpop.f32.mrf.mxu0
    %v1488 = vadd.f32 %v1468, %v1487
    %1489 = vdwg.mxu0
    %1490 = vmatpush.msra.mxu0 %v1421
    %1491 = vmatpush.msra.mxu0 %v1419
    %1492 = vmatpush.msra.mxu0 %v1417
    %1493 = vmatpush.msra.mxu0 %v1415
    %1494 = vmatpush.msra.mxu0 %v1413
    %1495 = vmatpush.msra.mxu0 %v1411
    %1496 = vmatpush.msra.mxu0 %v1409
    %1497 = vmatpush.msra.mxu0 %v1407
    %1498 = vmatpush.msra.mxu0 %v1405
    %1499 = vmatpush.msra.mxu0 %v1403
    %1500 = vmatpush.msra.mxu0 %v1401
    %1501 = vmatpush.msra.mxu0 %v1399
    %1502 = vmatpush.msra.mxu0 %v1397
    %1503 = vmatpush.msra.mxu0 %v1395
    %1504 = vmatpush.msra.mxu0 %v1393
    %1505 = vmatpush.msra.mxu0 %v1391
    %1506 = vmatmul.f32.gmra.mxu0 %v1293
    %v1507 = vpop.f32.mrf.mxu0
    %v1508 = vadd.f32 %v1488, %v1507
    %1509 = vdwg.mxu0
    %1510 = vmatpush.msra.mxu0 %v1326
    %1511 = vmatpush.msra.mxu0 %v1324
    %1512 = vmatpush.msra.mxu0 %v1322
    %1513 = vmatpush.msra.mxu0 %v1320
    %1514 = vmatpush.msra.mxu0 %v1318
    %1515 = vmatpush.msra.mxu0 %v1316
    %1516 = vmatpush.msra.mxu0 %v1314
    %1517 = vmatpush.msra.mxu0 %v1312
    %1518 = vmatpush.msra.mxu0 %v1310
    %1519 = vmatpush.msra.mxu0 %v1308
    %1520 = vmatpush.msra.mxu0 %v1306
    %1521 = vmatpush.msra.mxu0 %v1304
    %1522 = vmatpush.msra.mxu0 %v1302
    %1523 = vmatpush.msra.mxu0 %v1300
    %1524 = vmatpush.msra.mxu0 %v1298
    %1525 = vmatpush.msra.mxu0 %v1296
    %1526 = vmatmul.f32.gmra.mxu0 %v1290
    %v1527 = vpop.f32.mrf.mxu0
    %v1528 = vadd.f32 %v1427, %v1527
    %1529 = vdwg.mxu0
    %1530 = vmatpush.msra.mxu0 %v1358
    %1531 = vmatpush.msra.mxu0 %v1356
    %1532 = vmatpush.msra.mxu0 %v1354
    %1533 = vmatpush.msra.mxu0 %v1352
    %1534 = vmatpush.msra.mxu0 %v1350
    %1535 = vmatpush.msra.mxu0 %v1348
    %1536 = vmatpush.msra.mxu0 %v1346
    %1537 = vmatpush.msra.mxu0 %v1344
    %1538 = vmatpush.msra.mxu0 %v1342
    %1539 = vmatpush.msra.mxu0 %v1340
    %1540 = vmatpush.msra.mxu0 %v1338
    %1541 = vmatpush.msra.mxu0 %v1336
    %1542 = vmatpush.msra.mxu0 %v1334
    %1543 = vmatpush.msra.mxu0 %v1332
    %1544 = vmatpush.msra.mxu0 %v1330
    %1545 = vmatpush.msra.mxu0 %v1328
    %1546 = vmatmul.f32.gmra.mxu0 %v1291
    %v1547 = vpop.f32.mrf.mxu0
    %v1548 = vadd.f32 %v1528, %v1547
    %1549 = vdwg.mxu0
    %1550 = vmatpush.msra.mxu0 %v1390
    %1551 = vmatpush.msra.mxu0 %v1388
    %1552 = vmatpush.msra.mxu0 %v1386
    %1553 = vmatpush.msra.mxu0 %v1384
    %1554 = vmatpush.msra.mxu0 %v1382
    %1555 = vmatpush.msra.mxu0 %v1380
    %1556 = vmatpush.msra.mxu0 %v1378
    %1557 = vmatpush.msra.mxu0 %v1376
    %1558 = vmatpush.msra.mxu0 %v1374
    %1559 = vmatpush.msra.mxu0 %v1372
    %1560 = vmatpush.msra.mxu0 %v1370
    %1561 = vmatpush.msra.mxu0 %v1368
    %1562 = vmatpush.msra.mxu0 %v1366
    %1563 = vmatpush.msra.mxu0 %v1364
    %1564 = vmatpush.msra.mxu0 %v1362
    %1565 = vmatpush.msra.mxu0 %v1360
    %1566 = vmatmul.f32.gmra.mxu0 %v1292
    %v1567 = vpop.f32.mrf.mxu0
    %v1568 = vadd.f32 %v1548, %v1567
    %1569 = vdwg.mxu0
    %1570 = vmatpush.msra.mxu0 %v1422
    %1571 = vmatpush.msra.mxu0 %v1420
    %1572 = vmatpush.msra.mxu0 %v1418
    %1573 = vmatpush.msra.mxu0 %v1416
    %1574 = vmatpush.msra.mxu0 %v1414
    %1575 = vmatpush.msra.mxu0 %v1412
    %1576 = vmatpush.msra.mxu0 %v1410
    %1577 = vmatpush.msra.mxu0 %v1408
    %1578 = vmatpush.msra.mxu0 %v1406
    %1579 = vmatpush.msra.mxu0 %v1404
    %1580 = vmatpush.msra.mxu0 %v1402
    %1581 = vmatpush.msra.mxu0 %v1400
    %1582 = vmatpush.msra.mxu0 %v1398
    %1583 = vmatpush.msra.mxu0 %v1396
    %1584 = vmatpush.msra.mxu0 %v1394
    %1585 = vmatpush.msra.mxu0 %v1392
    %1586 = vmatmul.f32.gmra.mxu0 %v1293
    %v1587 = vpop.f32.mrf.mxu0
    %v1588 = vadd.f32 %v1568, %v1587
    %1589 = vdwg.mxu0
    %v1590 = vld [vmem:[%s5] sm:$0xff]
    %v1591 = vld [vmem:[%s5 + $0x8] sm:$0xff]
    %v1592 = vld [vmem:[%s5 + $0x10] sm:$0xff]
    %v1593 = vld [vmem:[%s5 + $0x18] sm:$0xff]
    %v1594 = vld [vmem:[%s5 + $0x20] sm:$0xff]
    %v1595 = vld [vmem:[%s5 + $0x28] sm:$0xff]
    %v1596 = vld [vmem:[%s5 + $0x30] sm:$0xff]
    %v1597 = vld [vmem:[%s5 + $0x38] sm:$0xff]
    %v1598 = vld [vmem:[%s5 + $0x40] sm:$0xff]
    %v1599 = vld [vmem:[%s5 + $0x48] sm:$0xff]
    %v1600 = vld [vmem:[%s5 + $0x50] sm:$0xff]
    %v1601 = vld [vmem:[%s5 + $0x58] sm:$0xff]
    %v1602 = vld [vmem:[%s5 + $0x60] sm:$0xff]
    %v1603 = vld [vmem:[%s5 + $0x68] sm:$0xff]
    %v1604 = vld [vmem:[%s5 + $0x70] sm:$0xff]
    %v1605 = vld [vmem:[%s5 + $0x78] sm:$0xff]
    %v1606 = vld [vmem:[%s5 + $0x80] sm:$0xff]
    %v1607 = vld [vmem:[%s5 + $0x88] sm:$0xff]
    %v1608 = vld [vmem:[%s5 + $0x90] sm:$0xff]
    %v1609 = vld [vmem:[%s5 + $0x98] sm:$0xff]
    %v1610 = vld [vmem:[%s5 + $0xa0] sm:$0xff]
    %v1611 = vld [vmem:[%s5 + $0xa8] sm:$0xff]
    %v1612 = vld [vmem:[%s5 + $0xb0] sm:$0xff]
    %v1613 = vld [vmem:[%s5 + $0xb8] sm:$0xff]
    %v1614 = vld [vmem:[%s5 + $0xc0] sm:$0xff]
    %v1615 = vld [vmem:[%s5 + $0xc8] sm:$0xff]
    %v1616 = vld [vmem:[%s5 + $0xd0] sm:$0xff]
    %v1617 = vld [vmem:[%s5 + $0xd8] sm:$0xff]
    %v1618 = vld [vmem:[%s5 + $0xe0] sm:$0xff]
    %v1619 = vld [vmem:[%s5 + $0xe8] sm:$0xff]
    %v1620 = vld [vmem:[%s5 + $0xf0] sm:$0xff]
    %v1621 = vld [vmem:[%s5 + $0xf8] sm:$0xff]
    %v1622 = vld [vmem:[%s5 + $0x100] sm:$0xff]
    %v1623 = vld [vmem:[%s5 + $0x108] sm:$0xff]
    %v1624 = vld [vmem:[%s5 + $0x110] sm:$0xff]
    %v1625 = vld [vmem:[%s5 + $0x118] sm:$0xff]
    %v1626 = vld [vmem:[%s5 + $0x120] sm:$0xff]
    %v1627 = vld [vmem:[%s5 + $0x128] sm:$0xff]
    %v1628 = vld [vmem:[%s5 + $0x130] sm:$0xff]
    %v1629 = vld [vmem:[%s5 + $0x138] sm:$0xff]
    %v1630 = vld [vmem:[%s5 + $0x140] sm:$0xff]
    %v1631 = vld [vmem:[%s5 + $0x148] sm:$0xff]
    %v1632 = vld [vmem:[%s5 + $0x150] sm:$0xff]
    %v1633 = vld [vmem:[%s5 + $0x158] sm:$0xff]
    %v1634 = vld [vmem:[%s5 + $0x160] sm:$0xff]
    %v1635 = vld [vmem:[%s5 + $0x168] sm:$0xff]
    %v1636 = vld [vmem:[%s5 + $0x170] sm:$0xff]
    %v1637 = vld [vmem:[%s5 + $0x178] sm:$0xff]
    %v1638 = vld [vmem:[%s5 + $0x180] sm:$0xff]
    %v1639 = vld [vmem:[%s5 + $0x188] sm:$0xff]
    %v1640 = vld [vmem:[%s5 + $0x190] sm:$0xff]
    %v1641 = vld [vmem:[%s5 + $0x198] sm:$0xff]
    %v1642 = vld [vmem:[%s5 + $0x1a0] sm:$0xff]
    %v1643 = vld [vmem:[%s5 + $0x1a8] sm:$0xff]
    %v1644 = vld [vmem:[%s5 + $0x1b0] sm:$0xff]
    %v1645 = vld [vmem:[%s5 + $0x1b8] sm:$0xff]
    %v1646 = vld [vmem:[%s5 + $0x1c0] sm:$0xff]
    %v1647 = vld [vmem:[%s5 + $0x1c8] sm:$0xff]
    %v1648 = vld [vmem:[%s5 + $0x1d0] sm:$0xff]
    %v1649 = vld [vmem:[%s5 + $0x1d8] sm:$0xff]
    %v1650 = vld [vmem:[%s5 + $0x1e0] sm:$0xff]
    %v1651 = vld [vmem:[%s5 + $0x1e8] sm:$0xff]
    %v1652 = vld [vmem:[%s5 + $0x1f0] sm:$0xff]
    %v1653 = vld [vmem:[%s5 + $0x1f8] sm:$0xff]
    %s1654 = scalar_lea.vmem %s2, 4
    %v1655 = vld [vmem:[%s1654] ss:$8 sm:$0x3]
    %v1657 = vperm.slane %v1655, 0
    %v1658 = vperm.slane %v1655, 1
    %1661 = vmatpush.msra.mxu0 %v1620
    %1662 = vmatpush.msra.mxu0 %v1618
    %1663 = vmatpush.msra.mxu0 %v1616
    %1664 = vmatpush.msra.mxu0 %v1614
    %1665 = vmatpush.msra.mxu0 %v1612
    %1666 = vmatpush.msra.mxu0 %v1610
    %1667 = vmatpush.msra.mxu0 %v1608
    %1668 = vmatpush.msra.mxu0 %v1606
    %1669 = vmatpush.msra.mxu0 %v1604
    %1670 = vmatpush.msra.mxu0 %v1602
    %1671 = vmatpush.msra.mxu0 %v1600
    %1672 = vmatpush.msra.mxu0 %v1598
    %1673 = vmatpush.msra.mxu0 %v1596
    %1674 = vmatpush.msra.mxu0 %v1594
    %1675 = vmatpush.msra.mxu0 %v1592
    %1676 = vmatpush.msra.mxu0 %v1590
    %1677 = vmatmul.f32.gmra.mxu0 %v1508
    %v1678 = vpop.f32.mrf.mxu0
    %v1679 = vadd.f32 %v1657, %v1678
    %1680 = vdwg.mxu0
    %1681 = vmatpush.msra.mxu0 %v1652
    %1682 = vmatpush.msra.mxu0 %v1650
    %1683 = vmatpush.msra.mxu0 %v1648
    %1684 = vmatpush.msra.mxu0 %v1646
    %1685 = vmatpush.msra.mxu0 %v1644
    %1686 = vmatpush.msra.mxu0 %v1642
    %1687 = vmatpush.msra.mxu0 %v1640
    %1688 = vmatpush.msra.mxu0 %v1638
    %1689 = vmatpush.msra.mxu0 %v1636
    %1690 = vmatpush.msra.mxu0 %v1634
    %1691 = vmatpush.msra.mxu0 %v1632
    %1692 = vmatpush.msra.mxu0 %v1630
    %1693 = vmatpush.msra.mxu0 %v1628
    %1694 = vmatpush.msra.mxu0 %v1626
    %1695 = vmatpush.msra.mxu0 %v1624
    %1696 = vmatpush.msra.mxu0 %v1622
    %1697 = vmatmul.f32.gmra.mxu0 %v1588
    %v1698 = vpop.f32.mrf.mxu0
    %v1699 = vadd.f32 %v1679, %v1698
    %1700 = vdwg.mxu0
    %1701 = vmatpush.msra.mxu0 %v1621
    %1702 = vmatpush.msra.mxu0 %v1619
    %1703 = vmatpush.msra.mxu0 %v1617
    %1704 = vmatpush.msra.mxu0 %v1615
    %1705 = vmatpush.msra.mxu0 %v1613
    %1706 = vmatpush.msra.mxu0 %v1611
    %1707 = vmatpush.msra.mxu0 %v1609
    %1708 = vmatpush.msra.mxu0 %v1607
    %1709 = vmatpush.msra.mxu0 %v1605
    %1710 = vmatpush.msra.mxu0 %v1603
    %1711 = vmatpush.msra.mxu0 %v1601
    %1712 = vmatpush.msra.mxu0 %v1599
    %1713 = vmatpush.msra.mxu0 %v1597
    %1714 = vmatpush.msra.mxu0 %v1595
    %1715 = vmatpush.msra.mxu0 %v1593
    %1716 = vmatpush.msra.mxu0 %v1591
    %1717 = vmatmul.f32.gmra.mxu0 %v1508
    %v1718 = vpop.f32.mrf.mxu0
    %v1719 = vadd.f32 %v1658, %v1718
    %1720 = vdwg.mxu0
    %1721 = vmatpush.msra.mxu0 %v1653
    %1722 = vmatpush.msra.mxu0 %v1651
    %1723 = vmatpush.msra.mxu0 %v1649
    %1724 = vmatpush.msra.mxu0 %v1647
    %1725 = vmatpush.msra.mxu0 %v1645
    %1726 = vmatpush.msra.mxu0 %v1643
    %1727 = vmatpush.msra.mxu0 %v1641
    %1728 = vmatpush.msra.mxu0 %v1639
    %1729 = vmatpush.msra.mxu0 %v1637
    %1730 = vmatpush.msra.mxu0 %v1635
    %1731 = vmatpush.msra.mxu0 %v1633
    %1732 = vmatpush.msra.mxu0 %v1631
    %1733 = vmatpush.msra.mxu0 %v1629
    %1734 = vmatpush.msra.mxu0 %v1627
    %1735 = vmatpush.msra.mxu0 %v1625
    %1736 = vmatpush.msra.mxu0 %v1623
    %1737 = vmatmul.f32.gmra.mxu0 %v1588
    %v1738 = vpop.f32.mrf.mxu0
    %v1739 = vadd.f32 %v1719, %v1738
    %1740 = vdwg.mxu0
    %v1741 = vadd.f32 %v763, %v1699
    %v1742 = vadd.f32 %v843, %v1739
    %vm1743 = vcmask 1041408
    %v1744 = vsel %vm1743, %v1741, 0.0
    %v1745 = vsel %vm1743, %v1742, 0.0
    %v1746 = vadd.f32 %v1744, %v1745
    %1747 = vadd.xlane.f32.xlu0 %v1746
    %v1748 = vpop.xlane.xlu0 %1747
    %v1749 = vrcp.pop 256.0
    %v1750 = vmul.f32 256.0, %v1749
    %v1751 = vsub.f32 1.0, %v1750
    %v1752 = vmul.f32 %v1749, %v1751
    %v1753 = vadd.f32 %v1749, %v1752
    %vm1754 = vweird.f32 %v1749
    %v1755 = vsel %vm1754, %v1749, %v1753
    %v1756 = vmul.f32 %v1748, %v1755
    %v1757 = vsub.f32 %v1741, %v1756
    %v1758 = vsub.f32 %v1742, %v1756
    %v1759 = vmul.f32 %v1757, %v1757
    %v1760 = vmul.f32 %v1758, %v1758
    %v1761 = vsel %vm1743, %v1759, 0.0
    %v1762 = vsel %vm1743, %v1760, 0.0
    %v1763 = vadd.f32 %v1761, %v1762
    %1764 = vadd.xlane.f32.xlu0 %v1763
    %v1765 = vpop.xlane.xlu0 %1764
    %v1766 = vmul.f32 %v1765, %v1755
    %v1767 = vadd.f32 %v1766, 1e-05
    %v1768 = vrsqrt.pop %v1767
    %v1769 = vmul.f32 %v1768, %v1767
    %v1770 = vmul.f32 %v1769, %v1768
    %v1771 = vmul.f32 0.5, %v1770
    %v1772 = vsub.f32 1.5, %v1771
    %v1773 = vmul.f32 %v1768, %v1772
    %vm1774 = vweird.f32 %v1767
    %vm1775 = vweird.f32 %v1768
    %vm1776 = vmor %vm1774, %vm1775
    %v1777 = vsel %vm1776, %v1768, %v1773
    %v1778 = vmul.f32 %v1757, %v1777
    %v1779 = vmul.f32 %v1758, %v1777
    %s1780 = scalar_lea.vmem %s2, 5
    %v1781 = vld [vmem:[%s1780] ss:$8 sm:$0x3]
    %v1783 = vperm.slane %v1781, 0
    %v1784 = vperm.slane %v1781, 1
    %v1787 = vmul.f32 %v1778, %v1783
    %v1788 = vmul.f32 %v1779, %v1784
    %s1789 = scalar_lea.vmem %s2, 6
    %v1790 = vld [vmem:[%s1789] ss:$8 sm:$0x3]
    %v1792 = vperm.slane %v1790, 0
    %v1793 = vperm.slane %v1790, 1
    %v1796 = vadd.f32 %v1787, %v1792
    %v1797 = vadd.f32 %v1788, %v1793
    %v1798 = vld [vmem:[#allocation5] sm:$0xff]
    %v1799 = vld [vmem:[#allocation5 + $0x8] sm:$0xff]
    %v1800 = vld [vmem:[#allocation5 + $0x10] sm:$0xff]
    %v1801 = vld [vmem:[#allocation5 + $0x18] sm:$0xff]
    %v1802 = vld [vmem:[#allocation5 + $0x20] sm:$0xff]
    %v1803 = vld [vmem:[#allocation5 + $0x28] sm:$0xff]
    %v1804 = vld [vmem:[#allocation5 + $0x30] sm:$0xff]
    %v1805 = vld [vmem:[#allocation5 + $0x38] sm:$0xff]
    %v1806 = vld [vmem:[#allocation5 + $0x40] sm:$0xff]
    %v1807 = vld [vmem:[#allocation5 + $0x48] sm:$0xff]
    %v1808 = vld [vmem:[#allocation5 + $0x50] sm:$0xff]
    %v1809 = vld [vmem:[#allocation5 + $0x58] sm:$0xff]
    %v1810 = vld [vmem:[#allocation5 + $0x60] sm:$0xff]
    %v1811 = vld [vmem:[#allocation5 + $0x68] sm:$0xff]
    %v1812 = vld [vmem:[#allocation5 + $0x70] sm:$0xff]
    %v1813 = vld [vmem:[#allocation5 + $0x78] sm:$0xff]
    %v1814 = vld [vmem:[#allocation5 + $0x80] sm:$0xff]
    %v1815 = vld [vmem:[#allocation5 + $0x88] sm:$0xff]
    %v1816 = vld [vmem:[#allocation5 + $0x90] sm:$0xff]
    %v1817 = vld [vmem:[#allocation5 + $0x98] sm:$0xff]
    %v1818 = vld [vmem:[#allocation5 + $0xa0] sm:$0xff]
    %v1819 = vld [vmem:[#allocation5 + $0xa8] sm:$0xff]
    %v1820 = vld [vmem:[#allocation5 + $0xb0] sm:$0xff]
    %v1821 = vld [vmem:[#allocation5 + $0xb8] sm:$0xff]
    %v1822 = vld [vmem:[#allocation5 + $0xc0] sm:$0xff]
    %v1823 = vld [vmem:[#allocation5 + $0xc8] sm:$0xff]
    %v1824 = vld [vmem:[#allocation5 + $0xd0] sm:$0xff]
    %v1825 = vld [vmem:[#allocation5 + $0xd8] sm:$0xff]
    %v1826 = vld [vmem:[#allocation5 + $0xe0] sm:$0xff]
    %v1827 = vld [vmem:[#allocation5 + $0xe8] sm:$0xff]
    %v1828 = vld [vmem:[#allocation5 + $0xf0] sm:$0xff]
    %v1829 = vld [vmem:[#allocation5 + $0xf8] sm:$0xff]
    %v1830 = vld [vmem:[#allocation5 + $0x100] sm:$0xff]
    %v1831 = vld [vmem:[#allocation5 + $0x108] sm:$0xff]
    %v1832 = vld [vmem:[#allocation5 + $0x110] sm:$0xff]
    %v1833 = vld [vmem:[#allocation5 + $0x118] sm:$0xff]
    %v1834 = vld [vmem:[#allocation5 + $0x120] sm:$0xff]
    %v1835 = vld [vmem:[#allocation5 + $0x128] sm:$0xff]
    %v1836 = vld [vmem:[#allocation5 + $0x130] sm:$0xff]
    %v1837 = vld [vmem:[#allocation5 + $0x138] sm:$0xff]
    %v1838 = vld [vmem:[#allocation5 + $0x140] sm:$0xff]
    %v1839 = vld [vmem:[#allocation5 + $0x148] sm:$0xff]
    %v1840 = vld [vmem:[#allocation5 + $0x150] sm:$0xff]
    %v1841 = vld [vmem:[#allocation5 + $0x158] sm:$0xff]
    %v1842 = vld [vmem:[#allocation5 + $0x160] sm:$0xff]
    %v1843 = vld [vmem:[#allocation5 + $0x168] sm:$0xff]
    %v1844 = vld [vmem:[#allocation5 + $0x170] sm:$0xff]
    %v1845 = vld [vmem:[#allocation5 + $0x178] sm:$0xff]
    %v1846 = vld [vmem:[#allocation5 + $0x180] sm:$0xff]
    %v1847 = vld [vmem:[#allocation5 + $0x188] sm:$0xff]
    %v1848 = vld [vmem:[#allocation5 + $0x190] sm:$0xff]
    %v1849 = vld [vmem:[#allocation5 + $0x198] sm:$0xff]
    %v1850 = vld [vmem:[#allocation5 + $0x1a0] sm:$0xff]
    %v1851 = vld [vmem:[#allocation5 + $0x1a8] sm:$0xff]
    %v1852 = vld [vmem:[#allocation5 + $0x1b0] sm:$0xff]
    %v1853 = vld [vmem:[#allocation5 + $0x1b8] sm:$0xff]
    %v1854 = vld [vmem:[#allocation5 + $0x1c0] sm:$0xff]
    %v1855 = vld [vmem:[#allocation5 + $0x1c8] sm:$0xff]
    %v1856 = vld [vmem:[#allocation5 + $0x1d0] sm:$0xff]
    %v1857 = vld [vmem:[#allocation5 + $0x1d8] sm:$0xff]
    %v1858 = vld [vmem:[#allocation5 + $0x1e0] sm:$0xff]
    %v1859 = vld [vmem:[#allocation5 + $0x1e8] sm:$0xff]
    %v1860 = vld [vmem:[#allocation5 + $0x1f0] sm:$0xff]
    %v1861 = vld [vmem:[#allocation5 + $0x1f8] sm:$0xff]
    %v1862 = vld [vmem:[#allocation5 + $0x200] sm:$0xff]
    %v1863 = vld [vmem:[#allocation5 + $0x208] sm:$0xff]
    %v1864 = vld [vmem:[#allocation5 + $0x210] sm:$0xff]
    %v1865 = vld [vmem:[#allocation5 + $0x218] sm:$0xff]
    %v1866 = vld [vmem:[#allocation5 + $0x220] sm:$0xff]
    %v1867 = vld [vmem:[#allocation5 + $0x228] sm:$0xff]
    %v1868 = vld [vmem:[#allocation5 + $0x230] sm:$0xff]
    %v1869 = vld [vmem:[#allocation5 + $0x238] sm:$0xff]
    %v1870 = vld [vmem:[#allocation5 + $0x240] sm:$0xff]
    %v1871 = vld [vmem:[#allocation5 + $0x248] sm:$0xff]
    %v1872 = vld [vmem:[#allocation5 + $0x250] sm:$0xff]
    %v1873 = vld [vmem:[#allocation5 + $0x258] sm:$0xff]
    %v1874 = vld [vmem:[#allocation5 + $0x260] sm:$0xff]
    %v1875 = vld [vmem:[#allocation5 + $0x268] sm:$0xff]
    %v1876 = vld [vmem:[#allocation5 + $0x270] sm:$0xff]
    %v1877 = vld [vmem:[#allocation5 + $0x278] sm:$0xff]
    %v1878 = vld [vmem:[#allocation5 + $0x280] sm:$0xff]
    %v1879 = vld [vmem:[#allocation5 + $0x288] sm:$0xff]
    %v1880 = vld [vmem:[#allocation5 + $0x290] sm:$0xff]
    %v1881 = vld [vmem:[#allocation5 + $0x298] sm:$0xff]
    %v1882 = vld [vmem:[#allocation5 + $0x2a0] sm:$0xff]
    %v1883 = vld [vmem:[#allocation5 + $0x2a8] sm:$0xff]
    %v1884 = vld [vmem:[#allocation5 + $0x2b0] sm:$0xff]
    %v1885 = vld [vmem:[#allocation5 + $0x2b8] sm:$0xff]
    %v1886 = vld [vmem:[#allocation5 + $0x2c0] sm:$0xff]
    %v1887 = vld [vmem:[#allocation5 + $0x2c8] sm:$0xff]
    %v1888 = vld [vmem:[#allocation5 + $0x2d0] sm:$0xff]
    %v1889 = vld [vmem:[#allocation5 + $0x2d8] sm:$0xff]
    %v1890 = vld [vmem:[#allocation5 + $0x2e0] sm:$0xff]
    %v1891 = vld [vmem:[#allocation5 + $0x2e8] sm:$0xff]
    %v1892 = vld [vmem:[#allocation5 + $0x2f0] sm:$0xff]
    %v1893 = vld [vmem:[#allocation5 + $0x2f8] sm:$0xff]
    %v1894 = vld [vmem:[#allocation5 + $0x300] sm:$0xff]
    %v1895 = vld [vmem:[#allocation5 + $0x308] sm:$0xff]
    %v1896 = vld [vmem:[#allocation5 + $0x310] sm:$0xff]
    %v1897 = vld [vmem:[#allocation5 + $0x318] sm:$0xff]
    %v1898 = vld [vmem:[#allocation5 + $0x320] sm:$0xff]
    %v1899 = vld [vmem:[#allocation5 + $0x328] sm:$0xff]
    %v1900 = vld [vmem:[#allocation5 + $0x330] sm:$0xff]
    %v1901 = vld [vmem:[#allocation5 + $0x338] sm:$0xff]
    %v1902 = vld [vmem:[#allocation5 + $0x340] sm:$0xff]
    %v1903 = vld [vmem:[#allocation5 + $0x348] sm:$0xff]
    %v1904 = vld [vmem:[#allocation5 + $0x350] sm:$0xff]
    %v1905 = vld [vmem:[#allocation5 + $0x358] sm:$0xff]
    %v1906 = vld [vmem:[#allocation5 + $0x360] sm:$0xff]
    %v1907 = vld [vmem:[#allocation5 + $0x368] sm:$0xff]
    %v1908 = vld [vmem:[#allocation5 + $0x370] sm:$0xff]
    %v1909 = vld [vmem:[#allocation5 + $0x378] sm:$0xff]
    %v1910 = vld [vmem:[#allocation5 + $0x380] sm:$0xff]
    %v1911 = vld [vmem:[#allocation5 + $0x388] sm:$0xff]
    %v1912 = vld [vmem:[#allocation5 + $0x390] sm:$0xff]
    %v1913 = vld [vmem:[#allocation5 + $0x398] sm:$0xff]
    %v1914 = vld [vmem:[#allocation5 + $0x3a0] sm:$0xff]
    %v1915 = vld [vmem:[#allocation5 + $0x3a8] sm:$0xff]
    %v1916 = vld [vmem:[#allocation5 + $0x3b0] sm:$0xff]
    %v1917 = vld [vmem:[#allocation5 + $0x3b8] sm:$0xff]
    %v1918 = vld [vmem:[#allocation5 + $0x3c0] sm:$0xff]
    %v1919 = vld [vmem:[#allocation5 + $0x3c8] sm:$0xff]
    %v1920 = vld [vmem:[#allocation5 + $0x3d0] sm:$0xff]
    %v1921 = vld [vmem:[#allocation5 + $0x3d8] sm:$0xff]
    %v1922 = vld [vmem:[#allocation5 + $0x3e0] sm:$0xff]
    %v1923 = vld [vmem:[#allocation5 + $0x3e8] sm:$0xff]
    %v1924 = vld [vmem:[#allocation5 + $0x3f0] sm:$0xff]
    %v1925 = vld [vmem:[#allocation5 + $0x3f8] sm:$0xff]
    %s1926 = scalar_lea.vmem %s2, 7
    %v1927 = vld [vmem:[%s1926] ss:$8 sm:$0xf]
    %v1929 = vperm.slane %v1927, 0
    %v1930 = vperm.slane %v1927, 1
    %v1931 = vperm.slane %v1927, 2
    %v1932 = vperm.slane %v1927, 3
    %1937 = vmatpush.msra.mxu0 %v1858
    %1938 = vmatpush.msra.mxu0 %v1854
    %1939 = vmatpush.msra.mxu0 %v1850
    %1940 = vmatpush.msra.mxu0 %v1846
    %1941 = vmatpush.msra.mxu0 %v1842
    %1942 = vmatpush.msra.mxu0 %v1838
    %1943 = vmatpush.msra.mxu0 %v1834
    %1944 = vmatpush.msra.mxu0 %v1830
    %1945 = vmatpush.msra.mxu0 %v1826
    %1946 = vmatpush.msra.mxu0 %v1822
    %1947 = vmatpush.msra.mxu0 %v1818
    %1948 = vmatpush.msra.mxu0 %v1814
    %1949 = vmatpush.msra.mxu0 %v1810
    %1950 = vmatpush.msra.mxu0 %v1806
    %1951 = vmatpush.msra.mxu0 %v1802
    %1952 = vmatpush.msra.mxu0 %v1798
    %1953 = vmatmul.f32.gmra.mxu0 %v1796
    %v1954 = vpop.f32.mrf.mxu0
    %v1955 = vadd.f32 %v1929, %v1954
    %1956 = vdwg.mxu0
    %1957 = vmatpush.msra.mxu0 %v1922
    %1958 = vmatpush.msra.mxu0 %v1918
    %1959 = vmatpush.msra.mxu0 %v1914
    %1960 = vmatpush.msra.mxu0 %v1910
    %1961 = vmatpush.msra.mxu0 %v1906
    %1962 = vmatpush.msra.mxu0 %v1902
    %1963 = vmatpush.msra.mxu0 %v1898
    %1964 = vmatpush.msra.mxu0 %v1894
    %1965 = vmatpush.msra.mxu0 %v1890
    %1966 = vmatpush.msra.mxu0 %v1886
    %1967 = vmatpush.msra.mxu0 %v1882
    %1968 = vmatpush.msra.mxu0 %v1878
    %1969 = vmatpush.msra.mxu0 %v1874
    %1970 = vmatpush.msra.mxu0 %v1870
    %1971 = vmatpush.msra.mxu0 %v1866
    %1972 = vmatpush.msra.mxu0 %v1862
    %1973 = vmatmul.f32.gmra.mxu0 %v1797
    %v1974 = vpop.f32.mrf.mxu0
    %v1975 = vadd.f32 %v1955, %v1974
    %1976 = vdwg.mxu0
    %1977 = vmatpush.msra.mxu0 %v1859
    %1978 = vmatpush.msra.mxu0 %v1855
    %1979 = vmatpush.msra.mxu0 %v1851
    %1980 = vmatpush.msra.mxu0 %v1847
    %1981 = vmatpush.msra.mxu0 %v1843
    %1982 = vmatpush.msra.mxu0 %v1839
    %1983 = vmatpush.msra.mxu0 %v1835
    %1984 = vmatpush.msra.mxu0 %v1831
    %1985 = vmatpush.msra.mxu0 %v1827
    %1986 = vmatpush.msra.mxu0 %v1823
    %1987 = vmatpush.msra.mxu0 %v1819
    %1988 = vmatpush.msra.mxu0 %v1815
    %1989 = vmatpush.msra.mxu0 %v1811
    %1990 = vmatpush.msra.mxu0 %v1807
    %1991 = vmatpush.msra.mxu0 %v1803
    %1992 = vmatpush.msra.mxu0 %v1799
    %1993 = vmatmul.f32.gmra.mxu0 %v1796
    %v1994 = vpop.f32.mrf.mxu0
    %v1995 = vadd.f32 %v1930, %v1994
    %1996 = vdwg.mxu0
    %1997 = vmatpush.msra.mxu0 %v1923
    %1998 = vmatpush.msra.mxu0 %v1919
    %1999 = vmatpush.msra.mxu0 %v1915
    %2000 = vmatpush.msra.mxu0 %v1911
    %2001 = vmatpush.msra.mxu0 %v1907
    %2002 = vmatpush.msra.mxu0 %v1903
    %2003 = vmatpush.msra.mxu0 %v1899
    %2004 = vmatpush.msra.mxu0 %v1895
    %2005 = vmatpush.msra.mxu0 %v1891
    %2006 = vmatpush.msra.mxu0 %v1887
    %2007 = vmatpush.msra.mxu0 %v1883
    %2008 = vmatpush.msra.mxu0 %v1879
    %2009 = vmatpush.msra.mxu0 %v1875
    %2010 = vmatpush.msra.mxu0 %v1871
    %2011 = vmatpush.msra.mxu0 %v1867
    %2012 = vmatpush.msra.mxu0 %v1863
    %2013 = vmatmul.f32.gmra.mxu0 %v1797
    %v2014 = vpop.f32.mrf.mxu0
    %v2015 = vadd.f32 %v1995, %v2014
    %2016 = vdwg.mxu0
    %2017 = vmatpush.msra.mxu0 %v1860
    %2018 = vmatpush.msra.mxu0 %v1856
    %2019 = vmatpush.msra.mxu0 %v1852
    %2020 = vmatpush.msra.mxu0 %v1848
    %2021 = vmatpush.msra.mxu0 %v1844
    %2022 = vmatpush.msra.mxu0 %v1840
    %2023 = vmatpush.msra.mxu0 %v1836
    %2024 = vmatpush.msra.mxu0 %v1832
    %2025 = vmatpush.msra.mxu0 %v1828
    %2026 = vmatpush.msra.mxu0 %v1824
    %2027 = vmatpush.msra.mxu0 %v1820
    %2028 = vmatpush.msra.mxu0 %v1816
    %2029 = vmatpush.msra.mxu0 %v1812
    %2030 = vmatpush.msra.mxu0 %v1808
    %2031 = vmatpush.msra.mxu0 %v1804
    %2032 = vmatpush.msra.mxu0 %v1800
    %2033 = vmatmul.f32.gmra.mxu0 %v1796
    %v2034 = vpop.f32.mrf.mxu0
    %v2035 = vadd.f32 %v1931, %v2034
    %2036 = vdwg.mxu0
    %2037 = vmatpush.msra.mxu0 %v1924
    %2038 = vmatpush.msra.mxu0 %v1920
    %2039 = vmatpush.msra.mxu0 %v1916
    %2040 = vmatpush.msra.mxu0 %v1912
    %2041 = vmatpush.msra.mxu0 %v1908
    %2042 = vmatpush.msra.mxu0 %v1904
    %2043 = vmatpush.msra.mxu0 %v1900
    %2044 = vmatpush.msra.mxu0 %v1896
    %2045 = vmatpush.msra.mxu0 %v1892
    %2046 = vmatpush.msra.mxu0 %v1888
    %2047 = vmatpush.msra.mxu0 %v1884
    %2048 = vmatpush.msra.mxu0 %v1880
    %2049 = vmatpush.msra.mxu0 %v1876
    %2050 = vmatpush.msra.mxu0 %v1872
    %2051 = vmatpush.msra.mxu0 %v1868
    %2052 = vmatpush.msra.mxu0 %v1864
    %2053 = vmatmul.f32.gmra.mxu0 %v1797
    %v2054 = vpop.f32.mrf.mxu0
    %v2055 = vadd.f32 %v2035, %v2054
    %2056 = vdwg.mxu0
    %2057 = vmatpush.msra.mxu0 %v1861
    %2058 = vmatpush.msra.mxu0 %v1857
    %2059 = vmatpush.msra.mxu0 %v1853
    %2060 = vmatpush.msra.mxu0 %v1849
    %2061 = vmatpush.msra.mxu0 %v1845
    %2062 = vmatpush.msra.mxu0 %v1841
    %2063 = vmatpush.msra.mxu0 %v1837
    %2064 = vmatpush.msra.mxu0 %v1833
    %2065 = vmatpush.msra.mxu0 %v1829
    %2066 = vmatpush.msra.mxu0 %v1825
    %2067 = vmatpush.msra.mxu0 %v1821
    %2068 = vmatpush.msra.mxu0 %v1817
    %2069 = vmatpush.msra.mxu0 %v1813
    %2070 = vmatpush.msra.mxu0 %v1809
    %2071 = vmatpush.msra.mxu0 %v1805
    %2072 = vmatpush.msra.mxu0 %v1801
    %2073 = vmatmul.f32.gmra.mxu0 %v1796
    %v2074 = vpop.f32.mrf.mxu0
    %v2075 = vadd.f32 %v1932, %v2074
    %2076 = vdwg.mxu0
    %2077 = vmatpush.msra.mxu0 %v1925
    %2078 = vmatpush.msra.mxu0 %v1921
    %2079 = vmatpush.msra.mxu0 %v1917
    %2080 = vmatpush.msra.mxu0 %v1913
    %2081 = vmatpush.msra.mxu0 %v1909
    %2082 = vmatpush.msra.mxu0 %v1905
    %2083 = vmatpush.msra.mxu0 %v1901
    %2084 = vmatpush.msra.mxu0 %v1897
    %2085 = vmatpush.msra.mxu0 %v1893
    %2086 = vmatpush.msra.mxu0 %v1889
    %2087 = vmatpush.msra.mxu0 %v1885
    %2088 = vmatpush.msra.mxu0 %v1881
    %2089 = vmatpush.msra.mxu0 %v1877
    %2090 = vmatpush.msra.mxu0 %v1873
    %2091 = vmatpush.msra.mxu0 %v1869
    %2092 = vmatpush.msra.mxu0 %v1865
    %2093 = vmatmul.f32.gmra.mxu0 %v1797
    %v2094 = vpop.f32.mrf.mxu0
    %v2095 = vadd.f32 %v2075, %v2094
    %2096 = vdwg.mxu0
    %v2097 = vmax.f32 %v1975, 0.0
    %v2098 = vmax.f32 %v2015, 0.0
    %v2099 = vmax.f32 %v2055, 0.0
    %v2100 = vmax.f32 %v2095, 0.0
    %v2101 = vld [vmem:[#allocation7] sm:$0xff]
    %v2102 = vld [vmem:[#allocation7 + $0x8] sm:$0xff]
    %v2103 = vld [vmem:[#allocation7 + $0x10] sm:$0xff]
    %v2104 = vld [vmem:[#allocation7 + $0x18] sm:$0xff]
    %v2105 = vld [vmem:[#allocation7 + $0x20] sm:$0xff]
    %v2106 = vld [vmem:[#allocation7 + $0x28] sm:$0xff]
    %v2107 = vld [vmem:[#allocation7 + $0x30] sm:$0xff]
    %v2108 = vld [vmem:[#allocation7 + $0x38] sm:$0xff]
    %v2109 = vld [vmem:[#allocation7 + $0x40] sm:$0xff]
    %v2110 = vld [vmem:[#allocation7 + $0x48] sm:$0xff]
    %v2111 = vld [vmem:[#allocation7 + $0x50] sm:$0xff]
    %v2112 = vld [vmem:[#allocation7 + $0x58] sm:$0xff]
    %v2113 = vld [vmem:[#allocation7 + $0x60] sm:$0xff]
    %v2114 = vld [vmem:[#allocation7 + $0x68] sm:$0xff]
    %v2115 = vld [vmem:[#allocation7 + $0x70] sm:$0xff]
    %v2116 = vld [vmem:[#allocation7 + $0x78] sm:$0xff]
    %v2117 = vld [vmem:[#allocation7 + $0x80] sm:$0xff]
    %v2118 = vld [vmem:[#allocation7 + $0x88] sm:$0xff]
    %v2119 = vld [vmem:[#allocation7 + $0x90] sm:$0xff]
    %v2120 = vld [vmem:[#allocation7 + $0x98] sm:$0xff]
    %v2121 = vld [vmem:[#allocation7 + $0xa0] sm:$0xff]
    %v2122 = vld [vmem:[#allocation7 + $0xa8] sm:$0xff]
    %v2123 = vld [vmem:[#allocation7 + $0xb0] sm:$0xff]
    %v2124 = vld [vmem:[#allocation7 + $0xb8] sm:$0xff]
    %v2125 = vld [vmem:[#allocation7 + $0xc0] sm:$0xff]
    %v2126 = vld [vmem:[#allocation7 + $0xc8] sm:$0xff]
    %v2127 = vld [vmem:[#allocation7 + $0xd0] sm:$0xff]
    %v2128 = vld [vmem:[#allocation7 + $0xd8] sm:$0xff]
    %v2129 = vld [vmem:[#allocation7 + $0xe0] sm:$0xff]
    %v2130 = vld [vmem:[#allocation7 + $0xe8] sm:$0xff]
    %v2131 = vld [vmem:[#allocation7 + $0xf0] sm:$0xff]
    %v2132 = vld [vmem:[#allocation7 + $0xf8] sm:$0xff]
    %v2133 = vld [vmem:[#allocation7 + $0x100] sm:$0xff]
    %v2134 = vld [vmem:[#allocation7 + $0x108] sm:$0xff]
    %v2135 = vld [vmem:[#allocation7 + $0x110] sm:$0xff]
    %v2136 = vld [vmem:[#allocation7 + $0x118] sm:$0xff]
    %v2137 = vld [vmem:[#allocation7 + $0x120] sm:$0xff]
    %v2138 = vld [vmem:[#allocation7 + $0x128] sm:$0xff]
    %v2139 = vld [vmem:[#allocation7 + $0x130] sm:$0xff]
    %v2140 = vld [vmem:[#allocation7 + $0x138] sm:$0xff]
    %v2141 = vld [vmem:[#allocation7 + $0x140] sm:$0xff]
    %v2142 = vld [vmem:[#allocation7 + $0x148] sm:$0xff]
    %v2143 = vld [vmem:[#allocation7 + $0x150] sm:$0xff]
    %v2144 = vld [vmem:[#allocation7 + $0x158] sm:$0xff]
    %v2145 = vld [vmem:[#allocation7 + $0x160] sm:$0xff]
    %v2146 = vld [vmem:[#allocation7 + $0x168] sm:$0xff]
    %v2147 = vld [vmem:[#allocation7 + $0x170] sm:$0xff]
    %v2148 = vld [vmem:[#allocation7 + $0x178] sm:$0xff]
    %v2149 = vld [vmem:[#allocation7 + $0x180] sm:$0xff]
    %v2150 = vld [vmem:[#allocation7 + $0x188] sm:$0xff]
    %v2151 = vld [vmem:[#allocation7 + $0x190] sm:$0xff]
    %v2152 = vld [vmem:[#allocation7 + $0x198] sm:$0xff]
    %v2153 = vld [vmem:[#allocation7 + $0x1a0] sm:$0xff]
    %v2154 = vld [vmem:[#allocation7 + $0x1a8] sm:$0xff]
    %v2155 = vld [vmem:[#allocation7 + $0x1b0] sm:$0xff]
    %v2156 = vld [vmem:[#allocation7 + $0x1b8] sm:$0xff]
    %v2157 = vld [vmem:[#allocation7 + $0x1c0] sm:$0xff]
    %v2158 = vld [vmem:[#allocation7 + $0x1c8] sm:$0xff]
    %v2159 = vld [vmem:[#allocation7 + $0x1d0] sm:$0xff]
    %v2160 = vld [vmem:[#allocation7 + $0x1d8] sm:$0xff]
    %v2161 = vld [vmem:[#allocation7 + $0x1e0] sm:$0xff]
    %v2162 = vld [vmem:[#allocation7 + $0x1e8] sm:$0xff]
    %v2163 = vld [vmem:[#allocation7 + $0x1f0] sm:$0xff]
    %v2164 = vld [vmem:[#allocation7 + $0x1f8] sm:$0xff]
    %v2165 = vld [vmem:[#allocation7 + $0x200] sm:$0xff]
    %v2166 = vld [vmem:[#allocation7 + $0x208] sm:$0xff]
    %v2167 = vld [vmem:[#allocation7 + $0x210] sm:$0xff]
    %v2168 = vld [vmem:[#allocation7 + $0x218] sm:$0xff]
    %v2169 = vld [vmem:[#allocation7 + $0x220] sm:$0xff]
    %v2170 = vld [vmem:[#allocation7 + $0x228] sm:$0xff]
    %v2171 = vld [vmem:[#allocation7 + $0x230] sm:$0xff]
    %v2172 = vld [vmem:[#allocation7 + $0x238] sm:$0xff]
    %v2173 = vld [vmem:[#allocation7 + $0x240] sm:$0xff]
    %v2174 = vld [vmem:[#allocation7 + $0x248] sm:$0xff]
    %v2175 = vld [vmem:[#allocation7 + $0x250] sm:$0xff]
    %v2176 = vld [vmem:[#allocation7 + $0x258] sm:$0xff]
    %v2177 = vld [vmem:[#allocation7 + $0x260] sm:$0xff]
    %v2178 = vld [vmem:[#allocation7 + $0x268] sm:$0xff]
    %v2179 = vld [vmem:[#allocation7 + $0x270] sm:$0xff]
    %v2180 = vld [vmem:[#allocation7 + $0x278] sm:$0xff]
    %v2181 = vld [vmem:[#allocation7 + $0x280] sm:$0xff]
    %v2182 = vld [vmem:[#allocation7 + $0x288] sm:$0xff]
    %v2183 = vld [vmem:[#allocation7 + $0x290] sm:$0xff]
    %v2184 = vld [vmem:[#allocation7 + $0x298] sm:$0xff]
    %v2185 = vld [vmem:[#allocation7 + $0x2a0] sm:$0xff]
    %v2186 = vld [vmem:[#allocation7 + $0x2a8] sm:$0xff]
    %v2187 = vld [vmem:[#allocation7 + $0x2b0] sm:$0xff]
    %v2188 = vld [vmem:[#allocation7 + $0x2b8] sm:$0xff]
    %v2189 = vld [vmem:[#allocation7 + $0x2c0] sm:$0xff]
    %v2190 = vld [vmem:[#allocation7 + $0x2c8] sm:$0xff]
    %v2191 = vld [vmem:[#allocation7 + $0x2d0] sm:$0xff]
    %v2192 = vld [vmem:[#allocation7 + $0x2d8] sm:$0xff]
    %v2193 = vld [vmem:[#allocation7 + $0x2e0] sm:$0xff]
    %v2194 = vld [vmem:[#allocation7 + $0x2e8] sm:$0xff]
    %v2195 = vld [vmem:[#allocation7 + $0x2f0] sm:$0xff]
    %v2196 = vld [vmem:[#allocation7 + $0x2f8] sm:$0xff]
    %v2197 = vld [vmem:[#allocation7 + $0x300] sm:$0xff]
    %v2198 = vld [vmem:[#allocation7 + $0x308] sm:$0xff]
    %v2199 = vld [vmem:[#allocation7 + $0x310] sm:$0xff]
    %v2200 = vld [vmem:[#allocation7 + $0x318] sm:$0xff]
    %v2201 = vld [vmem:[#allocation7 + $0x320] sm:$0xff]
    %v2202 = vld [vmem:[#allocation7 + $0x328] sm:$0xff]
    %v2203 = vld [vmem:[#allocation7 + $0x330] sm:$0xff]
    %v2204 = vld [vmem:[#allocation7 + $0x338] sm:$0xff]
    %v2205 = vld [vmem:[#allocation7 + $0x340] sm:$0xff]
    %v2206 = vld [vmem:[#allocation7 + $0x348] sm:$0xff]
    %v2207 = vld [vmem:[#allocation7 + $0x350] sm:$0xff]
    %v2208 = vld [vmem:[#allocation7 + $0x358] sm:$0xff]
    %v2209 = vld [vmem:[#allocation7 + $0x360] sm:$0xff]
    %v2210 = vld [vmem:[#allocation7 + $0x368] sm:$0xff]
    %v2211 = vld [vmem:[#allocation7 + $0x370] sm:$0xff]
    %v2212 = vld [vmem:[#allocation7 + $0x378] sm:$0xff]
    %v2213 = vld [vmem:[#allocation7 + $0x380] sm:$0xff]
    %v2214 = vld [vmem:[#allocation7 + $0x388] sm:$0xff]
    %v2215 = vld [vmem:[#allocation7 + $0x390] sm:$0xff]
    %v2216 = vld [vmem:[#allocation7 + $0x398] sm:$0xff]
    %v2217 = vld [vmem:[#allocation7 + $0x3a0] sm:$0xff]
    %v2218 = vld [vmem:[#allocation7 + $0x3a8] sm:$0xff]
    %v2219 = vld [vmem:[#allocation7 + $0x3b0] sm:$0xff]
    %v2220 = vld [vmem:[#allocation7 + $0x3b8] sm:$0xff]
    %v2221 = vld [vmem:[#allocation7 + $0x3c0] sm:$0xff]
    %v2222 = vld [vmem:[#allocation7 + $0x3c8] sm:$0xff]
    %v2223 = vld [vmem:[#allocation7 + $0x3d0] sm:$0xff]
    %v2224 = vld [vmem:[#allocation7 + $0x3d8] sm:$0xff]
    %v2225 = vld [vmem:[#allocation7 + $0x3e0] sm:$0xff]
    %v2226 = vld [vmem:[#allocation7 + $0x3e8] sm:$0xff]
    %v2227 = vld [vmem:[#allocation7 + $0x3f0] sm:$0xff]
    %v2228 = vld [vmem:[#allocation7 + $0x3f8] sm:$0xff]
    %s2229 = scalar_lea.vmem %s2, 32
    %v2230 = vld [vmem:[%s2229] ss:$8 sm:$0x3]
    %v2232 = vperm.slane %v2230, 0
    %v2233 = vperm.slane %v2230, 1
    %2236 = vmatpush.msra.mxu0 %v2131
    %2237 = vmatpush.msra.mxu0 %v2129
    %2238 = vmatpush.msra.mxu0 %v2127
    %2239 = vmatpush.msra.mxu0 %v2125
    %2240 = vmatpush.msra.mxu0 %v2123
    %2241 = vmatpush.msra.mxu0 %v2121
    %2242 = vmatpush.msra.mxu0 %v2119
    %2243 = vmatpush.msra.mxu0 %v2117
    %2244 = vmatpush.msra.mxu0 %v2115
    %2245 = vmatpush.msra.mxu0 %v2113
    %2246 = vmatpush.msra.mxu0 %v2111
    %2247 = vmatpush.msra.mxu0 %v2109
    %2248 = vmatpush.msra.mxu0 %v2107
    %2249 = vmatpush.msra.mxu0 %v2105
    %2250 = vmatpush.msra.mxu0 %v2103
    %2251 = vmatpush.msra.mxu0 %v2101
    %2252 = vmatmul.f32.gmra.mxu0 %v2097
    %v2253 = vpop.f32.mrf.mxu0
    %v2254 = vadd.f32 %v2232, %v2253
    %2255 = vdwg.mxu0
    %2256 = vmatpush.msra.mxu0 %v2163
    %2257 = vmatpush.msra.mxu0 %v2161
    %2258 = vmatpush.msra.mxu0 %v2159
    %2259 = vmatpush.msra.mxu0 %v2157
    %2260 = vmatpush.msra.mxu0 %v2155
    %2261 = vmatpush.msra.mxu0 %v2153
    %2262 = vmatpush.msra.mxu0 %v2151
    %2263 = vmatpush.msra.mxu0 %v2149
    %2264 = vmatpush.msra.mxu0 %v2147
    %2265 = vmatpush.msra.mxu0 %v2145
    %2266 = vmatpush.msra.mxu0 %v2143
    %2267 = vmatpush.msra.mxu0 %v2141
    %2268 = vmatpush.msra.mxu0 %v2139
    %2269 = vmatpush.msra.mxu0 %v2137
    %2270 = vmatpush.msra.mxu0 %v2135
    %2271 = vmatpush.msra.mxu0 %v2133
    %2272 = vmatmul.f32.gmra.mxu0 %v2098
    %v2273 = vpop.f32.mrf.mxu0
    %v2274 = vadd.f32 %v2254, %v2273
    %2275 = vdwg.mxu0
    %2276 = vmatpush.msra.mxu0 %v2195
    %2277 = vmatpush.msra.mxu0 %v2193
    %2278 = vmatpush.msra.mxu0 %v2191
    %2279 = vmatpush.msra.mxu0 %v2189
    %2280 = vmatpush.msra.mxu0 %v2187
    %2281 = vmatpush.msra.mxu0 %v2185
    %2282 = vmatpush.msra.mxu0 %v2183
    %2283 = vmatpush.msra.mxu0 %v2181
    %2284 = vmatpush.msra.mxu0 %v2179
    %2285 = vmatpush.msra.mxu0 %v2177
    %2286 = vmatpush.msra.mxu0 %v2175
    %2287 = vmatpush.msra.mxu0 %v2173
    %2288 = vmatpush.msra.mxu0 %v2171
    %2289 = vmatpush.msra.mxu0 %v2169
    %2290 = vmatpush.msra.mxu0 %v2167
    %2291 = vmatpush.msra.mxu0 %v2165
    %2292 = vmatmul.f32.gmra.mxu0 %v2099
    %v2293 = vpop.f32.mrf.mxu0
    %v2294 = vadd.f32 %v2274, %v2293
    %2295 = vdwg.mxu0
    %2296 = vmatpush.msra.mxu0 %v2227
    %2297 = vmatpush.msra.mxu0 %v2225
    %2298 = vmatpush.msra.mxu0 %v2223
    %2299 = vmatpush.msra.mxu0 %v2221
    %2300 = vmatpush.msra.mxu0 %v2219
    %2301 = vmatpush.msra.mxu0 %v2217
    %2302 = vmatpush.msra.mxu0 %v2215
    %2303 = vmatpush.msra.mxu0 %v2213
    %2304 = vmatpush.msra.mxu0 %v2211
    %2305 = vmatpush.msra.mxu0 %v2209
    %2306 = vmatpush.msra.mxu0 %v2207
    %2307 = vmatpush.msra.mxu0 %v2205
    %2308 = vmatpush.msra.mxu0 %v2203
    %2309 = vmatpush.msra.mxu0 %v2201
    %2310 = vmatpush.msra.mxu0 %v2199
    %2311 = vmatpush.msra.mxu0 %v2197
    %2312 = vmatmul.f32.gmra.mxu0 %v2100
    %v2313 = vpop.f32.mrf.mxu0
    %v2314 = vadd.f32 %v2294, %v2313
    %2315 = vdwg.mxu0
    %2316 = vmatpush.msra.mxu0 %v2132
    %2317 = vmatpush.msra.mxu0 %v2130
    %2318 = vmatpush.msra.mxu0 %v2128
    %2319 = vmatpush.msra.mxu0 %v2126
    %2320 = vmatpush.msra.mxu0 %v2124
    %2321 = vmatpush.msra.mxu0 %v2122
    %2322 = vmatpush.msra.mxu0 %v2120
    %2323 = vmatpush.msra.mxu0 %v2118
    %2324 = vmatpush.msra.mxu0 %v2116
    %2325 = vmatpush.msra.mxu0 %v2114
    %2326 = vmatpush.msra.mxu0 %v2112
    %2327 = vmatpush.msra.mxu0 %v2110
    %2328 = vmatpush.msra.mxu0 %v2108
    %2329 = vmatpush.msra.mxu0 %v2106
    %2330 = vmatpush.msra.mxu0 %v2104
    %2331 = vmatpush.msra.mxu0 %v2102
    %2332 = vmatmul.f32.gmra.mxu0 %v2097
    %v2333 = vpop.f32.mrf.mxu0
    %v2334 = vadd.f32 %v2233, %v2333
    %2335 = vdwg.mxu0
    %2336 = vmatpush.msra.mxu0 %v2164
    %2337 = vmatpush.msra.mxu0 %v2162
    %2338 = vmatpush.msra.mxu0 %v2160
    %2339 = vmatpush.msra.mxu0 %v2158
    %2340 = vmatpush.msra.mxu0 %v2156
    %2341 = vmatpush.msra.mxu0 %v2154
    %2342 = vmatpush.msra.mxu0 %v2152
    %2343 = vmatpush.msra.mxu0 %v2150
    %2344 = vmatpush.msra.mxu0 %v2148
    %2345 = vmatpush.msra.mxu0 %v2146
    %2346 = vmatpush.msra.mxu0 %v2144
    %2347 = vmatpush.msra.mxu0 %v2142
    %2348 = vmatpush.msra.mxu0 %v2140
    %2349 = vmatpush.msra.mxu0 %v2138
    %2350 = vmatpush.msra.mxu0 %v2136
    %2351 = vmatpush.msra.mxu0 %v2134
    %2352 = vmatmul.f32.gmra.mxu0 %v2098
    %v2353 = vpop.f32.mrf.mxu0
    %v2354 = vadd.f32 %v2334, %v2353
    %2355 = vdwg.mxu0
    %2356 = vmatpush.msra.mxu0 %v2196
    %2357 = vmatpush.msra.mxu0 %v2194
    %2358 = vmatpush.msra.mxu0 %v2192
    %2359 = vmatpush.msra.mxu0 %v2190
    %2360 = vmatpush.msra.mxu0 %v2188
    %2361 = vmatpush.msra.mxu0 %v2186
    %2362 = vmatpush.msra.mxu0 %v2184
    %2363 = vmatpush.msra.mxu0 %v2182
    %2364 = vmatpush.msra.mxu0 %v2180
    %2365 = vmatpush.msra.mxu0 %v2178
    %2366 = vmatpush.msra.mxu0 %v2176
    %2367 = vmatpush.msra.mxu0 %v2174
    %2368 = vmatpush.msra.mxu0 %v2172
    %2369 = vmatpush.msra.mxu0 %v2170
    %2370 = vmatpush.msra.mxu0 %v2168
    %2371 = vmatpush.msra.mxu0 %v2166
    %2372 = vmatmul.f32.gmra.mxu0 %v2099
    %v2373 = vpop.f32.mrf.mxu0
    %v2374 = vadd.f32 %v2354, %v2373
    %2375 = vdwg.mxu0
    %2376 = vmatpush.msra.mxu0 %v2228
    %2377 = vmatpush.msra.mxu0 %v2226
    %2378 = vmatpush.msra.mxu0 %v2224
    %2379 = vmatpush.msra.mxu0 %v2222
    %2380 = vmatpush.msra.mxu0 %v2220
    %2381 = vmatpush.msra.mxu0 %v2218
    %2382 = vmatpush.msra.mxu0 %v2216
    %2383 = vmatpush.msra.mxu0 %v2214
    %2384 = vmatpush.msra.mxu0 %v2212
    %2385 = vmatpush.msra.mxu0 %v2210
    %2386 = vmatpush.msra.mxu0 %v2208
    %2387 = vmatpush.msra.mxu0 %v2206
    %2388 = vmatpush.msra.mxu0 %v2204
    %2389 = vmatpush.msra.mxu0 %v2202
    %2390 = vmatpush.msra.mxu0 %v2200
    %2391 = vmatpush.msra.mxu0 %v2198
    %2392 = vmatmul.f32.gmra.mxu0 %v2100
    %v2393 = vpop.f32.mrf.mxu0
    %v2394 = vadd.f32 %v2374, %v2393
    %2395 = vdwg.mxu0
    %v2396 = vadd.f32 %v1796, %v2314
    %v2397 = vadd.f32 %v1797, %v2394
    %v2398 = vsel %vm1743, %v2396, 0.0
    %v2399 = vsel %vm1743, %v2397, 0.0
    %v2400 = vadd.f32 %v2398, %v2399
    %2401 = vadd.xlane.f32.xlu0 %v2400
    %v2402 = vpop.xlane.xlu0 %2401
    %v2403 = vmul.f32 %v2402, %v1755
    %v2404 = vsub.f32 %v2396, %v2403
    %v2405 = vsub.f32 %v2397, %v2403
    %v2406 = vmul.f32 %v2404, %v2404
    %v2407 = vmul.f32 %v2405, %v2405
    %v2408 = vsel %vm1743, %v2406, 0.0
    %v2409 = vsel %vm1743, %v2407, 0.0
    %v2410 = vadd.f32 %v2408, %v2409
    %2411 = vadd.xlane.f32.xlu0 %v2410
    %v2412 = vpop.xlane.xlu0 %2411
    %v2413 = vmul.f32 %v2412, %v1755
    %v2414 = vadd.f32 %v2413, 1e-05
    %v2415 = vrsqrt.pop %v2414
    %v2416 = vmul.f32 %v2415, %v2414
    %v2417 = vmul.f32 %v2416, %v2415
    %v2418 = vmul.f32 0.5, %v2417
    %v2419 = vsub.f32 1.5, %v2418
    %v2420 = vmul.f32 %v2415, %v2419
    %vm2421 = vweird.f32 %v2414
    %vm2422 = vweird.f32 %v2415
    %vm2423 = vmor %vm2421, %vm2422
    %v2424 = vsel %vm2423, %v2415, %v2420
    %v2425 = vmul.f32 %v2404, %v2424
    %v2426 = vmul.f32 %v2405, %v2424
    %s2427 = scalar_lea.vmem %s2, 33
    %v2428 = vld [vmem:[%s2427] ss:$8 sm:$0x3]
    %v2430 = vperm.slane %v2428, 0
    %v2431 = vperm.slane %v2428, 1
    %v2434 = vmul.f32 %v2425, %v2430
    %v2435 = vmul.f32 %v2426, %v2431
    %s2436 = scalar_lea.vmem %s2, 34
    %v2437 = vld [vmem:[%s2436] ss:$8 sm:$0x3]
    %v2439 = vperm.slane %v2437, 0
    %v2440 = vperm.slane %v2437, 1
    %v2443 = vadd.f32 %v2434, %v2439
    %v2444 = vadd.f32 %v2435, %v2440
    %s2445 = scalar_lea.vmem %s5, 512
    %v2446 = vld [vmem:[%s2445] sm:$0xff]
    %v2447 = vld [vmem:[%s2445 + $0x8] sm:$0xff]
    %v2448 = vld [vmem:[%s2445 + $0x10] sm:$0xff]
    %v2449 = vld [vmem:[%s2445 + $0x18] sm:$0xff]
    %v2450 = vld [vmem:[%s2445 + $0x20] sm:$0xff]
    %v2451 = vld [vmem:[%s2445 + $0x28] sm:$0xff]
    %v2452 = vld [vmem:[%s2445 + $0x30] sm:$0xff]
    %v2453 = vld [vmem:[%s2445 + $0x38] sm:$0xff]
    %v2454 = vld [vmem:[%s2445 + $0x40] sm:$0xff]
    %v2455 = vld [vmem:[%s2445 + $0x48] sm:$0xff]
    %v2456 = vld [vmem:[%s2445 + $0x50] sm:$0xff]
    %v2457 = vld [vmem:[%s2445 + $0x58] sm:$0xff]
    %v2458 = vld [vmem:[%s2445 + $0x60] sm:$0xff]
    %v2459 = vld [vmem:[%s2445 + $0x68] sm:$0xff]
    %v2460 = vld [vmem:[%s2445 + $0x70] sm:$0xff]
    %v2461 = vld [vmem:[%s2445 + $0x78] sm:$0xff]
    %v2462 = vld [vmem:[%s2445 + $0x80] sm:$0xff]
    %v2463 = vld [vmem:[%s2445 + $0x88] sm:$0xff]
    %v2464 = vld [vmem:[%s2445 + $0x90] sm:$0xff]
    %v2465 = vld [vmem:[%s2445 + $0x98] sm:$0xff]
    %v2466 = vld [vmem:[%s2445 + $0xa0] sm:$0xff]
    %v2467 = vld [vmem:[%s2445 + $0xa8] sm:$0xff]
    %v2468 = vld [vmem:[%s2445 + $0xb0] sm:$0xff]
    %v2469 = vld [vmem:[%s2445 + $0xb8] sm:$0xff]
    %v2470 = vld [vmem:[%s2445 + $0xc0] sm:$0xff]
    %v2471 = vld [vmem:[%s2445 + $0xc8] sm:$0xff]
    %v2472 = vld [vmem:[%s2445 + $0xd0] sm:$0xff]
    %v2473 = vld [vmem:[%s2445 + $0xd8] sm:$0xff]
    %v2474 = vld [vmem:[%s2445 + $0xe0] sm:$0xff]
    %v2475 = vld [vmem:[%s2445 + $0xe8] sm:$0xff]
    %v2476 = vld [vmem:[%s2445 + $0xf0] sm:$0xff]
    %v2477 = vld [vmem:[%s2445 + $0xf8] sm:$0xff]
    %v2478 = vld [vmem:[%s2445 + $0x100] sm:$0xff]
    %v2479 = vld [vmem:[%s2445 + $0x108] sm:$0xff]
    %v2480 = vld [vmem:[%s2445 + $0x110] sm:$0xff]
    %v2481 = vld [vmem:[%s2445 + $0x118] sm:$0xff]
    %v2482 = vld [vmem:[%s2445 + $0x120] sm:$0xff]
    %v2483 = vld [vmem:[%s2445 + $0x128] sm:$0xff]
    %v2484 = vld [vmem:[%s2445 + $0x130] sm:$0xff]
    %v2485 = vld [vmem:[%s2445 + $0x138] sm:$0xff]
    %v2486 = vld [vmem:[%s2445 + $0x140] sm:$0xff]
    %v2487 = vld [vmem:[%s2445 + $0x148] sm:$0xff]
    %v2488 = vld [vmem:[%s2445 + $0x150] sm:$0xff]
    %v2489 = vld [vmem:[%s2445 + $0x158] sm:$0xff]
    %v2490 = vld [vmem:[%s2445 + $0x160] sm:$0xff]
    %v2491 = vld [vmem:[%s2445 + $0x168] sm:$0xff]
    %v2492 = vld [vmem:[%s2445 + $0x170] sm:$0xff]
    %v2493 = vld [vmem:[%s2445 + $0x178] sm:$0xff]
    %v2494 = vld [vmem:[%s2445 + $0x180] sm:$0xff]
    %v2495 = vld [vmem:[%s2445 + $0x188] sm:$0xff]
    %v2496 = vld [vmem:[%s2445 + $0x190] sm:$0xff]
    %v2497 = vld [vmem:[%s2445 + $0x198] sm:$0xff]
    %v2498 = vld [vmem:[%s2445 + $0x1a0] sm:$0xff]
    %v2499 = vld [vmem:[%s2445 + $0x1a8] sm:$0xff]
    %v2500 = vld [vmem:[%s2445 + $0x1b0] sm:$0xff]
    %v2501 = vld [vmem:[%s2445 + $0x1b8] sm:$0xff]
    %v2502 = vld [vmem:[%s2445 + $0x1c0] sm:$0xff]
    %v2503 = vld [vmem:[%s2445 + $0x1c8] sm:$0xff]
    %v2504 = vld [vmem:[%s2445 + $0x1d0] sm:$0xff]
    %v2505 = vld [vmem:[%s2445 + $0x1d8] sm:$0xff]
    %v2506 = vld [vmem:[%s2445 + $0x1e0] sm:$0xff]
    %v2507 = vld [vmem:[%s2445 + $0x1e8] sm:$0xff]
    %v2508 = vld [vmem:[%s2445 + $0x1f0] sm:$0xff]
    %v2509 = vld [vmem:[%s2445 + $0x1f8] sm:$0xff]
    %v2510 = vld [vmem:[%s1] sm:$0x3]
    %v2511 = vld [vmem:[%s8] sm:$0x7f]
    %v2512 = vld [vmem:[%s8 + $0x8] sm:$0x7f]
    %vm2513 = vcmask 56320
    %v2515 = vsel %vm2513, %v2510, 0
    %vm2517 = vcmask 1046528
    %v2519 = vsel %vm2517, %v2511, 0
    %v2522 = vsel %vm2517, %v2512, 0
    %2524 = vmatpush.msra.mxu0 0.0
    %2525 = vmatpush.msra.mxu0 0.0
    %2526 = vmatpush.msra.mxu0 0.0
    %2527 = vmatpush.msra.mxu0 0.0
    %2528 = vmatpush.msra.mxu0 0.0
    %2529 = vmatpush.msra.mxu0 0.0
    %2530 = vmatpush.msra.mxu0 0.0
    %2531 = vmatpush.msra.mxu0 0.0
    %2532 = vmatpush.msra.mxu0 0.0
    %2533 = vmatpush.msra.mxu0 0.0
    %2534 = vmatpush.msra.mxu0 0.0
    %2535 = vmatpush.msra.mxu0 0.0
    %2536 = vmatpush.msra.mxu0 0.0
    %2537 = vmatpush.msra.mxu0 0.0
    %2538 = vmatpush.msra.mxu0 0.0
    %2539 = vmatpush.msra.mxu0 %v2519
    %2540 = vmatmul.f32.gmra.mxu0 %v2515
    %v2541 = vpop.f32.mrf.mxu0
    %v2542 = vadd.f32 0.0, %v2541
    %2543 = vdwg.mxu0
    %2544 = vmatpush.msra.mxu0 0.0
    %2545 = vmatpush.msra.mxu0 0.0
    %2546 = vmatpush.msra.mxu0 0.0
    %2547 = vmatpush.msra.mxu0 0.0
    %2548 = vmatpush.msra.mxu0 0.0
    %2549 = vmatpush.msra.mxu0 0.0
    %2550 = vmatpush.msra.mxu0 0.0
    %2551 = vmatpush.msra.mxu0 0.0
    %2552 = vmatpush.msra.mxu0 0.0
    %2553 = vmatpush.msra.mxu0 0.0
    %2554 = vmatpush.msra.mxu0 0.0
    %2555 = vmatpush.msra.mxu0 0.0
    %2556 = vmatpush.msra.mxu0 0.0
    %2557 = vmatpush.msra.mxu0 0.0
    %2558 = vmatpush.msra.mxu0 0.0
    %2559 = vmatpush.msra.mxu0 %v2522
    %2560 = vmatmul.f32.gmra.mxu0 %v2515
    %v2561 = vpop.f32.mrf.mxu0
    %v2562 = vadd.f32 0.0, %v2561
    %2563 = vdwg.mxu0
    %2564 = vmatpush.msra.mxu0 %v2476
    %2565 = vmatpush.msra.mxu0 %v2474
    %2566 = vmatpush.msra.mxu0 %v2472
    %2567 = vmatpush.msra.mxu0 %v2470
    %2568 = vmatpush.msra.mxu0 %v2468
    %2569 = vmatpush.msra.mxu0 %v2466
    %2570 = vmatpush.msra.mxu0 %v2464
    %2571 = vmatpush.msra.mxu0 %v2462
    %2572 = vmatpush.msra.mxu0 %v2460
    %2573 = vmatpush.msra.mxu0 %v2458
    %2574 = vmatpush.msra.mxu0 %v2456
    %2575 = vmatpush.msra.mxu0 %v2454
    %2576 = vmatpush.msra.mxu0 %v2452
    %2577 = vmatpush.msra.mxu0 %v2450
    %2578 = vmatpush.msra.mxu0 %v2448
    %2579 = vmatpush.msra.mxu0 %v2446
    %2580 = vmatmul.f32.gmra.mxu0 %v2443
    %v2581 = vpop.f32.mrf.mxu0
    %v2582 = vadd.f32 %v2542, %v2581
    %2583 = vdwg.mxu0
    %2584 = vmatpush.msra.mxu0 %v2508
    %2585 = vmatpush.msra.mxu0 %v2506
    %2586 = vmatpush.msra.mxu0 %v2504
    %2587 = vmatpush.msra.mxu0 %v2502
    %2588 = vmatpush.msra.mxu0 %v2500
    %2589 = vmatpush.msra.mxu0 %v2498
    %2590 = vmatpush.msra.mxu0 %v2496
    %2591 = vmatpush.msra.mxu0 %v2494
    %2592 = vmatpush.msra.mxu0 %v2492
    %2593 = vmatpush.msra.mxu0 %v2490
    %2594 = vmatpush.msra.mxu0 %v2488
    %2595 = vmatpush.msra.mxu0 %v2486
    %2596 = vmatpush.msra.mxu0 %v2484
    %2597 = vmatpush.msra.mxu0 %v2482
    %2598 = vmatpush.msra.mxu0 %v2480
    %2599 = vmatpush.msra.mxu0 %v2478
    %2600 = vmatmul.f32.gmra.mxu0 %v2444
    %v2601 = vpop.f32.mrf.mxu0
    %v2602 = vadd.f32 %v2582, %v2601
    %2603 = vdwg.mxu0
    %2604 = vmatpush.msra.mxu0 %v2477
    %2605 = vmatpush.msra.mxu0 %v2475
    %2606 = vmatpush.msra.mxu0 %v2473
    %2607 = vmatpush.msra.mxu0 %v2471
    %2608 = vmatpush.msra.mxu0 %v2469
    %2609 = vmatpush.msra.mxu0 %v2467
    %2610 = vmatpush.msra.mxu0 %v2465
    %2611 = vmatpush.msra.mxu0 %v2463
    %2612 = vmatpush.msra.mxu0 %v2461
    %2613 = vmatpush.msra.mxu0 %v2459
    %2614 = vmatpush.msra.mxu0 %v2457
    %2615 = vmatpush.msra.mxu0 %v2455
    %2616 = vmatpush.msra.mxu0 %v2453
    %2617 = vmatpush.msra.mxu0 %v2451
    %2618 = vmatpush.msra.mxu0 %v2449
    %2619 = vmatpush.msra.mxu0 %v2447
    %2620 = vmatmul.f32.gmra.mxu0 %v2443
    %v2621 = vpop.f32.mrf.mxu0
    %v2622 = vadd.f32 %v2562, %v2621
    %2623 = vdwg.mxu0
    %2624 = vmatpush.msra.mxu0 %v2509
    %2625 = vmatpush.msra.mxu0 %v2507
    %2626 = vmatpush.msra.mxu0 %v2505
    %2627 = vmatpush.msra.mxu0 %v2503
    %2628 = vmatpush.msra.mxu0 %v2501
    %2629 = vmatpush.msra.mxu0 %v2499
    %2630 = vmatpush.msra.mxu0 %v2497
    %2631 = vmatpush.msra.mxu0 %v2495
    %2632 = vmatpush.msra.mxu0 %v2493
    %2633 = vmatpush.msra.mxu0 %v2491
    %2634 = vmatpush.msra.mxu0 %v2489
    %2635 = vmatpush.msra.mxu0 %v2487
    %2636 = vmatpush.msra.mxu0 %v2485
    %2637 = vmatpush.msra.mxu0 %v2483
    %2638 = vmatpush.msra.mxu0 %v2481
    %2639 = vmatpush.msra.mxu0 %v2479
    %2640 = vmatmul.f32.gmra.mxu0 %v2444
    %v2641 = vpop.f32.mrf.mxu0
    %v2642 = vadd.f32 %v2622, %v2641
    %2643 = vdwg.mxu0
    %s2644 = scalar_lea.vmem %s2, 35
    %v2645 = vld [vmem:[%s2644] ss:$8 sm:$0x3]
    %v2647 = vperm.slane %v2645, 0
    %v2648 = vperm.slane %v2645, 1
    %v2651 = vadd.f32 %v2602, %v2647
    %v2652 = vadd.f32 %v2642, %v2648
    %v2653 = vmax.f32 %v2651, 0.0
    %v2654 = vmax.f32 %v2652, 0.0
    %v2655 = vld [vmem:[%s9] sm:$0xff]
    %v2656 = vld [vmem:[%s9 + $0x8] sm:$0xff]
    %v2657 = vld [vmem:[%s9 + $0x10] sm:$0xff]
    %v2658 = vld [vmem:[%s9 + $0x18] sm:$0xff]
    %v2659 = vld [vmem:[%s9 + $0x20] sm:$0xff]
    %v2660 = vld [vmem:[%s9 + $0x28] sm:$0xff]
    %v2661 = vld [vmem:[%s9 + $0x30] sm:$0xff]
    %v2662 = vld [vmem:[%s9 + $0x38] sm:$0xff]
    %v2663 = vld [vmem:[%s9 + $0x40] sm:$0xff]
    %v2664 = vld [vmem:[%s9 + $0x48] sm:$0xff]
    %v2665 = vld [vmem:[%s9 + $0x50] sm:$0xff]
    %v2666 = vld [vmem:[%s9 + $0x58] sm:$0xff]
    %v2667 = vld [vmem:[%s9 + $0x60] sm:$0xff]
    %v2668 = vld [vmem:[%s9 + $0x68] sm:$0xff]
    %v2669 = vld [vmem:[%s9 + $0x70] sm:$0xff]
    %v2670 = vld [vmem:[%s9 + $0x78] sm:$0xff]
    %v2671 = vld [vmem:[%s9 + $0x80] sm:$0xff]
    %v2672 = vld [vmem:[%s9 + $0x88] sm:$0xff]
    %v2673 = vld [vmem:[%s9 + $0x90] sm:$0xff]
    %v2674 = vld [vmem:[%s9 + $0x98] sm:$0xff]
    %v2675 = vld [vmem:[%s9 + $0xa0] sm:$0xff]
    %v2676 = vld [vmem:[%s9 + $0xa8] sm:$0xff]
    %v2677 = vld [vmem:[%s9 + $0xb0] sm:$0xff]
    %v2678 = vld [vmem:[%s9 + $0xb8] sm:$0xff]
    %v2679 = vld [vmem:[%s9 + $0xc0] sm:$0xff]
    %v2680 = vld [vmem:[%s9 + $0xc8] sm:$0xff]
    %v2681 = vld [vmem:[%s9 + $0xd0] sm:$0xff]
    %v2682 = vld [vmem:[%s9 + $0xd8] sm:$0xff]
    %v2683 = vld [vmem:[%s9 + $0xe0] sm:$0xff]
    %v2684 = vld [vmem:[%s9 + $0xe8] sm:$0xff]
    %v2685 = vld [vmem:[%s9 + $0xf0] sm:$0xff]
    %v2686 = vld [vmem:[%s9 + $0xf8] sm:$0xff]
    %v2687 = vld [vmem:[%s2 + $0x24] ss:$0 sm:$0xff]
    %2688 = vmatpush.msra.mxu0 %v2670
    %2689 = vmatpush.msra.mxu0 %v2669
    %2690 = vmatpush.msra.mxu0 %v2668
    %2691 = vmatpush.msra.mxu0 %v2667
    %2692 = vmatpush.msra.mxu0 %v2666
    %2693 = vmatpush.msra.mxu0 %v2665
    %2694 = vmatpush.msra.mxu0 %v2664
    %2695 = vmatpush.msra.mxu0 %v2663
    %2696 = vmatpush.msra.mxu0 %v2662
    %2697 = vmatpush.msra.mxu0 %v2661
    %2698 = vmatpush.msra.mxu0 %v2660
    %2699 = vmatpush.msra.mxu0 %v2659
    %2700 = vmatpush.msra.mxu0 %v2658
    %2701 = vmatpush.msra.mxu0 %v2657
    %2702 = vmatpush.msra.mxu0 %v2656
    %2703 = vmatpush.msra.mxu0 %v2655
    %2704 = vmatmul.f32.gmra.mxu0 %v2653
    %v2705 = vpop.f32.mrf.mxu0
    %v2706 = vadd.f32 %v2687, %v2705
    %2707 = vdwg.mxu0
    %2708 = vmatpush.msra.mxu0 %v2686
    %2709 = vmatpush.msra.mxu0 %v2685
    %2710 = vmatpush.msra.mxu0 %v2684
    %2711 = vmatpush.msra.mxu0 %v2683
    %2712 = vmatpush.msra.mxu0 %v2682
    %2713 = vmatpush.msra.mxu0 %v2681
    %2714 = vmatpush.msra.mxu0 %v2680
    %2715 = vmatpush.msra.mxu0 %v2679
    %2716 = vmatpush.msra.mxu0 %v2678
    %2717 = vmatpush.msra.mxu0 %v2677
    %2718 = vmatpush.msra.mxu0 %v2676
    %2719 = vmatpush.msra.mxu0 %v2675
    %2720 = vmatpush.msra.mxu0 %v2674
    %2721 = vmatpush.msra.mxu0 %v2673
    %2722 = vmatpush.msra.mxu0 %v2672
    %2723 = vmatpush.msra.mxu0 %v2671
    %2724 = vmatmul.f32.gmra.mxu0 %v2654
    %v2725 = vpop.f32.mrf.mxu0
    %v2726 = vadd.f32 %v2706, %v2725
    %2727 = vdwg.mxu0
    %v2728 = vmax.f32 %v2726, 0.0
    %v2729 = vld [vmem:[#allocation8] sm:$0xff]
    %v2730 = vld [vmem:[#allocation8 + $0x8] sm:$0xff]
    %v2731 = vld [vmem:[#allocation8 + $0x10] sm:$0xff]
    %v2732 = vld [vmem:[#allocation8 + $0x18] sm:$0xff]
    %v2733 = vld [vmem:[#allocation8 + $0x20] sm:$0xff]
    %v2734 = vld [vmem:[#allocation8 + $0x28] sm:$0xff]
    %v2735 = vld [vmem:[#allocation8 + $0x30] sm:$0xff]
    %v2736 = vld [vmem:[#allocation8 + $0x38] sm:$0xff]
    %v2737 = vld [vmem:[#allocation8 + $0x40] sm:$0xff]
    %v2738 = vld [vmem:[#allocation8 + $0x48] sm:$0xff]
    %v2739 = vld [vmem:[#allocation8 + $0x50] sm:$0xff]
    %v2740 = vld [vmem:[#allocation8 + $0x58] sm:$0xff]
    %v2741 = vld [vmem:[#allocation8 + $0x60] sm:$0xff]
    %v2742 = vld [vmem:[#allocation8 + $0x68] sm:$0xff]
    %v2743 = vld [vmem:[#allocation8 + $0x70] sm:$0xff]
    %v2744 = vld [vmem:[#allocation8 + $0x78] sm:$0xff]
    %v2745 = vld [vmem:[%s2 + $0x25] ss:$0 sm:$0xff]
    %2746 = vmatpush.msra.mxu0 %v2744
    %2747 = vmatpush.msra.mxu0 %v2743
    %2748 = vmatpush.msra.mxu0 %v2742
    %2749 = vmatpush.msra.mxu0 %v2741
    %2750 = vmatpush.msra.mxu0 %v2740
    %2751 = vmatpush.msra.mxu0 %v2739
    %2752 = vmatpush.msra.mxu0 %v2738
    %2753 = vmatpush.msra.mxu0 %v2737
    %2754 = vmatpush.msra.mxu0 %v2736
    %2755 = vmatpush.msra.mxu0 %v2735
    %2756 = vmatpush.msra.mxu0 %v2734
    %2757 = vmatpush.msra.mxu0 %v2733
    %2758 = vmatpush.msra.mxu0 %v2732
    %2759 = vmatpush.msra.mxu0 %v2731
    %2760 = vmatpush.msra.mxu0 %v2730
    %2761 = vmatpush.msra.mxu0 %v2729
    %2762 = vmatmul.f32.gmra.mxu0 %v2728
    %v2763 = vpop.f32.mrf.mxu0
    %v2764 = vadd.f32 %v2745, %v2763
    %2765 = vdwg.mxu0
    %v2766 = vmax.f32 %v2764, 0.0
    %s2767 = scalar_lea.vmem [#allocation8], 128
    %v2768 = vld [vmem:[%s2767] sm:$0xff]
    %v2769 = vld [vmem:[%s2767 + $0x8] sm:$0xff]
    %v2770 = vld [vmem:[%s2767 + $0x10] sm:$0xff]
    %v2771 = vld [vmem:[%s2767 + $0x18] sm:$0xff]
    %v2772 = vld [vmem:[%s2767 + $0x20] sm:$0xff]
    %v2773 = vld [vmem:[%s2767 + $0x28] sm:$0xff]
    %v2774 = vld [vmem:[%s2767 + $0x30] sm:$0xff]
    %v2775 = vld [vmem:[%s2767 + $0x38] sm:$0xff]
    %v2776 = vld [vmem:[%s2767 + $0x40] sm:$0xff]
    %v2777 = vld [vmem:[%s2767 + $0x48] sm:$0xff]
    %v2778 = vld [vmem:[%s2767 + $0x50] sm:$0xff]
    %v2779 = vld [vmem:[%s2767 + $0x58] sm:$0xff]
    %v2780 = vld [vmem:[%s2767 + $0x60] sm:$0xff]
    %v2781 = vld [vmem:[%s2767 + $0x68] sm:$0xff]
    %v2782 = vld [vmem:[%s2767 + $0x70] sm:$0xff]
    %v2783 = vld [vmem:[%s2767 + $0x78] sm:$0xff]
    %v2784 = vld [vmem:[%s2 + $0x26] ss:$0 sm:$0xff]
    %2785 = vmatpush.msra.mxu0 %v2783
    %2786 = vmatpush.msra.mxu0 %v2782
    %2787 = vmatpush.msra.mxu0 %v2781
    %2788 = vmatpush.msra.mxu0 %v2780
    %2789 = vmatpush.msra.mxu0 %v2779
    %2790 = vmatpush.msra.mxu0 %v2778
    %2791 = vmatpush.msra.mxu0 %v2777
    %2792 = vmatpush.msra.mxu0 %v2776
    %2793 = vmatpush.msra.mxu0 %v2775
    %2794 = vmatpush.msra.mxu0 %v2774
    %2795 = vmatpush.msra.mxu0 %v2773
    %2796 = vmatpush.msra.mxu0 %v2772
    %2797 = vmatpush.msra.mxu0 %v2771
    %2798 = vmatpush.msra.mxu0 %v2770
    %2799 = vmatpush.msra.mxu0 %v2769
    %2800 = vmatpush.msra.mxu0 %v2768
    %2801 = vmatmul.f32.gmra.mxu0 %v2766
    %v2802 = vpop.f32.mrf.mxu0
    %v2803 = vadd.f32 %v2784, %v2802
    %2804 = vdwg.mxu0
    %2805 = vst [vmem:[#allocation10] sm:$0x3] %v2803
    // Predicated region
    $region62: #{network_forward.1} parent=1 // pred_check
      _
    $region63: #{network_forward.1} parent=1 // pred_check_branch
      %2807 = sbr.rel (0) target = $region65
    $region64: #{network_forward.1} parent=1 // pred_region
      %2809 = vsyncadd [#allocation4], 0
      %s2811 = sshll.u32 [#allocation10], 4
      %s2812 = int_to_ptr.vmem [resolvable:$true] %s2811
      %s2813 = sshll.u32 %s11, 4
      %s2814 = int_to_ptr.hbm [resolvable:$true] %s2813
      %2816 = dma.vmem_to_hbm [thread:$0]  %s2812, 32, %s2814, [#allocation4]
    $region65: #{network_forward.1} parent=1 // pred_fallthru
      _
    // Predicated region
    $region66: #{network_forward.1} parent=1 // pred_check
      _
    $region67: #{network_forward.1} parent=1 // pred_check_branch
      %2818 = sbr.rel (0) target = $region69
    $region68: #{network_forward.1} parent=1 // pred_region
      %2820 = dma.done [#allocation4], 32
    $region69: #{network_forward.1} parent=1 // pred_fallthru
      _
    %2821 = vsyncpa [#allocation3], 1
    %2822 = vsyncpa [#allocation6], 1
    %2823 = vsyncpa [#allocation9], 1
    %2824 = vsyncpa [#allocation4], 1

</llo_original>
